<compile_context>
chip_gen: v5e
topology: v5e:2x2
jax: 0.10.0
libtpu: 0.0.40
codegen_flags: <defaults>
</compile_context>

<pallas_src>
import functools
import math

import jax
import jax.numpy as jnp
from jax.experimental import pallas as pl
from jax.experimental.pallas import tpu as pltpu


# ----------------------------------------------------------------------------- helpers
def _layernorm(x, gamma, beta, eps=1e-5):
    mu = jnp.mean(x, axis=-1, keepdims=True)
    xc = x - mu
    var = jnp.mean(xc * xc, axis=-1, keepdims=True)
    return xc * jax.lax.rsqrt(var + eps) * gamma + beta


def _softmax_lastdim(s):
    # In-kernel softmax: exp on the EUP, denominator via approximate reciprocal (EUP)
    m = jnp.max(s, axis=-1, keepdims=True)
    e = jnp.exp(s - m)
    return e * pl.reciprocal(jnp.sum(e, axis=-1, keepdims=True), approx=True)


def _vmem_limit_bytes():
    """Per-generation scoped-VMEM limit: ~3/4 of physical (48 MiB v7x, 96 MiB v5e/v6e)."""
    cap = 64 * 1024 * 1024
    try:
        cap = int(getattr(pltpu.get_tpu_info(), "vmem_capacity_bytes", cap))
    except Exception:
        pass
    return int(min(cap * 3 // 4, 100 * 1024 * 1024))


def _choose_bt(B, L, Le):
    """Largest Bt with >=2 grid steps that satisfies the (8,128) second-to-last rule."""
    for bt in range(B // 2, 0, -1):
        if B % bt == 0 and (bt * L) % 8 == 0 and (bt * Le) % 8 == 0:
            return bt
    return B


def _choose_tile_v(V, cap=512):
    """Lane-dense V tile: multiple of 128 dividing V (falls back to full V)."""
    if V % 128 != 0:
        return V
    tv = min(cap, V)
    tv -= tv % 128
    while tv > 128 and V % tv != 0:
        tv -= 128
    return tv if V % tv == 0 else V


# ----------------------------------------------------------------------------- kernels
def decoder_block_kernel(num_heads, L, Le,
                         enc_valid_ref,                     # SMEM (B,) int32 (prefetch)
                         x_ref,                             # (Bt*L, D)  f32
                         enc_ref,                            # (Bt*Le, D) bf16
                         wqkv1_ref, wo1_ref,                 # (D,3D) bf16, (D,D) bf16
                         wq2_ref, wkv2_ref, wo2_ref,         # (D,D), (D,2D), (D,D) bf16
                         w1_ref, b1_ref, w2_ref, b2_ref,     # (D,F) bf16,(1,F) f32,(F,D) bf16,(1,D) f32
                         g1_ref, be1_ref, g2_ref, be2_ref, g3_ref, be3_ref,  # (1,D) f32
                         out_ref,                            # (Bt*L, D)  f32
                         heads_ref):                         # scratch (Bt*L, D) bf16
    blk = pl.program_id(0)
    D = x_ref.shape[-1]
    Bt = x_ref.shape[0] // L
    H = num_heads
    dh = D // H
    bf16 = jnp.bfloat16
    scale = jnp.float32(1.0 / math.sqrt(dh))
    neg = jnp.float32(-1e6)

    x = x_ref[...]                                           # (Bt*L, D) f32
    xb = x.astype(bf16)

    # ---------------- masked (causal) self-attention -----------------------------
    # fused Q|K|V projection: one MXU pass with N = 3D; cast q/k/v to bf16 ONCE
    qkv = jnp.dot(xb, wqkv1_ref[...], preferred_element_type=jnp.float32)
    q = (qkv[:, :D] * scale).astype(bf16).reshape(Bt, L, D)  # 1/sqrt(dh) folded into Q
    k = qkv[:, D:2 * D].astype(bf16).reshape(Bt, L, D)
    v = qkv[:, 2 * D:].astype(bf16).reshape(Bt, L, D)

    # causal keep mask at (1, L, L); broadcasts over the batch in jnp.where
    qrow = jax.lax.broadcasted_iota(jnp.int32, (1, L, L), 1)
    kcol = jax.lax.broadcasted_iota(jnp.int32, (1, L, L), 2)
    causal_keep = kcol <= qrow

    for h in range(H):                                       # static unroll over heads
        sl = slice(h * dh, (h + 1) * dh)
        s = jnp.einsum('bqd,bkd->bqk', q[:, :, sl], k[:, :, sl],
                       preferred_element_type=jnp.float32)
        s = jnp.where(causal_keep, s, neg)
        p = _softmax_lastdim(s)
        o = jnp.einsum('bqk,bkd->bqd', p.astype(bf16), v[:, :, sl],
                       preferred_element_type=jnp.float32)
        # store this head's output into its lane slice of the VMEM scratch (plain stores)
        heads_ref[:, sl] = o.reshape(Bt * L, dh).astype(bf16)
    # ONE (Bt*L, D) @ (D, D) output projection (full-depth MXU contraction)
    attn1 = jnp.dot(heads_ref[...], wo1_ref[...], preferred_element_type=jnp.float32)

    y = _layernorm(attn1 + x, g1_ref[...], be1_ref[...])     # AddNorm 1 (f32)

    # ---------------- encoder-decoder cross attention -----------------------------
    q2 = (jnp.dot(y.astype(bf16), wq2_ref[...],
                  preferred_element_type=jnp.float32) * scale).astype(bf16)
    q2 = q2.reshape(Bt, L, D)
    kv2 = jnp.dot(enc_ref[...], wkv2_ref[...],               # fused K|V, N = 2D
                  preferred_element_type=jnp.float32)        # (Bt*Le, 2D)
    k2 = kv2[:, :D].astype(bf16).reshape(Bt, Le, D)
    v2 = kv2[:, D:].astype(bf16).reshape(Bt, Le, D)

    # per-sequence enc_valid_lens mask: tiny (Bt,1,1) column + one broadcast compare
    bcol = jax.lax.broadcasted_iota(jnp.int32, (Bt, 1, 1), 0)
    vlen = jnp.zeros((Bt, 1, 1), jnp.int32)
    for i in range(Bt):                                      # O(Bt) scalar SMEM reads only
        vlen = jnp.where(bcol == i, enc_valid_ref[blk * Bt + i], vlen)
    keep2 = jax.lax.broadcasted_iota(jnp.int32, (1, 1, Le), 2) < vlen   # (Bt,1,Le)

    for h in range(H):
        sl = slice(h * dh, (h + 1) * dh)
        s = jnp.einsum('bqd,bkd->bqk', q2[:, :, sl], k2[:, :, sl],
                       preferred_element_type=jnp.float32)
        s = jnp.where(keep2, s, neg)
        p = _softmax_lastdim(s)
        o = jnp.einsum('bqk,bkd->bqd', p.astype(bf16), v2[:, :, sl],
                       preferred_element_type=jnp.float32)
        heads_ref[:, sl] = o.reshape(Bt * L, dh).astype(bf16)
    attn2 = jnp.dot(heads_ref[...], wo2_ref[...], preferred_element_type=jnp.float32)

    z = _layernorm(attn2 + y, g2_ref[...], be2_ref[...])     # AddNorm 2

    # ---------------- position-wise FFN -------------------------------------------
    h1 = jnp.maximum(jnp.dot(z.astype(bf16), w1_ref[...],
                             preferred_element_type=jnp.float32) + b1_ref[...], 0.0)
    ffn = jnp.dot(h1.astype(bf16), w2_ref[...],
                  preferred_element_type=jnp.float32) + b2_ref[...]

    out_ref[...] = _layernorm(ffn + z, g3_ref[...], be3_ref[...])   # AddNorm 3


def dense_kernel(x_ref, w_ref, b_ref, out_ref):
    xb = x_ref[...].astype(jnp.bfloat16)
    out_ref[...] = (jnp.dot(xb, w_ref[...], preferred_element_type=jnp.float32)
                    + b_ref[...])


# ----------------------------------------------------------------------------- wrappers
_WEIGHT_SINGLE_BUFFER = True   # flipped to False if this JAX build rejects pipeline_mode


def _decoder_block_call(x, enc, enc_valid_lens, bp, *, num_heads, L, Le, Bt,
                        single_buffer):
    BL, D = x.shape
    B = BL // L
    F = bp["w1"].shape[1]
    assert B % Bt == 0
    assert Bt == B or ((Bt * L) % 8 == 0 and (Bt * Le) % 8 == 0)

    def wspec(shape):
        nd = len(shape)
        idx = lambda b, vl, _nd=nd: (0,) * _nd
        if single_buffer:
            # constant blocks: no need to double-buffer (index never changes)
            return pl.BlockSpec(shape, idx, pipeline_mode=pl.Buffered(1))
        return pl.BlockSpec(shape, idx)

    kernel = functools.partial(decoder_block_kernel, num_heads, L, Le)
    return pl.pallas_call(
        kernel,
        out_shape=jax.ShapeDtypeStruct((BL, D), jnp.float32),
        grid_spec=pltpu.PrefetchScalarGridSpec(
            num_scalar_prefetch=1,
            grid=(B // Bt,),
            in_specs=[
                pl.BlockSpec((Bt * L, D), lambda b, vl: (b, 0)),      # x slab
                pl.BlockSpec((Bt * Le, D), lambda b, vl: (b, 0)),     # enc slab
                wspec((D, 3 * D)),                                     # fused Wq|Wk|Wv
                wspec((D, D)),                                         # Wo1
                wspec((D, D)),                                         # Wq2
                wspec((D, 2 * D)),                                     # fused Wk2|Wv2
                wspec((D, D)),                                         # Wo2
                wspec((D, F)), wspec((1, F)),                          # FFN dense1
                wspec((F, D)), wspec((1, D)),                          # FFN dense2
                wspec((1, D)), wspec((1, D)),                          # LN1
                wspec((1, D)), wspec((1, D)),                          # LN2
                wspec((1, D)), wspec((1, D)),                          # LN3
            ],
            out_specs=pl.BlockSpec((Bt * L, D), lambda b, vl: (b, 0)),
            scratch_shapes=[pltpu.VMEM((Bt * L, D), jnp.bfloat16)],    # head concat slab
        ),
        compiler_params=pltpu.CompilerParams(
            dimension_semantics=("parallel",),           # batch blocks are independent
            vmem_limit_bytes=_vmem_limit_bytes()),
    )(enc_valid_lens, x, enc,
      bp["wqkv1"], bp["wo1"], bp["wq2"], bp["wkv2"], bp["wo2"],
      bp["w1"], bp["b1"], bp["w2"], bp["b2"],
      bp["g1"], bp["be1"], bp["g2"], bp["be2"], bp["g3"], bp["be3"])


def decoder_block_call(x, enc, enc_valid_lens, bp, *, num_heads, L, Le, Bt):
    global _WEIGHT_SINGLE_BUFFER
    if _WEIGHT_SINGLE_BUFFER:
        try:
            return _decoder_block_call(x, enc, enc_valid_lens, bp, num_heads=num_heads,
                                       L=L, Le=Le, Bt=Bt, single_buffer=True)
        except Exception:
            _WEIGHT_SINGLE_BUFFER = False   # this build rejects Buffered(1): fall back
    return _decoder_block_call(x, enc, enc_valid_lens, bp, num_heads=num_heads,
                               L=L, Le=Le, Bt=Bt, single_buffer=False)


def final_dense_call(x, wd, bd, *, L, Bt):
    BL, D = x.shape
    B = BL // L
    V = wd.shape[1]
    TV = _choose_tile_v(V)
    assert B % Bt == 0 and V % TV == 0
    return pl.pallas_call(
        dense_kernel,
        out_shape=jax.ShapeDtypeStruct((BL, V), jnp.float32),
        grid=(B // Bt, V // TV),
        in_specs=[pl.BlockSpec((Bt * L, D), lambda b, v: (b, 0)),
                  pl.BlockSpec((D, TV), lambda b, v: (0, v)),
                  pl.BlockSpec((1, TV), lambda b, v: (0, v))],
        out_specs=pl.BlockSpec((Bt * L, TV), lambda b, v: (b, v)),
        compiler_params=pltpu.CompilerParams(
            dimension_semantics=("parallel", "parallel"),
            vmem_limit_bytes=_vmem_limit_bytes()),
    )(x, wd, bd)


def prepare_params(raw, num_heads):
    """Fuse QKV / KV weights and cast matmul weights to bf16 (Wo kept un-split)."""
    bf = jnp.bfloat16
    blocks = []
    for bp in raw["blocks"]:
        blocks.append(dict(
            wqkv1=jnp.concatenate([bp["wq1"], bp["wk1"], bp["wv1"]], axis=1).astype(bf),
            wo1=bp["wo1"].astype(bf),
            wq2=bp["wq2"].astype(bf),
            wkv2=jnp.concatenate([bp["wk2"], bp["wv2"]], axis=1).astype(bf),
            wo2=bp["wo2"].astype(bf),
            w1=bp["w1"].astype(bf), b1=bp["b1"],
            w2=bp["w2"].astype(bf), b2=bp["b2"],
            g1=bp["g1"], be1=bp["be1"], g2=bp["g2"], be2=bp["be2"],
            g3=bp["g3"], be3=bp["be3"]))
    return dict(emb=raw["emb"], pos=raw["pos"], blocks=blocks,
                wd=raw["wd"].astype(bf), bd=raw["bd"])


def transformer_decoder_forward(tokens, enc_outputs, enc_valid_lens, params, *,
                                num_heads, Bt=None):
    B, L = tokens.shape
    _, Le, D = enc_outputs.shape
    V = params["wd"].shape[1]
    if Bt is None:
        Bt = _choose_bt(B, L, Le)      # >= 2 grid steps whenever tiling rules allow
    assert B % Bt == 0

    # embedding gather + sqrt(D) scale + positional encoding (plain JAX, see TODO above)
    x = params["emb"][tokens].astype(jnp.float32) * math.sqrt(D) + params["pos"][None, :L, :]
    x = x.reshape(B * L, D)                                   # token-major slab
    enc = enc_outputs.reshape(B * Le, D).astype(jnp.bfloat16)
    vl = enc_valid_lens.astype(jnp.int32)

    for bp in params["blocks"]:
        x = decoder_block_call(x, enc, vl, bp, num_heads=num_heads, L=L, Le=Le, Bt=Bt)

    logits = final_dense_call(x, params["wd"], params["bd"], L=L, Bt=Bt)
    return logits.reshape(B, L, V)


# ----------------------------------------------------------------------------- reference
def _mm(a, b):
    """bf16-input / f32-accumulate matmul mirroring the kernel's MXU precision."""
    return jax.lax.dot_general(
        a.astype(jnp.bfloat16), b.astype(jnp.bfloat16),
        dimension_numbers=(((a.ndim - 1,), (0,)), ((), ())),
        preferred_element_type=jnp.float32)


def ref_mha(queries, keys, values, wq, wk, wv, wo, valid_lens, num_heads):
    B, Lq, D = queries.shape
    Lk = keys.shape[1]
    dh = D // num_heads

    def split(t):
        return t.reshape(B, -1, num_heads, dh).transpose(0, 2, 1, 3)   # (B,H,L,dh)

    q = split(_mm(queries, wq))
    k = split(_mm(keys, wk))
    v = split(_mm(values, wv))
    scores = jnp.einsum('bhqd,bhkd->bhqk', q.astype(jnp.bfloat16),
                        k.astype(jnp.bfloat16),
                        preferred_element_type=jnp.float32) / math.sqrt(dh)
    if valid_lens is not None:
        if valid_lens.ndim == 1:        # (B,)  -> per-sequence key length
            keep = jnp.arange(Lk)[None, None, None, :] < valid_lens[:, None, None, None]
        else:                            # (B,Lq) -> per-query key length
            keep = jnp.arange(Lk)[None, None, None, :] < valid_lens[:, None, :, None]
        scores = jnp.where(keep, scores, -1e6)
    attn = jax.nn.softmax(scores, axis=-1)
    out = jnp.einsum('bhqk,bhkd->bhqd', attn.astype(jnp.bfloat16),
                     v.astype(jnp.bfloat16), preferred_element_type=jnp.float32)
    out = out.transpose(0, 2, 1, 3).reshape(B, Lq, D)
    return _mm(out, wo)


def ref_decoder_block(x, enc, enc_valid_lens, bp, num_heads):
    B, L, D = x.shape
    dec_valid = jnp.tile(jnp.arange(1, L + 1, dtype=jnp.int32)[None, :], (B, 1))
    x2 = ref_mha(x, x, x, bp["wq1"], bp["wk1"], bp["wv1"], bp["wo1"], dec_valid, num_heads)
    y = _layernorm(x2 + x, bp["g1"], bp["be1"])
    y2 = ref_mha(y, enc, enc, bp["wq2"], bp["wk2"], bp["wv2"], bp["wo2"],
                 enc_valid_lens, num_heads)
    z = _layernorm(y2 + y, bp["g2"], bp["be2"])
    ffn = _mm(jnp.maximum(_mm(z, bp["w1"]) + bp["b1"], 0.0), bp["w2"]) + bp["b2"]
    return _layernorm(ffn + z, bp["g3"], bp["be3"])


def ref_transformer_decoder(tokens, enc_outputs, enc_valid_lens, raw, num_heads):
    B, L = tokens.shape
    D = raw["emb"].shape[1]
    x = raw["emb"][tokens].astype(jnp.float32) * math.sqrt(D) + raw["pos"][None, :L, :]
    for bp in raw["blocks"]:
        x = ref_decoder_block(x, enc_outputs, enc_valid_lens, bp, num_heads)
    return _mm(x, raw["wd"]) + raw["bd"]


def make_positional_encoding(max_len, D):
    pos = jnp.arange(max_len, dtype=jnp.float32)[:, None]
    inv = jnp.power(10000.0, jnp.arange(0, D, 2, dtype=jnp.float32) / D)
    ang = pos / inv
    P = jnp.zeros((max_len, D), jnp.float32)
    P = P.at[:, 0::2].set(jnp.sin(ang))
    P = P.at[:, 1::2].set(jnp.cos(ang))
    return P


# ----------------------------------------------------------------------------- demo
if __name__ == "__main__":
    B, L, Le = 2, 8, 8          # batch, decoder steps, encoder steps
    D, F, V = 32, 64, 128       # num_hiddens, ffn_num_hiddens, vocab_size
    num_heads, num_layers = 4, 2

    key = jax.random.PRNGKey(0)
    keys = iter(jax.random.split(key, 128))

    def w(shape, s=0.1):
        return s * jax.random.normal(next(keys), shape, jnp.float32)

    raw_blocks = []
    for _ in range(num_layers):
        raw_blocks.append(dict(
            wq1=w((D, D)), wk1=w((D, D)), wv1=w((D, D)), wo1=w((D, D)),
            wq2=w((D, D)), wk2=w((D, D)), wv2=w((D, D)), wo2=w((D, D)),
            w1=w((D, F)), b1=w((1, F)), w2=w((F, D)), b2=w((1, D)),
            g1=1.0 + w((1, D), 0.05), be1=w((1, D), 0.05),
            g2=1.0 + w((1, D), 0.05), be2=w((1, D), 0.05),
            g3=1.0 + w((1, D), 0.05), be3=w((1, D), 0.05)))
    raw = dict(emb=w((V, D), 0.1), pos=make_positional_encoding(64, D),
               blocks=raw_blocks, wd=w((D, V)), bd=w((1, V)))

    tokens = jax.random.randint(next(keys), (B, L), 0, V)
    enc_outputs = jax.random.normal(next(keys), (B, Le, D), jnp.float32)
    enc_valid_lens = jnp.array([3, 6], dtype=jnp.int32)

    params = prepare_params(raw, num_heads)
    out = transformer_decoder_forward(tokens, enc_outputs, enc_valid_lens, params,
                                      num_heads=num_heads)
    out = jax.block_until_ready(out)

    ref = ref_transformer_decoder(tokens, enc_outputs, enc_valid_lens, raw, num_heads)
    assert out.shape == (B, L, V)
    assert jnp.allclose(out, ref, rtol=2e-2, atol=2e-2), (
        f"max abs err = {jnp.max(jnp.abs(out - ref))}")

    print("KERNEL_OK")
</pallas_src>

<mosaic_0001>
module attributes {stable_mosaic.version = 11 : i64} {
  func.func @decoder_block_kernel(%arg0: i32, %arg1: memref<2xi32, #tpu.memory_space<smem>>, %arg2: memref<8x32xf32, #tpu.memory_space<vmem>>, %arg3: memref<8x32xbf16, #tpu.memory_space<vmem>>, %arg4: memref<32x96xbf16, #tpu.memory_space<vmem>>, %arg5: memref<32x32xbf16, #tpu.memory_space<vmem>>, %arg6: memref<32x32xbf16, #tpu.memory_space<vmem>>, %arg7: memref<32x64xbf16, #tpu.memory_space<vmem>>, %arg8: memref<32x32xbf16, #tpu.memory_space<vmem>>, %arg9: memref<32x64xbf16, #tpu.memory_space<vmem>>, %arg10: memref<1x64xf32, #tpu.memory_space<vmem>>, %arg11: memref<64x32xbf16, #tpu.memory_space<vmem>>, %arg12: memref<1x32xf32, #tpu.memory_space<vmem>>, %arg13: memref<1x32xf32, #tpu.memory_space<vmem>>, %arg14: memref<1x32xf32, #tpu.memory_space<vmem>>, %arg15: memref<1x32xf32, #tpu.memory_space<vmem>>, %arg16: memref<1x32xf32, #tpu.memory_space<vmem>>, %arg17: memref<1x32xf32, #tpu.memory_space<vmem>>, %arg18: memref<1x32xf32, #tpu.memory_space<vmem>>, %arg19: memref<8x32xf32, #tpu.memory_space<vmem>>, %arg20: memref<8x32xbf16, #tpu.memory_space<vmem>>) attributes {dimension_semantics = [#tpu.dimension_semantics<parallel>], iteration_bounds = array<i64: 2>, scalar_prefetch = 1 : i64, scratch_operands = 1 : i64, tpu.core_type = #tpu.core_type<tc>, window_params = [{transform_indices = @transform_0, window_bounds = array<i64: 8, 32>}, {transform_indices = @transform_1, window_bounds = array<i64: 8, 32>}, {pipeline_mode = #tpu.pipeline_mode<synchronous>, transform_indices = @transform_2, window_bounds = array<i64: 32, 96>}, {pipeline_mode = #tpu.pipeline_mode<synchronous>, transform_indices = @transform_3, window_bounds = array<i64: 32, 32>}, {pipeline_mode = #tpu.pipeline_mode<synchronous>, transform_indices = @transform_4, window_bounds = array<i64: 32, 32>}, {pipeline_mode = #tpu.pipeline_mode<synchronous>, transform_indices = @transform_5, window_bounds = array<i64: 32, 64>}, {pipeline_mode = #tpu.pipeline_mode<synchronous>, transform_indices = @transform_6, window_bounds = array<i64: 32, 32>}, {pipeline_mode = #tpu.pipeline_mode<synchronous>, transform_indices = @transform_7, window_bounds = array<i64: 32, 64>}, {pipeline_mode = #tpu.pipeline_mode<synchronous>, transform_indices = @transform_8, window_bounds = array<i64: 1, 64>}, {pipeline_mode = #tpu.pipeline_mode<synchronous>, transform_indices = @transform_9, window_bounds = array<i64: 64, 32>}, {pipeline_mode = #tpu.pipeline_mode<synchronous>, transform_indices = @transform_10, window_bounds = array<i64: 1, 32>}, {pipeline_mode = #tpu.pipeline_mode<synchronous>, transform_indices = @transform_11, window_bounds = array<i64: 1, 32>}, {pipeline_mode = #tpu.pipeline_mode<synchronous>, transform_indices = @transform_12, window_bounds = array<i64: 1, 32>}, {pipeline_mode = #tpu.pipeline_mode<synchronous>, transform_indices = @transform_13, window_bounds = array<i64: 1, 32>}, {pipeline_mode = #tpu.pipeline_mode<synchronous>, transform_indices = @transform_14, window_bounds = array<i64: 1, 32>}, {pipeline_mode = #tpu.pipeline_mode<synchronous>, transform_indices = @transform_15, window_bounds = array<i64: 1, 32>}, {pipeline_mode = #tpu.pipeline_mode<synchronous>, transform_indices = @transform_16, window_bounds = array<i64: 1, 32>}, {transform_indices = @transform_17, window_bounds = array<i64: 8, 32>}]} {
    %c0 = arith.constant 0 : index
    %c0_0 = arith.constant 0 : index
    %0 = vector.load %arg2[%c0, %c0_0] : memref<8x32xf32, #tpu.memory_space<vmem>>, vector<8x32xf32>
    %1 = arith.truncf %0 : vector<8x32xf32> to vector<8x32xbf16>
    %c0_1 = arith.constant 0 : index
    %c0_2 = arith.constant 0 : index
    %2 = vector.load %arg4[%c0_1, %c0_2] : memref<32x96xbf16, #tpu.memory_space<vmem>>, vector<32x96xbf16>
    %cst = arith.constant dense<0.000000e+00> : vector<8x96xf32>
    %3 = tpu.matmul %1, %2, %cst {dimension_numbers = #tpu.dot_dimension_numbers<[1], [0], [0], [1], [0, 0, 1, 1], [], []>} : vector<8x32xbf16>, vector<32x96xbf16>, vector<8x96xf32> -> vector<8x96xf32>
    %4 = vector.extract_strided_slice %3 {offsets = [0, 0], sizes = [8, 32], strides = [1, 1]} : vector<8x96xf32> to vector<8x32xf32>
    %cst_3 = arith.constant 0.353553385 : f32
    %5 = vector.broadcast %cst_3 : f32 to vector<8x32xf32>
    %6 = arith.mulf %4, %5 : vector<8x32xf32>
    %7 = arith.truncf %6 : vector<8x32xf32> to vector<8x32xbf16>
    %8 = vector.shape_cast %7 : vector<8x32xbf16> to vector<1x8x32xbf16>
    %9 = vector.extract_strided_slice %3 {offsets = [0, 32], sizes = [8, 32], strides = [1, 1]} : vector<8x96xf32> to vector<8x32xf32>
    %10 = arith.truncf %9 : vector<8x32xf32> to vector<8x32xbf16>
    %11 = vector.shape_cast %10 : vector<8x32xbf16> to vector<1x8x32xbf16>
    %12 = vector.extract_strided_slice %3 {offsets = [0, 64], sizes = [8, 32], strides = [1, 1]} : vector<8x96xf32> to vector<8x32xf32>
    %13 = arith.truncf %12 : vector<8x32xf32> to vector<8x32xbf16>
    %14 = vector.shape_cast %13 : vector<8x32xbf16> to vector<1x8x32xbf16>
    %15 = tpu.iota {dimensions = array<i32: 1>} : vector<1x8x8xi32>
    %16 = tpu.iota {dimensions = array<i32: 2>} : vector<1x8x8xi32>
    %17 = arith.cmpi sle, %16, %15 : vector<1x8x8xi32>
    %18 = vector.extract_strided_slice %8 {offsets = [0, 0, 0], sizes = [1, 8, 8], strides = [1, 1, 1]} : vector<1x8x32xbf16> to vector<1x8x8xbf16>
    %19 = vector.extract_strided_slice %11 {offsets = [0, 0, 0], sizes = [1, 8, 8], strides = [1, 1, 1]} : vector<1x8x32xbf16> to vector<1x8x8xbf16>
    "tpu.trace_start"() <{level = 10 : i32, message = "bqd,bkd->bqk"}> : () -> ()
    %cst_4 = arith.constant dense<0.000000e+00> : vector<1x8x8xf32>
    %20 = tpu.matmul %18, %19, %cst_4 {dimension_numbers = #tpu.dot_dimension_numbers<[2], [2], [1], [1], [0, 0, 0, 1, 1, 1], [0], [0]>} : vector<1x8x8xbf16>, vector<1x8x8xbf16>, vector<1x8x8xf32> -> vector<1x8x8xf32>
    %cst_5 = arith.constant -1.000000e+06 : f32
    "tpu.trace_stop"() : () -> ()
    %21 = vector.broadcast %cst_5 : f32 to vector<1x8x8xf32>
    %22 = arith.select %17, %20, %21 : vector<1x8x8xi1>, vector<1x8x8xf32>
    %cst_6 = arith.constant dense<0xFF800000> : vector<1x8xf32>
    %23 = vector.multi_reduction <maximumf>, %22, %cst_6 [2] : vector<1x8x8xf32> to vector<1x8xf32>
    %24 = vector.shape_cast %23 : vector<1x8xf32> to vector<1x8x1xf32>
    %25 = vector.broadcast %24 : vector<1x8x1xf32> to vector<1x8x8xf32>
    %26 = arith.subf %22, %25 : vector<1x8x8xf32>
    %27 = math.exp %26 : vector<1x8x8xf32>
    %cst_7 = arith.constant dense<0.000000e+00> : vector<1x8xf32>
    %28 = vector.multi_reduction <add>, %27, %cst_7 [2] : vector<1x8x8xf32> to vector<1x8xf32>
    %29 = vector.shape_cast %28 : vector<1x8xf32> to vector<1x8x1xf32>
    %30 = tpu.reciprocal %29 {approx = true} : vector<1x8x1xf32> -> vector<1x8x1xf32>
    %31 = vector.broadcast %30 : vector<1x8x1xf32> to vector<1x8x8xf32>
    %32 = arith.mulf %27, %31 : vector<1x8x8xf32>
    %33 = arith.truncf %32 : vector<1x8x8xf32> to vector<1x8x8xbf16>
    %34 = vector.extract_strided_slice %14 {offsets = [0, 0, 0], sizes = [1, 8, 8], strides = [1, 1, 1]} : vector<1x8x32xbf16> to vector<1x8x8xbf16>
    "tpu.trace_start"() <{level = 10 : i32, message = "bqk,bkd->bqd"}> : () -> ()
    %cst_8 = arith.constant dense<0.000000e+00> : vector<1x8x8xf32>
    %35 = tpu.matmul %33, %34, %cst_8 {dimension_numbers = #tpu.dot_dimension_numbers<[2], [1], [1], [2], [0, 0, 0, 1, 1, 2], [0], [0]>} : vector<1x8x8xbf16>, vector<1x8x8xbf16>, vector<1x8x8xf32> -> vector<1x8x8xf32>
    "tpu.trace_stop"() : () -> ()
    %36 = vector.shape_cast %35 : vector<1x8x8xf32> to vector<8x8xf32>
    %37 = arith.truncf %36 : vector<8x8xf32> to vector<8x8xbf16>
    %c0_9 = arith.constant 0 : index
    %c0_10 = arith.constant 0 : index
    %38 = vector.load %arg20[%c0_9, %c0_10] : memref<8x32xbf16, #tpu.memory_space<vmem>>, vector<8x8xbf16>
    tpu.vector_store %arg20[%c0_9, %c0_10], %37 {strides = array<i32>} : memref<8x32xbf16, #tpu.memory_space<vmem>>, vector<8x8xbf16>,
    %39 = vector.extract_strided_slice %8 {offsets = [0, 0, 8], sizes = [1, 8, 8], strides = [1, 1, 1]} : vector<1x8x32xbf16> to vector<1x8x8xbf16>
    %40 = vector.extract_strided_slice %11 {offsets = [0, 0, 8], sizes = [1, 8, 8], strides = [1, 1, 1]} : vector<1x8x32xbf16> to vector<1x8x8xbf16>
    "tpu.trace_start"() <{level = 10 : i32, message = "bqd,bkd->bqk"}> : () -> ()
    %cst_11 = arith.constant dense<0.000000e+00> : vector<1x8x8xf32>
    %41 = tpu.matmul %39, %40, %cst_11 {dimension_numbers = #tpu.dot_dimension_numbers<[2], [2], [1], [1], [0, 0, 0, 1, 1, 1], [0], [0]>} : vector<1x8x8xbf16>, vector<1x8x8xbf16>, vector<1x8x8xf32> -> vector<1x8x8xf32>
    %cst_12 = arith.constant -1.000000e+06 : f32
    "tpu.trace_stop"() : () -> ()
    %42 = vector.broadcast %cst_12 : f32 to vector<1x8x8xf32>
    %43 = arith.select %17, %41, %42 : vector<1x8x8xi1>, vector<1x8x8xf32>
    %cst_13 = arith.constant dense<0xFF800000> : vector<1x8xf32>
    %44 = vector.multi_reduction <maximumf>, %43, %cst_13 [2] : vector<1x8x8xf32> to vector<1x8xf32>
    %45 = vector.shape_cast %44 : vector<1x8xf32> to vector<1x8x1xf32>
    %46 = vector.broadcast %45 : vector<1x8x1xf32> to vector<1x8x8xf32>
    %47 = arith.subf %43, %46 : vector<1x8x8xf32>
    %48 = math.exp %47 : vector<1x8x8xf32>
    %cst_14 = arith.constant dense<0.000000e+00> : vector<1x8xf32>
    %49 = vector.multi_reduction <add>, %48, %cst_14 [2] : vector<1x8x8xf32> to vector<1x8xf32>
    %50 = vector.shape_cast %49 : vector<1x8xf32> to vector<1x8x1xf32>
    %51 = tpu.reciprocal %50 {approx = true} : vector<1x8x1xf32> -> vector<1x8x1xf32>
    %52 = vector.broadcast %51 : vector<1x8x1xf32> to vector<1x8x8xf32>
    %53 = arith.mulf %48, %52 : vector<1x8x8xf32>
    %54 = arith.truncf %53 : vector<1x8x8xf32> to vector<1x8x8xbf16>
    %55 = vector.extract_strided_slice %14 {offsets = [0, 0, 8], sizes = [1, 8, 8], strides = [1, 1, 1]} : vector<1x8x32xbf16> to vector<1x8x8xbf16>
    "tpu.trace_start"() <{level = 10 : i32, message = "bqk,bkd->bqd"}> : () -> ()
    %cst_15 = arith.constant dense<0.000000e+00> : vector<1x8x8xf32>
    %56 = tpu.matmul %54, %55, %cst_15 {dimension_numbers = #tpu.dot_dimension_numbers<[2], [1], [1], [2], [0, 0, 0, 1, 1, 2], [0], [0]>} : vector<1x8x8xbf16>, vector<1x8x8xbf16>, vector<1x8x8xf32> -> vector<1x8x8xf32>
    "tpu.trace_stop"() : () -> ()
    %57 = vector.shape_cast %56 : vector<1x8x8xf32> to vector<8x8xf32>
    %58 = arith.truncf %57 : vector<8x8xf32> to vector<8x8xbf16>
    %c0_16 = arith.constant 0 : index
    %c8 = arith.constant 8 : index
    %59 = vector.load %arg20[%c0_16, %c8] : memref<8x32xbf16, #tpu.memory_space<vmem>>, vector<8x8xbf16>
    tpu.vector_store %arg20[%c0_16, %c8], %58 {strides = array<i32>} : memref<8x32xbf16, #tpu.memory_space<vmem>>, vector<8x8xbf16>,
    %60 = vector.extract_strided_slice %8 {offsets = [0, 0, 16], sizes = [1, 8, 8], strides = [1, 1, 1]} : vector<1x8x32xbf16> to vector<1x8x8xbf16>
    %61 = vector.extract_strided_slice %11 {offsets = [0, 0, 16], sizes = [1, 8, 8], strides = [1, 1, 1]} : vector<1x8x32xbf16> to vector<1x8x8xbf16>
    "tpu.trace_start"() <{level = 10 : i32, message = "bqd,bkd->bqk"}> : () -> ()
    %cst_17 = arith.constant dense<0.000000e+00> : vector<1x8x8xf32>
    %62 = tpu.matmul %60, %61, %cst_17 {dimension_numbers = #tpu.dot_dimension_numbers<[2], [2], [1], [1], [0, 0, 0, 1, 1, 1], [0], [0]>} : vector<1x8x8xbf16>, vector<1x8x8xbf16>, vector<1x8x8xf32> -> vector<1x8x8xf32>
    %cst_18 = arith.constant -1.000000e+06 : f32
    "tpu.trace_stop"() : () -> ()
    %63 = vector.broadcast %cst_18 : f32 to vector<1x8x8xf32>
    %64 = arith.select %17, %62, %63 : vector<1x8x8xi1>, vector<1x8x8xf32>
    %cst_19 = arith.constant dense<0xFF800000> : vector<1x8xf32>
    %65 = vector.multi_reduction <maximumf>, %64, %cst_19 [2] : vector<1x8x8xf32> to vector<1x8xf32>
    %66 = vector.shape_cast %65 : vector<1x8xf32> to vector<1x8x1xf32>
    %67 = vector.broadcast %66 : vector<1x8x1xf32> to vector<1x8x8xf32>
    %68 = arith.subf %64, %67 : vector<1x8x8xf32>
    %69 = math.exp %68 : vector<1x8x8xf32>
    %cst_20 = arith.constant dense<0.000000e+00> : vector<1x8xf32>
    %70 = vector.multi_reduction <add>, %69, %cst_20 [2] : vector<1x8x8xf32> to vector<1x8xf32>
    %71 = vector.shape_cast %70 : vector<1x8xf32> to vector<1x8x1xf32>
    %72 = tpu.reciprocal %71 {approx = true} : vector<1x8x1xf32> -> vector<1x8x1xf32>
    %73 = vector.broadcast %72 : vector<1x8x1xf32> to vector<1x8x8xf32>
    %74 = arith.mulf %69, %73 : vector<1x8x8xf32>
    %75 = arith.truncf %74 : vector<1x8x8xf32> to vector<1x8x8xbf16>
    %76 = vector.extract_strided_slice %14 {offsets = [0, 0, 16], sizes = [1, 8, 8], strides = [1, 1, 1]} : vector<1x8x32xbf16> to vector<1x8x8xbf16>
    "tpu.trace_start"() <{level = 10 : i32, message = "bqk,bkd->bqd"}> : () -> ()
    %cst_21 = arith.constant dense<0.000000e+00> : vector<1x8x8xf32>
    %77 = tpu.matmul %75, %76, %cst_21 {dimension_numbers = #tpu.dot_dimension_numbers<[2], [1], [1], [2], [0, 0, 0, 1, 1, 2], [0], [0]>} : vector<1x8x8xbf16>, vector<1x8x8xbf16>, vector<1x8x8xf32> -> vector<1x8x8xf32>
    "tpu.trace_stop"() : () -> ()
    %78 = vector.shape_cast %77 : vector<1x8x8xf32> to vector<8x8xf32>
    %79 = arith.truncf %78 : vector<8x8xf32> to vector<8x8xbf16>
    %c0_22 = arith.constant 0 : index
    %c16 = arith.constant 16 : index
    %80 = vector.load %arg20[%c0_22, %c16] : memref<8x32xbf16, #tpu.memory_space<vmem>>, vector<8x8xbf16>
    tpu.vector_store %arg20[%c0_22, %c16], %79 {strides = array<i32>} : memref<8x32xbf16, #tpu.memory_space<vmem>>, vector<8x8xbf16>,
    %81 = vector.extract_strided_slice %8 {offsets = [0, 0, 24], sizes = [1, 8, 8], strides = [1, 1, 1]} : vector<1x8x32xbf16> to vector<1x8x8xbf16>
    %82 = vector.extract_strided_slice %11 {offsets = [0, 0, 24], sizes = [1, 8, 8], strides = [1, 1, 1]} : vector<1x8x32xbf16> to vector<1x8x8xbf16>
    "tpu.trace_start"() <{level = 10 : i32, message = "bqd,bkd->bqk"}> : () -> ()
    %cst_23 = arith.constant dense<0.000000e+00> : vector<1x8x8xf32>
    %83 = tpu.matmul %81, %82, %cst_23 {dimension_numbers = #tpu.dot_dimension_numbers<[2], [2], [1], [1], [0, 0, 0, 1, 1, 1], [0], [0]>} : vector<1x8x8xbf16>, vector<1x8x8xbf16>, vector<1x8x8xf32> -> vector<1x8x8xf32>
    %cst_24 = arith.constant -1.000000e+06 : f32
    "tpu.trace_stop"() : () -> ()
    %84 = vector.broadcast %cst_24 : f32 to vector<1x8x8xf32>
    %85 = arith.select %17, %83, %84 : vector<1x8x8xi1>, vector<1x8x8xf32>
    %cst_25 = arith.constant dense<0xFF800000> : vector<1x8xf32>
    %86 = vector.multi_reduction <maximumf>, %85, %cst_25 [2] : vector<1x8x8xf32> to vector<1x8xf32>
    %87 = vector.shape_cast %86 : vector<1x8xf32> to vector<1x8x1xf32>
    %88 = vector.broadcast %87 : vector<1x8x1xf32> to vector<1x8x8xf32>
    %89 = arith.subf %85, %88 : vector<1x8x8xf32>
    %90 = math.exp %89 : vector<1x8x8xf32>
    %cst_26 = arith.constant dense<0.000000e+00> : vector<1x8xf32>
    %91 = vector.multi_reduction <add>, %90, %cst_26 [2] : vector<1x8x8xf32> to vector<1x8xf32>
    %92 = vector.shape_cast %91 : vector<1x8xf32> to vector<1x8x1xf32>
    %93 = tpu.reciprocal %92 {approx = true} : vector<1x8x1xf32> -> vector<1x8x1xf32>
    %94 = vector.broadcast %93 : vector<1x8x1xf32> to vector<1x8x8xf32>
    %95 = arith.mulf %90, %94 : vector<1x8x8xf32>
    %96 = arith.truncf %95 : vector<1x8x8xf32> to vector<1x8x8xbf16>
    %97 = vector.extract_strided_slice %14 {offsets = [0, 0, 24], sizes = [1, 8, 8], strides = [1, 1, 1]} : vector<1x8x32xbf16> to vector<1x8x8xbf16>
    "tpu.trace_start"() <{level = 10 : i32, message = "bqk,bkd->bqd"}> : () -> ()
    %cst_27 = arith.constant dense<0.000000e+00> : vector<1x8x8xf32>
    %98 = tpu.matmul %96, %97, %cst_27 {dimension_numbers = #tpu.dot_dimension_numbers<[2], [1], [1], [2], [0, 0, 0, 1, 1, 2], [0], [0]>} : vector<1x8x8xbf16>, vector<1x8x8xbf16>, vector<1x8x8xf32> -> vector<1x8x8xf32>
    "tpu.trace_stop"() : () -> ()
    %99 = vector.shape_cast %98 : vector<1x8x8xf32> to vector<8x8xf32>
    %100 = arith.truncf %99 : vector<8x8xf32> to vector<8x8xbf16>
    %c0_28 = arith.constant 0 : index
    %c24 = arith.constant 24 : index
    %101 = vector.load %arg20[%c0_28, %c24] : memref<8x32xbf16, #tpu.memory_space<vmem>>, vector<8x8xbf16>
    tpu.vector_store %arg20[%c0_28, %c24], %100 {strides = array<i32>} : memref<8x32xbf16, #tpu.memory_space<vmem>>, vector<8x8xbf16>,
    %c0_29 = arith.constant 0 : index
    %c0_30 = arith.constant 0 : index
    %102 = vector.load %arg20[%c0_29, %c0_30] : memref<8x32xbf16, #tpu.memory_space<vmem>>, vector<8x32xbf16>
    %c0_31 = arith.constant 0 : index
    %c0_32 = arith.constant 0 : index
    %103 = vector.load %arg5[%c0_31, %c0_32] : memref<32x32xbf16, #tpu.memory_space<vmem>>, vector<32x32xbf16>
    %cst_33 = arith.constant dense<0.000000e+00> : vector<8x32xf32>
    %104 = tpu.matmul %102, %103, %cst_33 {dimension_numbers = #tpu.dot_dimension_numbers<[1], [0], [0], [1], [0, 0, 1, 1], [], []>} : vector<8x32xbf16>, vector<32x32xbf16>, vector<8x32xf32> -> vector<8x32xf32>
    %105 = arith.addf %104, %0 : vector<8x32xf32>
    %c0_34 = arith.constant 0 : index
    %c0_35 = arith.constant 0 : index
    %106 = vector.load %arg13[%c0_34, %c0_35] : memref<1x32xf32, #tpu.memory_space<vmem>>, vector<1x32xf32>
    %c0_36 = arith.constant 0 : index
    %c0_37 = arith.constant 0 : index
    %107 = vector.load %arg14[%c0_36, %c0_37] : memref<1x32xf32, #tpu.memory_space<vmem>>, vector<1x32xf32>
    %cst_38 = arith.constant dense<0.000000e+00> : vector<8xf32>
    %108 = vector.multi_reduction <add>, %105, %cst_38 [1] : vector<8x32xf32> to vector<8xf32>
    %109 = vector.shape_cast %108 : vector<8xf32> to vector<8x1xf32>
    %cst_39 = arith.constant 3.200000e+01 : f32
    %110 = vector.broadcast %cst_39 : f32 to vector<8x1xf32>
    %111 = arith.divf %109, %110 : vector<8x1xf32>
    %112 = vector.broadcast %111 : vector<8x1xf32> to vector<8x32xf32>
    %113 = arith.subf %105, %112 : vector<8x32xf32>
    %114 = arith.mulf %113, %113 : vector<8x32xf32>
    %cst_40 = arith.constant dense<0.000000e+00> : vector<8xf32>
    %115 = vector.multi_reduction <add>, %114, %cst_40 [1] : vector<8x32xf32> to vector<8xf32>
    %116 = vector.shape_cast %115 : vector<8xf32> to vector<8x1xf32>
    %cst_41 = arith.constant 3.200000e+01 : f32
    %117 = vector.broadcast %cst_41 : f32 to vector<8x1xf32>
    %118 = arith.divf %116, %117 : vector<8x1xf32>
    %cst_42 = arith.constant 9.99999974E-6 : f32
    %119 = vector.broadcast %cst_42 : f32 to vector<8x1xf32>
    %120 = arith.addf %118, %119 : vector<8x1xf32>
    %121 = math.rsqrt %120 : vector<8x1xf32>
    %122 = vector.broadcast %121 : vector<8x1xf32> to vector<8x32xf32>
    %123 = arith.mulf %113, %122 : vector<8x32xf32>
    %124 = vector.broadcast %106 : vector<1x32xf32> to vector<8x32xf32>
    %125 = arith.mulf %123, %124 : vector<8x32xf32>
    %126 = vector.broadcast %107 : vector<1x32xf32> to vector<8x32xf32>
    %127 = arith.addf %125, %126 : vector<8x32xf32>
    %128 = arith.truncf %127 : vector<8x32xf32> to vector<8x32xbf16>
    %c0_43 = arith.constant 0 : index
    %c0_44 = arith.constant 0 : index
    %129 = vector.load %arg6[%c0_43, %c0_44] : memref<32x32xbf16, #tpu.memory_space<vmem>>, vector<32x32xbf16>
    %cst_45 = arith.constant dense<0.000000e+00> : vector<8x32xf32>
    %130 = tpu.matmul %128, %129, %cst_45 {dimension_numbers = #tpu.dot_dimension_numbers<[1], [0], [0], [1], [0, 0, 1, 1], [], []>} : vector<8x32xbf16>, vector<32x32xbf16>, vector<8x32xf32> -> vector<8x32xf32>
    %cst_46 = arith.constant 0.353553385 : f32
    %131 = vector.broadcast %cst_46 : f32 to vector<8x32xf32>
    %132 = arith.mulf %130, %131 : vector<8x32xf32>
    %133 = arith.truncf %132 : vector<8x32xf32> to vector<8x32xbf16>
    %134 = vector.shape_cast %133 : vector<8x32xbf16> to vector<1x8x32xbf16>
    %c0_47 = arith.constant 0 : index
    %c0_48 = arith.constant 0 : index
    %135 = vector.load %arg3[%c0_47, %c0_48] : memref<8x32xbf16, #tpu.memory_space<vmem>>, vector<8x32xbf16>
    %c0_49 = arith.constant 0 : index
    %c0_50 = arith.constant 0 : index
    %136 = vector.load %arg7[%c0_49, %c0_50] : memref<32x64xbf16, #tpu.memory_space<vmem>>, vector<32x64xbf16>
    %cst_51 = arith.constant dense<0.000000e+00> : vector<8x64xf32>
    %137 = tpu.matmul %135, %136, %cst_51 {dimension_numbers = #tpu.dot_dimension_numbers<[1], [0], [0], [1], [0, 0, 1, 1], [], []>} : vector<8x32xbf16>, vector<32x64xbf16>, vector<8x64xf32> -> vector<8x64xf32>
    %138 = vector.extract_strided_slice %137 {offsets = [0, 0], sizes = [8, 32], strides = [1, 1]} : vector<8x64xf32> to vector<8x32xf32>
    %139 = arith.truncf %138 : vector<8x32xf32> to vector<8x32xbf16>
    %140 = vector.shape_cast %139 : vector<8x32xbf16> to vector<1x8x32xbf16>
    %141 = vector.extract_strided_slice %137 {offsets = [0, 32], sizes = [8, 32], strides = [1, 1]} : vector<8x64xf32> to vector<8x32xf32>
    %142 = arith.truncf %141 : vector<8x32xf32> to vector<8x32xbf16>
    %143 = vector.shape_cast %142 : vector<8x32xbf16> to vector<1x8x32xbf16>
    %144 = tpu.iota {dimensions = array<i32: 0>} : vector<1x1x1xi32>
    %c0_i32 = arith.constant 0 : i32
    %145 = vector.broadcast %c0_i32 : i32 to vector<1x1x1xi32>
    %c0_i32_52 = arith.constant 0 : i32
    %146 = vector.broadcast %c0_i32_52 : i32 to vector<1x1x1xi32>
    %147 = arith.cmpi eq, %144, %146 : vector<1x1x1xi32>
    %c1_i32 = arith.constant 1 : i32
    %148 = arith.muli %arg0, %c1_i32 : i32
    %c0_i32_53 = arith.constant 0 : i32
    %149 = arith.addi %148, %c0_i32_53 : i32
    %150 = arith.index_cast %149 : i32 to index
    %151 = memref.load %arg1[%150] : memref<2xi32, #tpu.memory_space<smem>>
    %152 = vector.broadcast %151 : i32 to vector<1x1x1xi32>
    %153 = arith.select %147, %152, %145 : vector<1x1x1xi1>, vector<1x1x1xi32>
    %154 = tpu.iota {dimensions = array<i32: 2>} : vector<1x1x8xi32>
    %155 = vector.broadcast %153 : vector<1x1x1xi32> to vector<1x1x8xi32>
    %156 = arith.cmpi slt, %154, %155 : vector<1x1x8xi32>
    %157 = vector.extract_strided_slice %134 {offsets = [0, 0, 0], sizes = [1, 8, 8], strides = [1, 1, 1]} : vector<1x8x32xbf16> to vector<1x8x8xbf16>
    %158 = vector.extract_strided_slice %140 {offsets = [0, 0, 0], sizes = [1, 8, 8], strides = [1, 1, 1]} : vector<1x8x32xbf16> to vector<1x8x8xbf16>
    "tpu.trace_start"() <{level = 10 : i32, message = "bqd,bkd->bqk"}> : () -> ()
    %cst_54 = arith.constant dense<0.000000e+00> : vector<1x8x8xf32>
    %159 = tpu.matmul %157, %158, %cst_54 {dimension_numbers = #tpu.dot_dimension_numbers<[2], [2], [1], [1], [0, 0, 0, 1, 1, 1], [0], [0]>} : vector<1x8x8xbf16>, vector<1x8x8xbf16>, vector<1x8x8xf32> -> vector<1x8x8xf32>
    %cst_55 = arith.constant -1.000000e+06 : f32
    "tpu.trace_stop"() : () -> ()
    %160 = vector.shape_cast %156 : vector<1x1x8xi1> to vector<1x1x8xi1>
    %161 = vector.broadcast %160 : vector<1x1x8xi1> to vector<1x8x8xi1>
    %162 = vector.broadcast %cst_55 : f32 to vector<1x8x8xf32>
    %163 = arith.select %161, %159, %162 : vector<1x8x8xi1>, vector<1x8x8xf32>
    %cst_56 = arith.constant dense<0xFF800000> : vector<1x8xf32>
    %164 = vector.multi_reduction <maximumf>, %163, %cst_56 [2] : vector<1x8x8xf32> to vector<1x8xf32>
    %165 = vector.shape_cast %164 : vector<1x8xf32> to vector<1x8x1xf32>
    %166 = vector.broadcast %165 : vector<1x8x1xf32> to vector<1x8x8xf32>
    %167 = arith.subf %163, %166 : vector<1x8x8xf32>
    %168 = math.exp %167 : vector<1x8x8xf32>
    %cst_57 = arith.constant dense<0.000000e+00> : vector<1x8xf32>
    %169 = vector.multi_reduction <add>, %168, %cst_57 [2] : vector<1x8x8xf32> to vector<1x8xf32>
    %170 = vector.shape_cast %169 : vector<1x8xf32> to vector<1x8x1xf32>
    %171 = tpu.reciprocal %170 {approx = true} : vector<1x8x1xf32> -> vector<1x8x1xf32>
    %172 = vector.broadcast %171 : vector<1x8x1xf32> to vector<1x8x8xf32>
    %173 = arith.mulf %168, %172 : vector<1x8x8xf32>
    %174 = arith.truncf %173 : vector<1x8x8xf32> to vector<1x8x8xbf16>
    %175 = vector.extract_strided_slice %143 {offsets = [0, 0, 0], sizes = [1, 8, 8], strides = [1, 1, 1]} : vector<1x8x32xbf16> to vector<1x8x8xbf16>
    "tpu.trace_start"() <{level = 10 : i32, message = "bqk,bkd->bqd"}> : () -> ()
    %cst_58 = arith.constant dense<0.000000e+00> : vector<1x8x8xf32>
    %176 = tpu.matmul %174, %175, %cst_58 {dimension_numbers = #tpu.dot_dimension_numbers<[2], [1], [1], [2], [0, 0, 0, 1, 1, 2], [0], [0]>} : vector<1x8x8xbf16>, vector<1x8x8xbf16>, vector<1x8x8xf32> -> vector<1x8x8xf32>
    "tpu.trace_stop"() : () -> ()
    %177 = vector.shape_cast %176 : vector<1x8x8xf32> to vector<8x8xf32>
    %178 = arith.truncf %177 : vector<8x8xf32> to vector<8x8xbf16>
    %c0_59 = arith.constant 0 : index
    %c0_60 = arith.constant 0 : index
    %179 = vector.load %arg20[%c0_59, %c0_60] : memref<8x32xbf16, #tpu.memory_space<vmem>>, vector<8x8xbf16>
    tpu.vector_store %arg20[%c0_59, %c0_60], %178 {strides = array<i32>} : memref<8x32xbf16, #tpu.memory_space<vmem>>, vector<8x8xbf16>,
    %180 = vector.extract_strided_slice %134 {offsets = [0, 0, 8], sizes = [1, 8, 8], strides = [1, 1, 1]} : vector<1x8x32xbf16> to vector<1x8x8xbf16>
    %181 = vector.extract_strided_slice %140 {offsets = [0, 0, 8], sizes = [1, 8, 8], strides = [1, 1, 1]} : vector<1x8x32xbf16> to vector<1x8x8xbf16>
    "tpu.trace_start"() <{level = 10 : i32, message = "bqd,bkd->bqk"}> : () -> ()
    %cst_61 = arith.constant dense<0.000000e+00> : vector<1x8x8xf32>
    %182 = tpu.matmul %180, %181, %cst_61 {dimension_numbers = #tpu.dot_dimension_numbers<[2], [2], [1], [1], [0, 0, 0, 1, 1, 1], [0], [0]>} : vector<1x8x8xbf16>, vector<1x8x8xbf16>, vector<1x8x8xf32> -> vector<1x8x8xf32>
    %cst_62 = arith.constant -1.000000e+06 : f32
    "tpu.trace_stop"() : () -> ()
    %183 = vector.shape_cast %156 : vector<1x1x8xi1> to vector<1x1x8xi1>
    %184 = vector.broadcast %183 : vector<1x1x8xi1> to vector<1x8x8xi1>
    %185 = vector.broadcast %cst_62 : f32 to vector<1x8x8xf32>
    %186 = arith.select %184, %182, %185 : vector<1x8x8xi1>, vector<1x8x8xf32>
    %cst_63 = arith.constant dense<0xFF800000> : vector<1x8xf32>
    %187 = vector.multi_reduction <maximumf>, %186, %cst_63 [2] : vector<1x8x8xf32> to vector<1x8xf32>
    %188 = vector.shape_cast %187 : vector<1x8xf32> to vector<1x8x1xf32>
    %189 = vector.broadcast %188 : vector<1x8x1xf32> to vector<1x8x8xf32>
    %190 = arith.subf %186, %189 : vector<1x8x8xf32>
    %191 = math.exp %190 : vector<1x8x8xf32>
    %cst_64 = arith.constant dense<0.000000e+00> : vector<1x8xf32>
    %192 = vector.multi_reduction <add>, %191, %cst_64 [2] : vector<1x8x8xf32> to vector<1x8xf32>
    %193 = vector.shape_cast %192 : vector<1x8xf32> to vector<1x8x1xf32>
    %194 = tpu.reciprocal %193 {approx = true} : vector<1x8x1xf32> -> vector<1x8x1xf32>
    %195 = vector.broadcast %194 : vector<1x8x1xf32> to vector<1x8x8xf32>
    %196 = arith.mulf %191, %195 : vector<1x8x8xf32>
    %197 = arith.truncf %196 : vector<1x8x8xf32> to vector<1x8x8xbf16>
    %198 = vector.extract_strided_slice %143 {offsets = [0, 0, 8], sizes = [1, 8, 8], strides = [1, 1, 1]} : vector<1x8x32xbf16> to vector<1x8x8xbf16>
    "tpu.trace_start"() <{level = 10 : i32, message = "bqk,bkd->bqd"}> : () -> ()
    %cst_65 = arith.constant dense<0.000000e+00> : vector<1x8x8xf32>
    %199 = tpu.matmul %197, %198, %cst_65 {dimension_numbers = #tpu.dot_dimension_numbers<[2], [1], [1], [2], [0, 0, 0, 1, 1, 2], [0], [0]>} : vector<1x8x8xbf16>, vector<1x8x8xbf16>, vector<1x8x8xf32> -> vector<1x8x8xf32>
    "tpu.trace_stop"() : () -> ()
    %200 = vector.shape_cast %199 : vector<1x8x8xf32> to vector<8x8xf32>
    %201 = arith.truncf %200 : vector<8x8xf32> to vector<8x8xbf16>
    %c0_66 = arith.constant 0 : index
    %c8_67 = arith.constant 8 : index
    %202 = vector.load %arg20[%c0_66, %c8_67] : memref<8x32xbf16, #tpu.memory_space<vmem>>, vector<8x8xbf16>
    tpu.vector_store %arg20[%c0_66, %c8_67], %201 {strides = array<i32>} : memref<8x32xbf16, #tpu.memory_space<vmem>>, vector<8x8xbf16>,
    %203 = vector.extract_strided_slice %134 {offsets = [0, 0, 16], sizes = [1, 8, 8], strides = [1, 1, 1]} : vector<1x8x32xbf16> to vector<1x8x8xbf16>
    %204 = vector.extract_strided_slice %140 {offsets = [0, 0, 16], sizes = [1, 8, 8], strides = [1, 1, 1]} : vector<1x8x32xbf16> to vector<1x8x8xbf16>
    "tpu.trace_start"() <{level = 10 : i32, message = "bqd,bkd->bqk"}> : () -> ()
    %cst_68 = arith.constant dense<0.000000e+00> : vector<1x8x8xf32>
    %205 = tpu.matmul %203, %204, %cst_68 {dimension_numbers = #tpu.dot_dimension_numbers<[2], [2], [1], [1], [0, 0, 0, 1, 1, 1], [0], [0]>} : vector<1x8x8xbf16>, vector<1x8x8xbf16>, vector<1x8x8xf32> -> vector<1x8x8xf32>
    %cst_69 = arith.constant -1.000000e+06 : f32
    "tpu.trace_stop"() : () -> ()
    %206 = vector.shape_cast %156 : vector<1x1x8xi1> to vector<1x1x8xi1>
    %207 = vector.broadcast %206 : vector<1x1x8xi1> to vector<1x8x8xi1>
    %208 = vector.broadcast %cst_69 : f32 to vector<1x8x8xf32>
    %209 = arith.select %207, %205, %208 : vector<1x8x8xi1>, vector<1x8x8xf32>
    %cst_70 = arith.constant dense<0xFF800000> : vector<1x8xf32>
    %210 = vector.multi_reduction <maximumf>, %209, %cst_70 [2] : vector<1x8x8xf32> to vector<1x8xf32>
    %211 = vector.shape_cast %210 : vector<1x8xf32> to vector<1x8x1xf32>
    %212 = vector.broadcast %211 : vector<1x8x1xf32> to vector<1x8x8xf32>
    %213 = arith.subf %209, %212 : vector<1x8x8xf32>
    %214 = math.exp %213 : vector<1x8x8xf32>
    %cst_71 = arith.constant dense<0.000000e+00> : vector<1x8xf32>
    %215 = vector.multi_reduction <add>, %214, %cst_71 [2] : vector<1x8x8xf32> to vector<1x8xf32>
    %216 = vector.shape_cast %215 : vector<1x8xf32> to vector<1x8x1xf32>
    %217 = tpu.reciprocal %216 {approx = true} : vector<1x8x1xf32> -> vector<1x8x1xf32>
    %218 = vector.broadcast %217 : vector<1x8x1xf32> to vector<1x8x8xf32>
    %219 = arith.mulf %214, %218 : vector<1x8x8xf32>
    %220 = arith.truncf %219 : vector<1x8x8xf32> to vector<1x8x8xbf16>
    %221 = vector.extract_strided_slice %143 {offsets = [0, 0, 16], sizes = [1, 8, 8], strides = [1, 1, 1]} : vector<1x8x32xbf16> to vector<1x8x8xbf16>
    "tpu.trace_start"() <{level = 10 : i32, message = "bqk,bkd->bqd"}> : () -> ()
    %cst_72 = arith.constant dense<0.000000e+00> : vector<1x8x8xf32>
    %222 = tpu.matmul %220, %221, %cst_72 {dimension_numbers = #tpu.dot_dimension_numbers<[2], [1], [1], [2], [0, 0, 0, 1, 1, 2], [0], [0]>} : vector<1x8x8xbf16>, vector<1x8x8xbf16>, vector<1x8x8xf32> -> vector<1x8x8xf32>
    "tpu.trace_stop"() : () -> ()
    %223 = vector.shape_cast %222 : vector<1x8x8xf32> to vector<8x8xf32>
    %224 = arith.truncf %223 : vector<8x8xf32> to vector<8x8xbf16>
    %c0_73 = arith.constant 0 : index
    %c16_74 = arith.constant 16 : index
    %225 = vector.load %arg20[%c0_73, %c16_74] : memref<8x32xbf16, #tpu.memory_space<vmem>>, vector<8x8xbf16>
    tpu.vector_store %arg20[%c0_73, %c16_74], %224 {strides = array<i32>} : memref<8x32xbf16, #tpu.memory_space<vmem>>, vector<8x8xbf16>,
    %226 = vector.extract_strided_slice %134 {offsets = [0, 0, 24], sizes = [1, 8, 8], strides = [1, 1, 1]} : vector<1x8x32xbf16> to vector<1x8x8xbf16>
    %227 = vector.extract_strided_slice %140 {offsets = [0, 0, 24], sizes = [1, 8, 8], strides = [1, 1, 1]} : vector<1x8x32xbf16> to vector<1x8x8xbf16>
    "tpu.trace_start"() <{level = 10 : i32, message = "bqd,bkd->bqk"}> : () -> ()
    %cst_75 = arith.constant dense<0.000000e+00> : vector<1x8x8xf32>
    %228 = tpu.matmul %226, %227, %cst_75 {dimension_numbers = #tpu.dot_dimension_numbers<[2], [2], [1], [1], [0, 0, 0, 1, 1, 1], [0], [0]>} : vector<1x8x8xbf16>, vector<1x8x8xbf16>, vector<1x8x8xf32> -> vector<1x8x8xf32>
    %cst_76 = arith.constant -1.000000e+06 : f32
    "tpu.trace_stop"() : () -> ()
    %229 = vector.shape_cast %156 : vector<1x1x8xi1> to vector<1x1x8xi1>
    %230 = vector.broadcast %229 : vector<1x1x8xi1> to vector<1x8x8xi1>
    %231 = vector.broadcast %cst_76 : f32 to vector<1x8x8xf32>
    %232 = arith.select %230, %228, %231 : vector<1x8x8xi1>, vector<1x8x8xf32>
    %cst_77 = arith.constant dense<0xFF800000> : vector<1x8xf32>
    %233 = vector.multi_reduction <maximumf>, %232, %cst_77 [2] : vector<1x8x8xf32> to vector<1x8xf32>
    %234 = vector.shape_cast %233 : vector<1x8xf32> to vector<1x8x1xf32>
    %235 = vector.broadcast %234 : vector<1x8x1xf32> to vector<1x8x8xf32>
    %236 = arith.subf %232, %235 : vector<1x8x8xf32>
    %237 = math.exp %236 : vector<1x8x8xf32>
    %cst_78 = arith.constant dense<0.000000e+00> : vector<1x8xf32>
    %238 = vector.multi_reduction <add>, %237, %cst_78 [2] : vector<1x8x8xf32> to vector<1x8xf32>
    %239 = vector.shape_cast %238 : vector<1x8xf32> to vector<1x8x1xf32>
    %240 = tpu.reciprocal %239 {approx = true} : vector<1x8x1xf32> -> vector<1x8x1xf32>
    %241 = vector.broadcast %240 : vector<1x8x1xf32> to vector<1x8x8xf32>
    %242 = arith.mulf %237, %241 : vector<1x8x8xf32>
    %243 = arith.truncf %242 : vector<1x8x8xf32> to vector<1x8x8xbf16>
    %244 = vector.extract_strided_slice %143 {offsets = [0, 0, 24], sizes = [1, 8, 8], strides = [1, 1, 1]} : vector<1x8x32xbf16> to vector<1x8x8xbf16>
    "tpu.trace_start"() <{level = 10 : i32, message = "bqk,bkd->bqd"}> : () -> ()
    %cst_79 = arith.constant dense<0.000000e+00> : vector<1x8x8xf32>
    %245 = tpu.matmul %243, %244, %cst_79 {dimension_numbers = #tpu.dot_dimension_numbers<[2], [1], [1], [2], [0, 0, 0, 1, 1, 2], [0], [0]>} : vector<1x8x8xbf16>, vector<1x8x8xbf16>, vector<1x8x8xf32> -> vector<1x8x8xf32>
    "tpu.trace_stop"() : () -> ()
    %246 = vector.shape_cast %245 : vector<1x8x8xf32> to vector<8x8xf32>
    %247 = arith.truncf %246 : vector<8x8xf32> to vector<8x8xbf16>
    %c0_80 = arith.constant 0 : index
    %c24_81 = arith.constant 24 : index
    %248 = vector.load %arg20[%c0_80, %c24_81] : memref<8x32xbf16, #tpu.memory_space<vmem>>, vector<8x8xbf16>
    tpu.vector_store %arg20[%c0_80, %c24_81], %247 {strides = array<i32>} : memref<8x32xbf16, #tpu.memory_space<vmem>>, vector<8x8xbf16>,
    %c0_82 = arith.constant 0 : index
    %c0_83 = arith.constant 0 : index
    %249 = vector.load %arg20[%c0_82, %c0_83] : memref<8x32xbf16, #tpu.memory_space<vmem>>, vector<8x32xbf16>
    %c0_84 = arith.constant 0 : index
    %c0_85 = arith.constant 0 : index
    %250 = vector.load %arg8[%c0_84, %c0_85] : memref<32x32xbf16, #tpu.memory_space<vmem>>, vector<32x32xbf16>
    %cst_86 = arith.constant dense<0.000000e+00> : vector<8x32xf32>
    %251 = tpu.matmul %249, %250, %cst_86 {dimension_numbers = #tpu.dot_dimension_numbers<[1], [0], [0], [1], [0, 0, 1, 1], [], []>} : vector<8x32xbf16>, vector<32x32xbf16>, vector<8x32xf32> -> vector<8x32xf32>
    %252 = arith.addf %251, %127 : vector<8x32xf32>
    %c0_87 = arith.constant 0 : index
    %c0_88 = arith.constant 0 : index
    %253 = vector.load %arg15[%c0_87, %c0_88] : memref<1x32xf32, #tpu.memory_space<vmem>>, vector<1x32xf32>
    %c0_89 = arith.constant 0 : index
    %c0_90 = arith.constant 0 : index
    %254 = vector.load %arg16[%c0_89, %c0_90] : memref<1x32xf32, #tpu.memory_space<vmem>>, vector<1x32xf32>
    %cst_91 = arith.constant dense<0.000000e+00> : vector<8xf32>
    %255 = vector.multi_reduction <add>, %252, %cst_91 [1] : vector<8x32xf32> to vector<8xf32>
    %256 = vector.shape_cast %255 : vector<8xf32> to vector<8x1xf32>
    %cst_92 = arith.constant 3.200000e+01 : f32
    %257 = vector.broadcast %cst_92 : f32 to vector<8x1xf32>
    %258 = arith.divf %256, %257 : vector<8x1xf32>
    %259 = vector.broadcast %258 : vector<8x1xf32> to vector<8x32xf32>
    %260 = arith.subf %252, %259 : vector<8x32xf32>
    %261 = arith.mulf %260, %260 : vector<8x32xf32>
    %cst_93 = arith.constant dense<0.000000e+00> : vector<8xf32>
    %262 = vector.multi_reduction <add>, %261, %cst_93 [1] : vector<8x32xf32> to vector<8xf32>
    %263 = vector.shape_cast %262 : vector<8xf32> to vector<8x1xf32>
    %cst_94 = arith.constant 3.200000e+01 : f32
    %264 = vector.broadcast %cst_94 : f32 to vector<8x1xf32>
    %265 = arith.divf %263, %264 : vector<8x1xf32>
    %cst_95 = arith.constant 9.99999974E-6 : f32
    %266 = vector.broadcast %cst_95 : f32 to vector<8x1xf32>
    %267 = arith.addf %265, %266 : vector<8x1xf32>
    %268 = math.rsqrt %267 : vector<8x1xf32>
    %269 = vector.broadcast %268 : vector<8x1xf32> to vector<8x32xf32>
    %270 = arith.mulf %260, %269 : vector<8x32xf32>
    %271 = vector.broadcast %253 : vector<1x32xf32> to vector<8x32xf32>
    %272 = arith.mulf %270, %271 : vector<8x32xf32>
    %273 = vector.broadcast %254 : vector<1x32xf32> to vector<8x32xf32>
    %274 = arith.addf %272, %273 : vector<8x32xf32>
    %275 = arith.truncf %274 : vector<8x32xf32> to vector<8x32xbf16>
    %c0_96 = arith.constant 0 : index
    %c0_97 = arith.constant 0 : index
    %276 = vector.load %arg9[%c0_96, %c0_97] : memref<32x64xbf16, #tpu.memory_space<vmem>>, vector<32x64xbf16>
    %cst_98 = arith.constant dense<0.000000e+00> : vector<8x64xf32>
    %277 = tpu.matmul %275, %276, %cst_98 {dimension_numbers = #tpu.dot_dimension_numbers<[1], [0], [0], [1], [0, 0, 1, 1], [], []>} : vector<8x32xbf16>, vector<32x64xbf16>, vector<8x64xf32> -> vector<8x64xf32>
    %c0_99 = arith.constant 0 : index
    %c0_100 = arith.constant 0 : index
    %278 = vector.load %arg10[%c0_99, %c0_100] : memref<1x64xf32, #tpu.memory_space<vmem>>, vector<1x64xf32>
    %279 = vector.broadcast %278 : vector<1x64xf32> to vector<8x64xf32>
    %280 = arith.addf %277, %279 : vector<8x64xf32>
    %cst_101 = arith.constant 0.000000e+00 : f32
    %281 = vector.broadcast %cst_101 : f32 to vector<8x64xf32>
    %282 = arith.maximumf %280, %281 : vector<8x64xf32>
    %283 = arith.truncf %282 : vector<8x64xf32> to vector<8x64xbf16>
    %c0_102 = arith.constant 0 : index
    %c0_103 = arith.constant 0 : index
    %284 = vector.load %arg11[%c0_102, %c0_103] : memref<64x32xbf16, #tpu.memory_space<vmem>>, vector<64x32xbf16>
    %cst_104 = arith.constant dense<0.000000e+00> : vector<8x32xf32>
    %285 = tpu.matmul %283, %284, %cst_104 {dimension_numbers = #tpu.dot_dimension_numbers<[1], [0], [0], [1], [0, 0, 1, 1], [], []>} : vector<8x64xbf16>, vector<64x32xbf16>, vector<8x32xf32> -> vector<8x32xf32>
    %c0_105 = arith.constant 0 : index
    %c0_106 = arith.constant 0 : index
    %286 = vector.load %arg12[%c0_105, %c0_106] : memref<1x32xf32, #tpu.memory_space<vmem>>, vector<1x32xf32>
    %287 = vector.broadcast %286 : vector<1x32xf32> to vector<8x32xf32>
    %288 = arith.addf %285, %287 : vector<8x32xf32>
    %289 = arith.addf %288, %274 : vector<8x32xf32>
    %c0_107 = arith.constant 0 : index
    %c0_108 = arith.constant 0 : index
    %290 = vector.load %arg17[%c0_107, %c0_108] : memref<1x32xf32, #tpu.memory_space<vmem>>, vector<1x32xf32>
    %c0_109 = arith.constant 0 : index
    %c0_110 = arith.constant 0 : index
    %291 = vector.load %arg18[%c0_109, %c0_110] : memref<1x32xf32, #tpu.memory_space<vmem>>, vector<1x32xf32>
    %cst_111 = arith.constant dense<0.000000e+00> : vector<8xf32>
    %292 = vector.multi_reduction <add>, %289, %cst_111 [1] : vector<8x32xf32> to vector<8xf32>
    %293 = vector.shape_cast %292 : vector<8xf32> to vector<8x1xf32>
    %cst_112 = arith.constant 3.200000e+01 : f32
    %294 = vector.broadcast %cst_112 : f32 to vector<8x1xf32>
    %295 = arith.divf %293, %294 : vector<8x1xf32>
    %296 = vector.broadcast %295 : vector<8x1xf32> to vector<8x32xf32>
    %297 = arith.subf %289, %296 : vector<8x32xf32>
    %298 = arith.mulf %297, %297 : vector<8x32xf32>
    %cst_113 = arith.constant dense<0.000000e+00> : vector<8xf32>
    %299 = vector.multi_reduction <add>, %298, %cst_113 [1] : vector<8x32xf32> to vector<8xf32>
    %300 = vector.shape_cast %299 : vector<8xf32> to vector<8x1xf32>
    %cst_114 = arith.constant 3.200000e+01 : f32
    %301 = vector.broadcast %cst_114 : f32 to vector<8x1xf32>
    %302 = arith.divf %300, %301 : vector<8x1xf32>
    %cst_115 = arith.constant 9.99999974E-6 : f32
    %303 = vector.broadcast %cst_115 : f32 to vector<8x1xf32>
    %304 = arith.addf %302, %303 : vector<8x1xf32>
    %305 = math.rsqrt %304 : vector<8x1xf32>
    %306 = vector.broadcast %305 : vector<8x1xf32> to vector<8x32xf32>
    %307 = arith.mulf %297, %306 : vector<8x32xf32>
    %308 = vector.broadcast %290 : vector<1x32xf32> to vector<8x32xf32>
    %309 = arith.mulf %307, %308 : vector<8x32xf32>
    %310 = vector.broadcast %291 : vector<1x32xf32> to vector<8x32xf32>
    %311 = arith.addf %309, %310 : vector<8x32xf32>
    %c0_116 = arith.constant 0 : index
    %c0_117 = arith.constant 0 : index
    %312 = vector.load %arg19[%c0_116, %c0_117] : memref<8x32xf32, #tpu.memory_space<vmem>>, vector<8x32xf32>
    tpu.vector_store %arg19[%c0_116, %c0_117], %311 {strides = array<i32>} : memref<8x32xf32, #tpu.memory_space<vmem>>, vector<8x32xf32>,
    return
  }
  func.func @transform_0(%arg0: i32, %arg1: memref<2xi32, #tpu.memory_space<smem>>) -> (i32, i32) {
    %c0_i32 = arith.constant 0 : i32
    %c0_i32_0 = arith.constant 0 : i32
    return %arg0, %c0_i32 : i32, i32
  }
  func.func @transform_1(%arg0: i32, %arg1: memref<2xi32, #tpu.memory_space<smem>>) -> (i32, i32) {
    %c0_i32 = arith.constant 0 : i32
    %c0_i32_0 = arith.constant 0 : i32
    return %arg0, %c0_i32 : i32, i32
  }
  func.func @transform_2(%arg0: i32, %arg1: memref<2xi32, #tpu.memory_space<smem>>) -> (i32, i32) {
    %c0_i32 = arith.constant 0 : i32
    %c0_i32_0 = arith.constant 0 : i32
    %c0_i32_1 = arith.constant 0 : i32
    return %c0_i32, %c0_i32_0 : i32, i32
  }
  func.func @transform_3(%arg0: i32, %arg1: memref<2xi32, #tpu.memory_space<smem>>) -> (i32, i32) {
    %c0_i32 = arith.constant 0 : i32
    %c0_i32_0 = arith.constant 0 : i32
    %c0_i32_1 = arith.constant 0 : i32
    return %c0_i32, %c0_i32_0 : i32, i32
  }
  func.func @transform_4(%arg0: i32, %arg1: memref<2xi32, #tpu.memory_space<smem>>) -> (i32, i32) {
    %c0_i32 = arith.constant 0 : i32
    %c0_i32_0 = arith.constant 0 : i32
    %c0_i32_1 = arith.constant 0 : i32
    return %c0_i32, %c0_i32_0 : i32, i32
  }
  func.func @transform_5(%arg0: i32, %arg1: memref<2xi32, #tpu.memory_space<smem>>) -> (i32, i32) {
    %c0_i32 = arith.constant 0 : i32
    %c0_i32_0 = arith.constant 0 : i32
    %c0_i32_1 = arith.constant 0 : i32
    return %c0_i32, %c0_i32_0 : i32, i32
  }
  func.func @transform_6(%arg0: i32, %arg1: memref<2xi32, #tpu.memory_space<smem>>) -> (i32, i32) {
    %c0_i32 = arith.constant 0 : i32
    %c0_i32_0 = arith.constant 0 : i32
    %c0_i32_1 = arith.constant 0 : i32
    return %c0_i32, %c0_i32_0 : i32, i32
  }
  func.func @transform_7(%arg0: i32, %arg1: memref<2xi32, #tpu.memory_space<smem>>) -> (i32, i32) {
    %c0_i32 = arith.constant 0 : i32
    %c0_i32_0 = arith.constant 0 : i32
    %c0_i32_1 = arith.constant 0 : i32
    return %c0_i32, %c0_i32_0 : i32, i32
  }
  func.func @transform_8(%arg0: i32, %arg1: memref<2xi32, #tpu.memory_space<smem>>) -> (i32, i32) {
    %c0_i32 = arith.constant 0 : i32
    %c0_i32_0 = arith.constant 0 : i32
    %c0_i32_1 = arith.constant 0 : i32
    return %c0_i32, %c0_i32_0 : i32, i32
  }
  func.func @transform_9(%arg0: i32, %arg1: memref<2xi32, #tpu.memory_space<smem>>) -> (i32, i32) {
    %c0_i32 = arith.constant 0 : i32
    %c0_i32_0 = arith.constant 0 : i32
    %c0_i32_1 = arith.constant 0 : i32
    return %c0_i32, %c0_i32_0 : i32, i32
  }
  func.func @transform_10(%arg0: i32, %arg1: memref<2xi32, #tpu.memory_space<smem>>) -> (i32, i32) {
    %c0_i32 = arith.constant 0 : i32
    %c0_i32_0 = arith.constant 0 : i32
    %c0_i32_1 = arith.constant 0 : i32
    return %c0_i32, %c0_i32_0 : i32, i32
  }
  func.func @transform_11(%arg0: i32, %arg1: memref<2xi32, #tpu.memory_space<smem>>) -> (i32, i32) {
    %c0_i32 = arith.constant 0 : i32
    %c0_i32_0 = arith.constant 0 : i32
    %c0_i32_1 = arith.constant 0 : i32
    return %c0_i32, %c0_i32_0 : i32, i32
  }
  func.func @transform_12(%arg0: i32, %arg1: memref<2xi32, #tpu.memory_space<smem>>) -> (i32, i32) {
    %c0_i32 = arith.constant 0 : i32
    %c0_i32_0 = arith.constant 0 : i32
    %c0_i32_1 = arith.constant 0 : i32
    return %c0_i32, %c0_i32_0 : i32, i32
  }
  func.func @transform_13(%arg0: i32, %arg1: memref<2xi32, #tpu.memory_space<smem>>) -> (i32, i32) {
    %c0_i32 = arith.constant 0 : i32
    %c0_i32_0 = arith.constant 0 : i32
    %c0_i32_1 = arith.constant 0 : i32
    return %c0_i32, %c0_i32_0 : i32, i32
  }
  func.func @transform_14(%arg0: i32, %arg1: memref<2xi32, #tpu.memory_space<smem>>) -> (i32, i32) {
    %c0_i32 = arith.constant 0 : i32
    %c0_i32_0 = arith.constant 0 : i32
    %c0_i32_1 = arith.constant 0 : i32
    return %c0_i32, %c0_i32_0 : i32, i32
  }
  func.func @transform_15(%arg0: i32, %arg1: memref<2xi32, #tpu.memory_space<smem>>) -> (i32, i32) {
    %c0_i32 = arith.constant 0 : i32
    %c0_i32_0 = arith.constant 0 : i32
    %c0_i32_1 = arith.constant 0 : i32
    return %c0_i32, %c0_i32_0 : i32, i32
  }
  func.func @transform_16(%arg0: i32, %arg1: memref<2xi32, #tpu.memory_space<smem>>) -> (i32, i32) {
    %c0_i32 = arith.constant 0 : i32
    %c0_i32_0 = arith.constant 0 : i32
    %c0_i32_1 = arith.constant 0 : i32
    return %c0_i32, %c0_i32_0 : i32, i32
  }
  func.func @transform_17(%arg0: i32, %arg1: memref<2xi32, #tpu.memory_space<smem>>) -> (i32, i32) {
    %c0_i32 = arith.constant 0 : i32
    %c0_i32_0 = arith.constant 0 : i32
    return %arg0, %c0_i32 : i32, i32
  }
}

module attributes {stable_mosaic.version = 11 : i64} {
  func.func @decoder_block_kernel(%arg0: i32, %arg1: memref<2xi32, #tpu.memory_space<smem>>, %arg2: memref<8x32xf32, #tpu.memory_space<vmem>>, %arg3: memref<8x32xbf16, #tpu.memory_space<vmem>>, %arg4: memref<32x96xbf16, #tpu.memory_space<vmem>>, %arg5: memref<32x32xbf16, #tpu.memory_space<vmem>>, %arg6: memref<32x32xbf16, #tpu.memory_space<vmem>>, %arg7: memref<32x64xbf16, #tpu.memory_space<vmem>>, %arg8: memref<32x32xbf16, #tpu.memory_space<vmem>>, %arg9: memref<32x64xbf16, #tpu.memory_space<vmem>>, %arg10: memref<1x64xf32, #tpu.memory_space<vmem>>, %arg11: memref<64x32xbf16, #tpu.memory_space<vmem>>, %arg12: memref<1x32xf32, #tpu.memory_space<vmem>>, %arg13: memref<1x32xf32, #tpu.memory_space<vmem>>, %arg14: memref<1x32xf32, #tpu.memory_space<vmem>>, %arg15: memref<1x32xf32, #tpu.memory_space<vmem>>, %arg16: memref<1x32xf32, #tpu.memory_space<vmem>>, %arg17: memref<1x32xf32, #tpu.memory_space<vmem>>, %arg18: memref<1x32xf32, #tpu.memory_space<vmem>>, %arg19: memref<8x32xf32, #tpu.memory_space<vmem>>, %arg20: memref<8x32xbf16, #tpu.memory_space<vmem>>) attributes {dimension_semantics = [#tpu.dimension_semantics<parallel>], iteration_bounds = array<i64: 2>, scalar_prefetch = 1 : i64, scratch_operands = 1 : i64, tpu.core_type = #tpu.core_type<tc>, window_params = [{transform_indices = @transform_0, window_bounds = array<i64: 8, 32>}, {transform_indices = @transform_1, window_bounds = array<i64: 8, 32>}, {pipeline_mode = #tpu.pipeline_mode<synchronous>, transform_indices = @transform_2, window_bounds = array<i64: 32, 96>}, {pipeline_mode = #tpu.pipeline_mode<synchronous>, transform_indices = @transform_3, window_bounds = array<i64: 32, 32>}, {pipeline_mode = #tpu.pipeline_mode<synchronous>, transform_indices = @transform_4, window_bounds = array<i64: 32, 32>}, {pipeline_mode = #tpu.pipeline_mode<synchronous>, transform_indices = @transform_5, window_bounds = array<i64: 32, 64>}, {pipeline_mode = #tpu.pipeline_mode<synchronous>, transform_indices = @transform_6, window_bounds = array<i64: 32, 32>}, {pipeline_mode = #tpu.pipeline_mode<synchronous>, transform_indices = @transform_7, window_bounds = array<i64: 32, 64>}, {pipeline_mode = #tpu.pipeline_mode<synchronous>, transform_indices = @transform_8, window_bounds = array<i64: 1, 64>}, {pipeline_mode = #tpu.pipeline_mode<synchronous>, transform_indices = @transform_9, window_bounds = array<i64: 64, 32>}, {pipeline_mode = #tpu.pipeline_mode<synchronous>, transform_indices = @transform_10, window_bounds = array<i64: 1, 32>}, {pipeline_mode = #tpu.pipeline_mode<synchronous>, transform_indices = @transform_11, window_bounds = array<i64: 1, 32>}, {pipeline_mode = #tpu.pipeline_mode<synchronous>, transform_indices = @transform_12, window_bounds = array<i64: 1, 32>}, {pipeline_mode = #tpu.pipeline_mode<synchronous>, transform_indices = @transform_13, window_bounds = array<i64: 1, 32>}, {pipeline_mode = #tpu.pipeline_mode<synchronous>, transform_indices = @transform_14, window_bounds = array<i64: 1, 32>}, {pipeline_mode = #tpu.pipeline_mode<synchronous>, transform_indices = @transform_15, window_bounds = array<i64: 1, 32>}, {pipeline_mode = #tpu.pipeline_mode<synchronous>, transform_indices = @transform_16, window_bounds = array<i64: 1, 32>}, {transform_indices = @transform_17, window_bounds = array<i64: 8, 32>}]} {
    %c0 = arith.constant 0 : index
    %c0_0 = arith.constant 0 : index
    %0 = vector.load %arg2[%c0, %c0_0] : memref<8x32xf32, #tpu.memory_space<vmem>>, vector<8x32xf32>
    %1 = arith.truncf %0 : vector<8x32xf32> to vector<8x32xbf16>
    %c0_1 = arith.constant 0 : index
    %c0_2 = arith.constant 0 : index
    %2 = vector.load %arg4[%c0_1, %c0_2] : memref<32x96xbf16, #tpu.memory_space<vmem>>, vector<32x96xbf16>
    %cst = arith.constant dense<0.000000e+00> : vector<8x96xf32>
    %3 = tpu.matmul %1, %2, %cst {dimension_numbers = #tpu.dot_dimension_numbers<[1], [0], [0], [1], [0, 0, 1, 1], [], []>} : vector<8x32xbf16>, vector<32x96xbf16>, vector<8x96xf32> -> vector<8x96xf32>
    %4 = vector.extract_strided_slice %3 {offsets = [0, 0], sizes = [8, 32], strides = [1, 1]} : vector<8x96xf32> to vector<8x32xf32>
    %cst_3 = arith.constant 0.353553385 : f32
    %5 = vector.broadcast %cst_3 : f32 to vector<8x32xf32>
    %6 = arith.mulf %4, %5 : vector<8x32xf32>
    %7 = arith.truncf %6 : vector<8x32xf32> to vector<8x32xbf16>
    %8 = vector.shape_cast %7 : vector<8x32xbf16> to vector<1x8x32xbf16>
    %9 = vector.extract_strided_slice %3 {offsets = [0, 32], sizes = [8, 32], strides = [1, 1]} : vector<8x96xf32> to vector<8x32xf32>
    %10 = arith.truncf %9 : vector<8x32xf32> to vector<8x32xbf16>
    %11 = vector.shape_cast %10 : vector<8x32xbf16> to vector<1x8x32xbf16>
    %12 = vector.extract_strided_slice %3 {offsets = [0, 64], sizes = [8, 32], strides = [1, 1]} : vector<8x96xf32> to vector<8x32xf32>
    %13 = arith.truncf %12 : vector<8x32xf32> to vector<8x32xbf16>
    %14 = vector.shape_cast %13 : vector<8x32xbf16> to vector<1x8x32xbf16>
    %15 = tpu.iota {dimensions = array<i32: 1>} : vector<1x8x8xi32>
    %16 = tpu.iota {dimensions = array<i32: 2>} : vector<1x8x8xi32>
    %17 = arith.cmpi sle, %16, %15 : vector<1x8x8xi32>
    %18 = vector.extract_strided_slice %8 {offsets = [0, 0, 0], sizes = [1, 8, 8], strides = [1, 1, 1]} : vector<1x8x32xbf16> to vector<1x8x8xbf16>
    %19 = vector.extract_strided_slice %11 {offsets = [0, 0, 0], sizes = [1, 8, 8], strides = [1, 1, 1]} : vector<1x8x32xbf16> to vector<1x8x8xbf16>
    "tpu.trace_start"() <{level = 10 : i32, message = "bqd,bkd->bqk"}> : () -> ()
    %cst_4 = arith.constant dense<0.000000e+00> : vector<1x8x8xf32>
    %20 = tpu.matmul %18, %19, %cst_4 {dimension_numbers = #tpu.dot_dimension_numbers<[2], [2], [1], [1], [0, 0, 0, 1, 1, 1], [0], [0]>} : vector<1x8x8xbf16>, vector<1x8x8xbf16>, vector<1x8x8xf32> -> vector<1x8x8xf32>
    %cst_5 = arith.constant -1.000000e+06 : f32
    "tpu.trace_stop"() : () -> ()
    %21 = vector.broadcast %cst_5 : f32 to vector<1x8x8xf32>
    %22 = arith.select %17, %20, %21 : vector<1x8x8xi1>, vector<1x8x8xf32>
    %cst_6 = arith.constant dense<0xFF800000> : vector<1x8xf32>
    %23 = vector.multi_reduction <maximumf>, %22, %cst_6 [2] : vector<1x8x8xf32> to vector<1x8xf32>
    %24 = vector.shape_cast %23 : vector<1x8xf32> to vector<1x8x1xf32>
    %25 = vector.broadcast %24 : vector<1x8x1xf32> to vector<1x8x8xf32>
    %26 = arith.subf %22, %25 : vector<1x8x8xf32>
    %27 = math.exp %26 : vector<1x8x8xf32>
    %cst_7 = arith.constant dense<0.000000e+00> : vector<1x8xf32>
    %28 = vector.multi_reduction <add>, %27, %cst_7 [2] : vector<1x8x8xf32> to vector<1x8xf32>
    %29 = vector.shape_cast %28 : vector<1x8xf32> to vector<1x8x1xf32>
    %30 = tpu.reciprocal %29 {approx = true} : vector<1x8x1xf32> -> vector<1x8x1xf32>
    %31 = vector.broadcast %30 : vector<1x8x1xf32> to vector<1x8x8xf32>
    %32 = arith.mulf %27, %31 : vector<1x8x8xf32>
    %33 = arith.truncf %32 : vector<1x8x8xf32> to vector<1x8x8xbf16>
    %34 = vector.extract_strided_slice %14 {offsets = [0, 0, 0], sizes = [1, 8, 8], strides = [1, 1, 1]} : vector<1x8x32xbf16> to vector<1x8x8xbf16>
    "tpu.trace_start"() <{level = 10 : i32, message = "bqk,bkd->bqd"}> : () -> ()
    %cst_8 = arith.constant dense<0.000000e+00> : vector<1x8x8xf32>
    %35 = tpu.matmul %33, %34, %cst_8 {dimension_numbers = #tpu.dot_dimension_numbers<[2], [1], [1], [2], [0, 0, 0, 1, 1, 2], [0], [0]>} : vector<1x8x8xbf16>, vector<1x8x8xbf16>, vector<1x8x8xf32> -> vector<1x8x8xf32>
    "tpu.trace_stop"() : () -> ()
    %36 = vector.shape_cast %35 : vector<1x8x8xf32> to vector<8x8xf32>
    %37 = arith.truncf %36 : vector<8x8xf32> to vector<8x8xbf16>
    %c0_9 = arith.constant 0 : index
    %c0_10 = arith.constant 0 : index
    %38 = vector.load %arg20[%c0_9, %c0_10] : memref<8x32xbf16, #tpu.memory_space<vmem>>, vector<8x8xbf16>
    tpu.vector_store %arg20[%c0_9, %c0_10], %37 {strides = array<i32>} : memref<8x32xbf16, #tpu.memory_space<vmem>>, vector<8x8xbf16>,
    %39 = vector.extract_strided_slice %8 {offsets = [0, 0, 8], sizes = [1, 8, 8], strides = [1, 1, 1]} : vector<1x8x32xbf16> to vector<1x8x8xbf16>
    %40 = vector.extract_strided_slice %11 {offsets = [0, 0, 8], sizes = [1, 8, 8], strides = [1, 1, 1]} : vector<1x8x32xbf16> to vector<1x8x8xbf16>
    "tpu.trace_start"() <{level = 10 : i32, message = "bqd,bkd->bqk"}> : () -> ()
    %cst_11 = arith.constant dense<0.000000e+00> : vector<1x8x8xf32>
    %41 = tpu.matmul %39, %40, %cst_11 {dimension_numbers = #tpu.dot_dimension_numbers<[2], [2], [1], [1], [0, 0, 0, 1, 1, 1], [0], [0]>} : vector<1x8x8xbf16>, vector<1x8x8xbf16>, vector<1x8x8xf32> -> vector<1x8x8xf32>
    %cst_12 = arith.constant -1.000000e+06 : f32
    "tpu.trace_stop"() : () -> ()
    %42 = vector.broadcast %cst_12 : f32 to vector<1x8x8xf32>
    %43 = arith.select %17, %41, %42 : vector<1x8x8xi1>, vector<1x8x8xf32>
    %cst_13 = arith.constant dense<0xFF800000> : vector<1x8xf32>
    %44 = vector.multi_reduction <maximumf>, %43, %cst_13 [2] : vector<1x8x8xf32> to vector<1x8xf32>
    %45 = vector.shape_cast %44 : vector<1x8xf32> to vector<1x8x1xf32>
    %46 = vector.broadcast %45 : vector<1x8x1xf32> to vector<1x8x8xf32>
    %47 = arith.subf %43, %46 : vector<1x8x8xf32>
    %48 = math.exp %47 : vector<1x8x8xf32>
    %cst_14 = arith.constant dense<0.000000e+00> : vector<1x8xf32>
    %49 = vector.multi_reduction <add>, %48, %cst_14 [2] : vector<1x8x8xf32> to vector<1x8xf32>
    %50 = vector.shape_cast %49 : vector<1x8xf32> to vector<1x8x1xf32>
    %51 = tpu.reciprocal %50 {approx = true} : vector<1x8x1xf32> -> vector<1x8x1xf32>
    %52 = vector.broadcast %51 : vector<1x8x1xf32> to vector<1x8x8xf32>
    %53 = arith.mulf %48, %52 : vector<1x8x8xf32>
    %54 = arith.truncf %53 : vector<1x8x8xf32> to vector<1x8x8xbf16>
    %55 = vector.extract_strided_slice %14 {offsets = [0, 0, 8], sizes = [1, 8, 8], strides = [1, 1, 1]} : vector<1x8x32xbf16> to vector<1x8x8xbf16>
    "tpu.trace_start"() <{level = 10 : i32, message = "bqk,bkd->bqd"}> : () -> ()
    %cst_15 = arith.constant dense<0.000000e+00> : vector<1x8x8xf32>
    %56 = tpu.matmul %54, %55, %cst_15 {dimension_numbers = #tpu.dot_dimension_numbers<[2], [1], [1], [2], [0, 0, 0, 1, 1, 2], [0], [0]>} : vector<1x8x8xbf16>, vector<1x8x8xbf16>, vector<1x8x8xf32> -> vector<1x8x8xf32>
    "tpu.trace_stop"() : () -> ()
    %57 = vector.shape_cast %56 : vector<1x8x8xf32> to vector<8x8xf32>
    %58 = arith.truncf %57 : vector<8x8xf32> to vector<8x8xbf16>
    %c0_16 = arith.constant 0 : index
    %c8 = arith.constant 8 : index
    %59 = vector.load %arg20[%c0_16, %c8] : memref<8x32xbf16, #tpu.memory_space<vmem>>, vector<8x8xbf16>
    tpu.vector_store %arg20[%c0_16, %c8], %58 {strides = array<i32>} : memref<8x32xbf16, #tpu.memory_space<vmem>>, vector<8x8xbf16>,
    %60 = vector.extract_strided_slice %8 {offsets = [0, 0, 16], sizes = [1, 8, 8], strides = [1, 1, 1]} : vector<1x8x32xbf16> to vector<1x8x8xbf16>
    %61 = vector.extract_strided_slice %11 {offsets = [0, 0, 16], sizes = [1, 8, 8], strides = [1, 1, 1]} : vector<1x8x32xbf16> to vector<1x8x8xbf16>
    "tpu.trace_start"() <{level = 10 : i32, message = "bqd,bkd->bqk"}> : () -> ()
    %cst_17 = arith.constant dense<0.000000e+00> : vector<1x8x8xf32>
    %62 = tpu.matmul %60, %61, %cst_17 {dimension_numbers = #tpu.dot_dimension_numbers<[2], [2], [1], [1], [0, 0, 0, 1, 1, 1], [0], [0]>} : vector<1x8x8xbf16>, vector<1x8x8xbf16>, vector<1x8x8xf32> -> vector<1x8x8xf32>
    %cst_18 = arith.constant -1.000000e+06 : f32
    "tpu.trace_stop"() : () -> ()
    %63 = vector.broadcast %cst_18 : f32 to vector<1x8x8xf32>
    %64 = arith.select %17, %62, %63 : vector<1x8x8xi1>, vector<1x8x8xf32>
    %cst_19 = arith.constant dense<0xFF800000> : vector<1x8xf32>
    %65 = vector.multi_reduction <maximumf>, %64, %cst_19 [2] : vector<1x8x8xf32> to vector<1x8xf32>
    %66 = vector.shape_cast %65 : vector<1x8xf32> to vector<1x8x1xf32>
    %67 = vector.broadcast %66 : vector<1x8x1xf32> to vector<1x8x8xf32>
    %68 = arith.subf %64, %67 : vector<1x8x8xf32>
    %69 = math.exp %68 : vector<1x8x8xf32>
    %cst_20 = arith.constant dense<0.000000e+00> : vector<1x8xf32>
    %70 = vector.multi_reduction <add>, %69, %cst_20 [2] : vector<1x8x8xf32> to vector<1x8xf32>
    %71 = vector.shape_cast %70 : vector<1x8xf32> to vector<1x8x1xf32>
    %72 = tpu.reciprocal %71 {approx = true} : vector<1x8x1xf32> -> vector<1x8x1xf32>
    %73 = vector.broadcast %72 : vector<1x8x1xf32> to vector<1x8x8xf32>
    %74 = arith.mulf %69, %73 : vector<1x8x8xf32>
    %75 = arith.truncf %74 : vector<1x8x8xf32> to vector<1x8x8xbf16>
    %76 = vector.extract_strided_slice %14 {offsets = [0, 0, 16], sizes = [1, 8, 8], strides = [1, 1, 1]} : vector<1x8x32xbf16> to vector<1x8x8xbf16>
    "tpu.trace_start"() <{level = 10 : i32, message = "bqk,bkd->bqd"}> : () -> ()
    %cst_21 = arith.constant dense<0.000000e+00> : vector<1x8x8xf32>
    %77 = tpu.matmul %75, %76, %cst_21 {dimension_numbers = #tpu.dot_dimension_numbers<[2], [1], [1], [2], [0, 0, 0, 1, 1, 2], [0], [0]>} : vector<1x8x8xbf16>, vector<1x8x8xbf16>, vector<1x8x8xf32> -> vector<1x8x8xf32>
    "tpu.trace_stop"() : () -> ()
    %78 = vector.shape_cast %77 : vector<1x8x8xf32> to vector<8x8xf32>
    %79 = arith.truncf %78 : vector<8x8xf32> to vector<8x8xbf16>
    %c0_22 = arith.constant 0 : index
    %c16 = arith.constant 16 : index
    %80 = vector.load %arg20[%c0_22, %c16] : memref<8x32xbf16, #tpu.memory_space<vmem>>, vector<8x8xbf16>
    tpu.vector_store %arg20[%c0_22, %c16], %79 {strides = array<i32>} : memref<8x32xbf16, #tpu.memory_space<vmem>>, vector<8x8xbf16>,
    %81 = vector.extract_strided_slice %8 {offsets = [0, 0, 24], sizes = [1, 8, 8], strides = [1, 1, 1]} : vector<1x8x32xbf16> to vector<1x8x8xbf16>
    %82 = vector.extract_strided_slice %11 {offsets = [0, 0, 24], sizes = [1, 8, 8], strides = [1, 1, 1]} : vector<1x8x32xbf16> to vector<1x8x8xbf16>
    "tpu.trace_start"() <{level = 10 : i32, message = "bqd,bkd->bqk"}> : () -> ()
    %cst_23 = arith.constant dense<0.000000e+00> : vector<1x8x8xf32>
    %83 = tpu.matmul %81, %82, %cst_23 {dimension_numbers = #tpu.dot_dimension_numbers<[2], [2], [1], [1], [0, 0, 0, 1, 1, 1], [0], [0]>} : vector<1x8x8xbf16>, vector<1x8x8xbf16>, vector<1x8x8xf32> -> vector<1x8x8xf32>
    %cst_24 = arith.constant -1.000000e+06 : f32
    "tpu.trace_stop"() : () -> ()
    %84 = vector.broadcast %cst_24 : f32 to vector<1x8x8xf32>
    %85 = arith.select %17, %83, %84 : vector<1x8x8xi1>, vector<1x8x8xf32>
    %cst_25 = arith.constant dense<0xFF800000> : vector<1x8xf32>
    %86 = vector.multi_reduction <maximumf>, %85, %cst_25 [2] : vector<1x8x8xf32> to vector<1x8xf32>
    %87 = vector.shape_cast %86 : vector<1x8xf32> to vector<1x8x1xf32>
    %88 = vector.broadcast %87 : vector<1x8x1xf32> to vector<1x8x8xf32>
    %89 = arith.subf %85, %88 : vector<1x8x8xf32>
    %90 = math.exp %89 : vector<1x8x8xf32>
    %cst_26 = arith.constant dense<0.000000e+00> : vector<1x8xf32>
    %91 = vector.multi_reduction <add>, %90, %cst_26 [2] : vector<1x8x8xf32> to vector<1x8xf32>
    %92 = vector.shape_cast %91 : vector<1x8xf32> to vector<1x8x1xf32>
    %93 = tpu.reciprocal %92 {approx = true} : vector<1x8x1xf32> -> vector<1x8x1xf32>
    %94 = vector.broadcast %93 : vector<1x8x1xf32> to vector<1x8x8xf32>
    %95 = arith.mulf %90, %94 : vector<1x8x8xf32>
    %96 = arith.truncf %95 : vector<1x8x8xf32> to vector<1x8x8xbf16>
    %97 = vector.extract_strided_slice %14 {offsets = [0, 0, 24], sizes = [1, 8, 8], strides = [1, 1, 1]} : vector<1x8x32xbf16> to vector<1x8x8xbf16>
    "tpu.trace_start"() <{level = 10 : i32, message = "bqk,bkd->bqd"}> : () -> ()
    %cst_27 = arith.constant dense<0.000000e+00> : vector<1x8x8xf32>
    %98 = tpu.matmul %96, %97, %cst_27 {dimension_numbers = #tpu.dot_dimension_numbers<[2], [1], [1], [2], [0, 0, 0, 1, 1, 2], [0], [0]>} : vector<1x8x8xbf16>, vector<1x8x8xbf16>, vector<1x8x8xf32> -> vector<1x8x8xf32>
    "tpu.trace_stop"() : () -> ()
    %99 = vector.shape_cast %98 : vector<1x8x8xf32> to vector<8x8xf32>
    %100 = arith.truncf %99 : vector<8x8xf32> to vector<8x8xbf16>
    %c0_28 = arith.constant 0 : index
    %c24 = arith.constant 24 : index
    %101 = vector.load %arg20[%c0_28, %c24] : memref<8x32xbf16, #tpu.memory_space<vmem>>, vector<8x8xbf16>
    tpu.vector_store %arg20[%c0_28, %c24], %100 {strides = array<i32>} : memref<8x32xbf16, #tpu.memory_space<vmem>>, vector<8x8xbf16>,
    %c0_29 = arith.constant 0 : index
    %c0_30 = arith.constant 0 : index
    %102 = vector.load %arg20[%c0_29, %c0_30] : memref<8x32xbf16, #tpu.memory_space<vmem>>, vector<8x32xbf16>
    %c0_31 = arith.constant 0 : index
    %c0_32 = arith.constant 0 : index
    %103 = vector.load %arg5[%c0_31, %c0_32] : memref<32x32xbf16, #tpu.memory_space<vmem>>, vector<32x32xbf16>
    %cst_33 = arith.constant dense<0.000000e+00> : vector<8x32xf32>
    %104 = tpu.matmul %102, %103, %cst_33 {dimension_numbers = #tpu.dot_dimension_numbers<[1], [0], [0], [1], [0, 0, 1, 1], [], []>} : vector<8x32xbf16>, vector<32x32xbf16>, vector<8x32xf32> -> vector<8x32xf32>
    %105 = arith.addf %104, %0 : vector<8x32xf32>
    %c0_34 = arith.constant 0 : index
    %c0_35 = arith.constant 0 : index
    %106 = vector.load %arg13[%c0_34, %c0_35] : memref<1x32xf32, #tpu.memory_space<vmem>>, vector<1x32xf32>
    %c0_36 = arith.constant 0 : index
    %c0_37 = arith.constant 0 : index
    %107 = vector.load %arg14[%c0_36, %c0_37] : memref<1x32xf32, #tpu.memory_space<vmem>>, vector<1x32xf32>
    %cst_38 = arith.constant dense<0.000000e+00> : vector<8xf32>
    %108 = vector.multi_reduction <add>, %105, %cst_38 [1] : vector<8x32xf32> to vector<8xf32>
    %109 = vector.shape_cast %108 : vector<8xf32> to vector<8x1xf32>
    %cst_39 = arith.constant 3.200000e+01 : f32
    %110 = vector.broadcast %cst_39 : f32 to vector<8x1xf32>
    %111 = arith.divf %109, %110 : vector<8x1xf32>
    %112 = vector.broadcast %111 : vector<8x1xf32> to vector<8x32xf32>
    %113 = arith.subf %105, %112 : vector<8x32xf32>
    %114 = arith.mulf %113, %113 : vector<8x32xf32>
    %cst_40 = arith.constant dense<0.000000e+00> : vector<8xf32>
    %115 = vector.multi_reduction <add>, %114, %cst_40 [1] : vector<8x32xf32> to vector<8xf32>
    %116 = vector.shape_cast %115 : vector<8xf32> to vector<8x1xf32>
    %cst_41 = arith.constant 3.200000e+01 : f32
    %117 = vector.broadcast %cst_41 : f32 to vector<8x1xf32>
    %118 = arith.divf %116, %117 : vector<8x1xf32>
    %cst_42 = arith.constant 9.99999974E-6 : f32
    %119 = vector.broadcast %cst_42 : f32 to vector<8x1xf32>
    %120 = arith.addf %118, %119 : vector<8x1xf32>
    %121 = math.rsqrt %120 : vector<8x1xf32>
    %122 = vector.broadcast %121 : vector<8x1xf32> to vector<8x32xf32>
    %123 = arith.mulf %113, %122 : vector<8x32xf32>
    %124 = vector.broadcast %106 : vector<1x32xf32> to vector<8x32xf32>
    %125 = arith.mulf %123, %124 : vector<8x32xf32>
    %126 = vector.broadcast %107 : vector<1x32xf32> to vector<8x32xf32>
    %127 = arith.addf %125, %126 : vector<8x32xf32>
    %128 = arith.truncf %127 : vector<8x32xf32> to vector<8x32xbf16>
    %c0_43 = arith.constant 0 : index
    %c0_44 = arith.constant 0 : index
    %129 = vector.load %arg6[%c0_43, %c0_44] : memref<32x32xbf16, #tpu.memory_space<vmem>>, vector<32x32xbf16>
    %cst_45 = arith.constant dense<0.000000e+00> : vector<8x32xf32>
    %130 = tpu.matmul %128, %129, %cst_45 {dimension_numbers = #tpu.dot_dimension_numbers<[1], [0], [0], [1], [0, 0, 1, 1], [], []>} : vector<8x32xbf16>, vector<32x32xbf16>, vector<8x32xf32> -> vector<8x32xf32>
    %cst_46 = arith.constant 0.353553385 : f32
    %131 = vector.broadcast %cst_46 : f32 to vector<8x32xf32>
    %132 = arith.mulf %130, %131 : vector<8x32xf32>
    %133 = arith.truncf %132 : vector<8x32xf32> to vector<8x32xbf16>
    %134 = vector.shape_cast %133 : vector<8x32xbf16> to vector<1x8x32xbf16>
    %c0_47 = arith.constant 0 : index
    %c0_48 = arith.constant 0 : index
    %135 = vector.load %arg3[%c0_47, %c0_48] : memref<8x32xbf16, #tpu.memory_space<vmem>>, vector<8x32xbf16>
    %c0_49 = arith.constant 0 : index
    %c0_50 = arith.constant 0 : index
    %136 = vector.load %arg7[%c0_49, %c0_50] : memref<32x64xbf16, #tpu.memory_space<vmem>>, vector<32x64xbf16>
    %cst_51 = arith.constant dense<0.000000e+00> : vector<8x64xf32>
    %137 = tpu.matmul %135, %136, %cst_51 {dimension_numbers = #tpu.dot_dimension_numbers<[1], [0], [0], [1], [0, 0, 1, 1], [], []>} : vector<8x32xbf16>, vector<32x64xbf16>, vector<8x64xf32> -> vector<8x64xf32>
    %138 = vector.extract_strided_slice %137 {offsets = [0, 0], sizes = [8, 32], strides = [1, 1]} : vector<8x64xf32> to vector<8x32xf32>
    %139 = arith.truncf %138 : vector<8x32xf32> to vector<8x32xbf16>
    %140 = vector.shape_cast %139 : vector<8x32xbf16> to vector<1x8x32xbf16>
    %141 = vector.extract_strided_slice %137 {offsets = [0, 32], sizes = [8, 32], strides = [1, 1]} : vector<8x64xf32> to vector<8x32xf32>
    %142 = arith.truncf %141 : vector<8x32xf32> to vector<8x32xbf16>
    %143 = vector.shape_cast %142 : vector<8x32xbf16> to vector<1x8x32xbf16>
    %144 = tpu.iota {dimensions = array<i32: 0>} : vector<1x1x1xi32>
    %c0_i32 = arith.constant 0 : i32
    %145 = vector.broadcast %c0_i32 : i32 to vector<1x1x1xi32>
    %c0_i32_52 = arith.constant 0 : i32
    %146 = vector.broadcast %c0_i32_52 : i32 to vector<1x1x1xi32>
    %147 = arith.cmpi eq, %144, %146 : vector<1x1x1xi32>
    %c1_i32 = arith.constant 1 : i32
    %148 = arith.muli %arg0, %c1_i32 : i32
    %c0_i32_53 = arith.constant 0 : i32
    %149 = arith.addi %148, %c0_i32_53 : i32
    %150 = arith.index_cast %149 : i32 to index
    %151 = memref.load %arg1[%150] : memref<2xi32, #tpu.memory_space<smem>>
    %152 = vector.broadcast %151 : i32 to vector<1x1x1xi32>
    %153 = arith.select %147, %152, %145 : vector<1x1x1xi1>, vector<1x1x1xi32>
    %154 = tpu.iota {dimensions = array<i32: 2>} : vector<1x1x8xi32>
    %155 = vector.broadcast %153 : vector<1x1x1xi32> to vector<1x1x8xi32>
    %156 = arith.cmpi slt, %154, %155 : vector<1x1x8xi32>
    %157 = vector.extract_strided_slice %134 {offsets = [0, 0, 0], sizes = [1, 8, 8], strides = [1, 1, 1]} : vector<1x8x32xbf16> to vector<1x8x8xbf16>
    %158 = vector.extract_strided_slice %140 {offsets = [0, 0, 0], sizes = [1, 8, 8], strides = [1, 1, 1]} : vector<1x8x32xbf16> to vector<1x8x8xbf16>
    "tpu.trace_start"() <{level = 10 : i32, message = "bqd,bkd->bqk"}> : () -> ()
    %cst_54 = arith.constant dense<0.000000e+00> : vector<1x8x8xf32>
    %159 = tpu.matmul %157, %158, %cst_54 {dimension_numbers = #tpu.dot_dimension_numbers<[2], [2], [1], [1], [0, 0, 0, 1, 1, 1], [0], [0]>} : vector<1x8x8xbf16>, vector<1x8x8xbf16>, vector<1x8x8xf32> -> vector<1x8x8xf32>
    %cst_55 = arith.constant -1.000000e+06 : f32
    "tpu.trace_stop"() : () -> ()
    %160 = vector.shape_cast %156 : vector<1x1x8xi1> to vector<1x1x8xi1>
    %161 = vector.broadcast %160 : vector<1x1x8xi1> to vector<1x8x8xi1>
    %162 = vector.broadcast %cst_55 : f32 to vector<1x8x8xf32>
    %163 = arith.select %161, %159, %162 : vector<1x8x8xi1>, vector<1x8x8xf32>
    %cst_56 = arith.constant dense<0xFF800000> : vector<1x8xf32>
    %164 = vector.multi_reduction <maximumf>, %163, %cst_56 [2] : vector<1x8x8xf32> to vector<1x8xf32>
    %165 = vector.shape_cast %164 : vector<1x8xf32> to vector<1x8x1xf32>
    %166 = vector.broadcast %165 : vector<1x8x1xf32> to vector<1x8x8xf32>
    %167 = arith.subf %163, %166 : vector<1x8x8xf32>
    %168 = math.exp %167 : vector<1x8x8xf32>
    %cst_57 = arith.constant dense<0.000000e+00> : vector<1x8xf32>
    %169 = vector.multi_reduction <add>, %168, %cst_57 [2] : vector<1x8x8xf32> to vector<1x8xf32>
    %170 = vector.shape_cast %169 : vector<1x8xf32> to vector<1x8x1xf32>
    %171 = tpu.reciprocal %170 {approx = true} : vector<1x8x1xf32> -> vector<1x8x1xf32>
    %172 = vector.broadcast %171 : vector<1x8x1xf32> to vector<1x8x8xf32>
    %173 = arith.mulf %168, %172 : vector<1x8x8xf32>
    %174 = arith.truncf %173 : vector<1x8x8xf32> to vector<1x8x8xbf16>
    %175 = vector.extract_strided_slice %143 {offsets = [0, 0, 0], sizes = [1, 8, 8], strides = [1, 1, 1]} : vector<1x8x32xbf16> to vector<1x8x8xbf16>
    "tpu.trace_start"() <{level = 10 : i32, message = "bqk,bkd->bqd"}> : () -> ()
    %cst_58 = arith.constant dense<0.000000e+00> : vector<1x8x8xf32>
    %176 = tpu.matmul %174, %175, %cst_58 {dimension_numbers = #tpu.dot_dimension_numbers<[2], [1], [1], [2], [0, 0, 0, 1, 1, 2], [0], [0]>} : vector<1x8x8xbf16>, vector<1x8x8xbf16>, vector<1x8x8xf32> -> vector<1x8x8xf32>
    "tpu.trace_stop"() : () -> ()
    %177 = vector.shape_cast %176 : vector<1x8x8xf32> to vector<8x8xf32>
    %178 = arith.truncf %177 : vector<8x8xf32> to vector<8x8xbf16>
    %c0_59 = arith.constant 0 : index
    %c0_60 = arith.constant 0 : index
    %179 = vector.load %arg20[%c0_59, %c0_60] : memref<8x32xbf16, #tpu.memory_space<vmem>>, vector<8x8xbf16>
    tpu.vector_store %arg20[%c0_59, %c0_60], %178 {strides = array<i32>} : memref<8x32xbf16, #tpu.memory_space<vmem>>, vector<8x8xbf16>,
    %180 = vector.extract_strided_slice %134 {offsets = [0, 0, 8], sizes = [1, 8, 8], strides = [1, 1, 1]} : vector<1x8x32xbf16> to vector<1x8x8xbf16>
    %181 = vector.extract_strided_slice %140 {offsets = [0, 0, 8], sizes = [1, 8, 8], strides = [1, 1, 1]} : vector<1x8x32xbf16> to vector<1x8x8xbf16>
    "tpu.trace_start"() <{level = 10 : i32, message = "bqd,bkd->bqk"}> : () -> ()
    %cst_61 = arith.constant dense<0.000000e+00> : vector<1x8x8xf32>
    %182 = tpu.matmul %180, %181, %cst_61 {dimension_numbers = #tpu.dot_dimension_numbers<[2], [2], [1], [1], [0, 0, 0, 1, 1, 1], [0], [0]>} : vector<1x8x8xbf16>, vector<1x8x8xbf16>, vector<1x8x8xf32> -> vector<1x8x8xf32>
    %cst_62 = arith.constant -1.000000e+06 : f32
    "tpu.trace_stop"() : () -> ()
    %183 = vector.shape_cast %156 : vector<1x1x8xi1> to vector<1x1x8xi1>
    %184 = vector.broadcast %183 : vector<1x1x8xi1> to vector<1x8x8xi1>
    %185 = vector.broadcast %cst_62 : f32 to vector<1x8x8xf32>
    %186 = arith.select %184, %182, %185 : vector<1x8x8xi1>, vector<1x8x8xf32>
    %cst_63 = arith.constant dense<0xFF800000> : vector<1x8xf32>
    %187 = vector.multi_reduction <maximumf>, %186, %cst_63 [2] : vector<1x8x8xf32> to vector<1x8xf32>
    %188 = vector.shape_cast %187 : vector<1x8xf32> to vector<1x8x1xf32>
    %189 = vector.broadcast %188 : vector<1x8x1xf32> to vector<1x8x8xf32>
    %190 = arith.subf %186, %189 : vector<1x8x8xf32>
    %191 = math.exp %190 : vector<1x8x8xf32>
    %cst_64 = arith.constant dense<0.000000e+00> : vector<1x8xf32>
    %192 = vector.multi_reduction <add>, %191, %cst_64 [2] : vector<1x8x8xf32> to vector<1x8xf32>
    %193 = vector.shape_cast %192 : vector<1x8xf32> to vector<1x8x1xf32>
    %194 = tpu.reciprocal %193 {approx = true} : vector<1x8x1xf32> -> vector<1x8x1xf32>
    %195 = vector.broadcast %194 : vector<1x8x1xf32> to vector<1x8x8xf32>
    %196 = arith.mulf %191, %195 : vector<1x8x8xf32>
    %197 = arith.truncf %196 : vector<1x8x8xf32> to vector<1x8x8xbf16>
    %198 = vector.extract_strided_slice %143 {offsets = [0, 0, 8], sizes = [1, 8, 8], strides = [1, 1, 1]} : vector<1x8x32xbf16> to vector<1x8x8xbf16>
    "tpu.trace_start"() <{level = 10 : i32, message = "bqk,bkd->bqd"}> : () -> ()
    %cst_65 = arith.constant dense<0.000000e+00> : vector<1x8x8xf32>
    %199 = tpu.matmul %197, %198, %cst_65 {dimension_numbers = #tpu.dot_dimension_numbers<[2], [1], [1], [2], [0, 0, 0, 1, 1, 2], [0], [0]>} : vector<1x8x8xbf16>, vector<1x8x8xbf16>, vector<1x8x8xf32> -> vector<1x8x8xf32>
    "tpu.trace_stop"() : () -> ()
    %200 = vector.shape_cast %199 : vector<1x8x8xf32> to vector<8x8xf32>
    %201 = arith.truncf %200 : vector<8x8xf32> to vector<8x8xbf16>
    %c0_66 = arith.constant 0 : index
    %c8_67 = arith.constant 8 : index
    %202 = vector.load %arg20[%c0_66, %c8_67] : memref<8x32xbf16, #tpu.memory_space<vmem>>, vector<8x8xbf16>
    tpu.vector_store %arg20[%c0_66, %c8_67], %201 {strides = array<i32>} : memref<8x32xbf16, #tpu.memory_space<vmem>>, vector<8x8xbf16>,
    %203 = vector.extract_strided_slice %134 {offsets = [0, 0, 16], sizes = [1, 8, 8], strides = [1, 1, 1]} : vector<1x8x32xbf16> to vector<1x8x8xbf16>
    %204 = vector.extract_strided_slice %140 {offsets = [0, 0, 16], sizes = [1, 8, 8], strides = [1, 1, 1]} : vector<1x8x32xbf16> to vector<1x8x8xbf16>
    "tpu.trace_start"() <{level = 10 : i32, message = "bqd,bkd->bqk"}> : () -> ()
    %cst_68 = arith.constant dense<0.000000e+00> : vector<1x8x8xf32>
    %205 = tpu.matmul %203, %204, %cst_68 {dimension_numbers = #tpu.dot_dimension_numbers<[2], [2], [1], [1], [0, 0, 0, 1, 1, 1], [0], [0]>} : vector<1x8x8xbf16>, vector<1x8x8xbf16>, vector<1x8x8xf32> -> vector<1x8x8xf32>
    %cst_69 = arith.constant -1.000000e+06 : f32
    "tpu.trace_stop"() : () -> ()
    %206 = vector.shape_cast %156 : vector<1x1x8xi1> to vector<1x1x8xi1>
    %207 = vector.broadcast %206 : vector<1x1x8xi1> to vector<1x8x8xi1>
    %208 = vector.broadcast %cst_69 : f32 to vector<1x8x8xf32>
    %209 = arith.select %207, %205, %208 : vector<1x8x8xi1>, vector<1x8x8xf32>
    %cst_70 = arith.constant dense<0xFF800000> : vector<1x8xf32>
    %210 = vector.multi_reduction <maximumf>, %209, %cst_70 [2] : vector<1x8x8xf32> to vector<1x8xf32>
    %211 = vector.shape_cast %210 : vector<1x8xf32> to vector<1x8x1xf32>
    %212 = vector.broadcast %211 : vector<1x8x1xf32> to vector<1x8x8xf32>
    %213 = arith.subf %209, %212 : vector<1x8x8xf32>
    %214 = math.exp %213 : vector<1x8x8xf32>
    %cst_71 = arith.constant dense<0.000000e+00> : vector<1x8xf32>
    %215 = vector.multi_reduction <add>, %214, %cst_71 [2] : vector<1x8x8xf32> to vector<1x8xf32>
    %216 = vector.shape_cast %215 : vector<1x8xf32> to vector<1x8x1xf32>
    %217 = tpu.reciprocal %216 {approx = true} : vector<1x8x1xf32> -> vector<1x8x1xf32>
    %218 = vector.broadcast %217 : vector<1x8x1xf32> to vector<1x8x8xf32>
    %219 = arith.mulf %214, %218 : vector<1x8x8xf32>
    %220 = arith.truncf %219 : vector<1x8x8xf32> to vector<1x8x8xbf16>
    %221 = vector.extract_strided_slice %143 {offsets = [0, 0, 16], sizes = [1, 8, 8], strides = [1, 1, 1]} : vector<1x8x32xbf16> to vector<1x8x8xbf16>
    "tpu.trace_start"() <{level = 10 : i32, message = "bqk,bkd->bqd"}> : () -> ()
    %cst_72 = arith.constant dense<0.000000e+00> : vector<1x8x8xf32>
    %222 = tpu.matmul %220, %221, %cst_72 {dimension_numbers = #tpu.dot_dimension_numbers<[2], [1], [1], [2], [0, 0, 0, 1, 1, 2], [0], [0]>} : vector<1x8x8xbf16>, vector<1x8x8xbf16>, vector<1x8x8xf32> -> vector<1x8x8xf32>
    "tpu.trace_stop"() : () -> ()
    %223 = vector.shape_cast %222 : vector<1x8x8xf32> to vector<8x8xf32>
    %224 = arith.truncf %223 : vector<8x8xf32> to vector<8x8xbf16>
    %c0_73 = arith.constant 0 : index
    %c16_74 = arith.constant 16 : index
    %225 = vector.load %arg20[%c0_73, %c16_74] : memref<8x32xbf16, #tpu.memory_space<vmem>>, vector<8x8xbf16>
    tpu.vector_store %arg20[%c0_73, %c16_74], %224 {strides = array<i32>} : memref<8x32xbf16, #tpu.memory_space<vmem>>, vector<8x8xbf16>,
    %226 = vector.extract_strided_slice %134 {offsets = [0, 0, 24], sizes = [1, 8, 8], strides = [1, 1, 1]} : vector<1x8x32xbf16> to vector<1x8x8xbf16>
    %227 = vector.extract_strided_slice %140 {offsets = [0, 0, 24], sizes = [1, 8, 8], strides = [1, 1, 1]} : vector<1x8x32xbf16> to vector<1x8x8xbf16>
    "tpu.trace_start"() <{level = 10 : i32, message = "bqd,bkd->bqk"}> : () -> ()
    %cst_75 = arith.constant dense<0.000000e+00> : vector<1x8x8xf32>
    %228 = tpu.matmul %226, %227, %cst_75 {dimension_numbers = #tpu.dot_dimension_numbers<[2], [2], [1], [1], [0, 0, 0, 1, 1, 1], [0], [0]>} : vector<1x8x8xbf16>, vector<1x8x8xbf16>, vector<1x8x8xf32> -> vector<1x8x8xf32>
    %cst_76 = arith.constant -1.000000e+06 : f32
    "tpu.trace_stop"() : () -> ()
    %229 = vector.shape_cast %156 : vector<1x1x8xi1> to vector<1x1x8xi1>
    %230 = vector.broadcast %229 : vector<1x1x8xi1> to vector<1x8x8xi1>
    %231 = vector.broadcast %cst_76 : f32 to vector<1x8x8xf32>
    %232 = arith.select %230, %228, %231 : vector<1x8x8xi1>, vector<1x8x8xf32>
    %cst_77 = arith.constant dense<0xFF800000> : vector<1x8xf32>
    %233 = vector.multi_reduction <maximumf>, %232, %cst_77 [2] : vector<1x8x8xf32> to vector<1x8xf32>
    %234 = vector.shape_cast %233 : vector<1x8xf32> to vector<1x8x1xf32>
    %235 = vector.broadcast %234 : vector<1x8x1xf32> to vector<1x8x8xf32>
    %236 = arith.subf %232, %235 : vector<1x8x8xf32>
    %237 = math.exp %236 : vector<1x8x8xf32>
    %cst_78 = arith.constant dense<0.000000e+00> : vector<1x8xf32>
    %238 = vector.multi_reduction <add>, %237, %cst_78 [2] : vector<1x8x8xf32> to vector<1x8xf32>
    %239 = vector.shape_cast %238 : vector<1x8xf32> to vector<1x8x1xf32>
    %240 = tpu.reciprocal %239 {approx = true} : vector<1x8x1xf32> -> vector<1x8x1xf32>
    %241 = vector.broadcast %240 : vector<1x8x1xf32> to vector<1x8x8xf32>
    %242 = arith.mulf %237, %241 : vector<1x8x8xf32>
    %243 = arith.truncf %242 : vector<1x8x8xf32> to vector<1x8x8xbf16>
    %244 = vector.extract_strided_slice %143 {offsets = [0, 0, 24], sizes = [1, 8, 8], strides = [1, 1, 1]} : vector<1x8x32xbf16> to vector<1x8x8xbf16>
    "tpu.trace_start"() <{level = 10 : i32, message = "bqk,bkd->bqd"}> : () -> ()
    %cst_79 = arith.constant dense<0.000000e+00> : vector<1x8x8xf32>
    %245 = tpu.matmul %243, %244, %cst_79 {dimension_numbers = #tpu.dot_dimension_numbers<[2], [1], [1], [2], [0, 0, 0, 1, 1, 2], [0], [0]>} : vector<1x8x8xbf16>, vector<1x8x8xbf16>, vector<1x8x8xf32> -> vector<1x8x8xf32>
    "tpu.trace_stop"() : () -> ()
    %246 = vector.shape_cast %245 : vector<1x8x8xf32> to vector<8x8xf32>
    %247 = arith.truncf %246 : vector<8x8xf32> to vector<8x8xbf16>
    %c0_80 = arith.constant 0 : index
    %c24_81 = arith.constant 24 : index
    %248 = vector.load %arg20[%c0_80, %c24_81] : memref<8x32xbf16, #tpu.memory_space<vmem>>, vector<8x8xbf16>
    tpu.vector_store %arg20[%c0_80, %c24_81], %247 {strides = array<i32>} : memref<8x32xbf16, #tpu.memory_space<vmem>>, vector<8x8xbf16>,
    %c0_82 = arith.constant 0 : index
    %c0_83 = arith.constant 0 : index
    %249 = vector.load %arg20[%c0_82, %c0_83] : memref<8x32xbf16, #tpu.memory_space<vmem>>, vector<8x32xbf16>
    %c0_84 = arith.constant 0 : index
    %c0_85 = arith.constant 0 : index
    %250 = vector.load %arg8[%c0_84, %c0_85] : memref<32x32xbf16, #tpu.memory_space<vmem>>, vector<32x32xbf16>
    %cst_86 = arith.constant dense<0.000000e+00> : vector<8x32xf32>
    %251 = tpu.matmul %249, %250, %cst_86 {dimension_numbers = #tpu.dot_dimension_numbers<[1], [0], [0], [1], [0, 0, 1, 1], [], []>} : vector<8x32xbf16>, vector<32x32xbf16>, vector<8x32xf32> -> vector<8x32xf32>
    %252 = arith.addf %251, %127 : vector<8x32xf32>
    %c0_87 = arith.constant 0 : index
    %c0_88 = arith.constant 0 : index
    %253 = vector.load %arg15[%c0_87, %c0_88] : memref<1x32xf32, #tpu.memory_space<vmem>>, vector<1x32xf32>
    %c0_89 = arith.constant 0 : index
    %c0_90 = arith.constant 0 : index
    %254 = vector.load %arg16[%c0_89, %c0_90] : memref<1x32xf32, #tpu.memory_space<vmem>>, vector<1x32xf32>
    %cst_91 = arith.constant dense<0.000000e+00> : vector<8xf32>
    %255 = vector.multi_reduction <add>, %252, %cst_91 [1] : vector<8x32xf32> to vector<8xf32>
    %256 = vector.shape_cast %255 : vector<8xf32> to vector<8x1xf32>
    %cst_92 = arith.constant 3.200000e+01 : f32
    %257 = vector.broadcast %cst_92 : f32 to vector<8x1xf32>
    %258 = arith.divf %256, %257 : vector<8x1xf32>
    %259 = vector.broadcast %258 : vector<8x1xf32> to vector<8x32xf32>
    %260 = arith.subf %252, %259 : vector<8x32xf32>
    %261 = arith.mulf %260, %260 : vector<8x32xf32>
    %cst_93 = arith.constant dense<0.000000e+00> : vector<8xf32>
    %262 = vector.multi_reduction <add>, %261, %cst_93 [1] : vector<8x32xf32> to vector<8xf32>
    %263 = vector.shape_cast %262 : vector<8xf32> to vector<8x1xf32>
    %cst_94 = arith.constant 3.200000e+01 : f32
    %264 = vector.broadcast %cst_94 : f32 to vector<8x1xf32>
    %265 = arith.divf %263, %264 : vector<8x1xf32>
    %cst_95 = arith.constant 9.99999974E-6 : f32
    %266 = vector.broadcast %cst_95 : f32 to vector<8x1xf32>
    %267 = arith.addf %265, %266 : vector<8x1xf32>
    %268 = math.rsqrt %267 : vector<8x1xf32>
    %269 = vector.broadcast %268 : vector<8x1xf32> to vector<8x32xf32>
    %270 = arith.mulf %260, %269 : vector<8x32xf32>
    %271 = vector.broadcast %253 : vector<1x32xf32> to vector<8x32xf32>
    %272 = arith.mulf %270, %271 : vector<8x32xf32>
    %273 = vector.broadcast %254 : vector<1x32xf32> to vector<8x32xf32>
    %274 = arith.addf %272, %273 : vector<8x32xf32>
    %275 = arith.truncf %274 : vector<8x32xf32> to vector<8x32xbf16>
    %c0_96 = arith.constant 0 : index
    %c0_97 = arith.constant 0 : index
    %276 = vector.load %arg9[%c0_96, %c0_97] : memref<32x64xbf16, #tpu.memory_space<vmem>>, vector<32x64xbf16>
    %cst_98 = arith.constant dense<0.000000e+00> : vector<8x64xf32>
    %277 = tpu.matmul %275, %276, %cst_98 {dimension_numbers = #tpu.dot_dimension_numbers<[1], [0], [0], [1], [0, 0, 1, 1], [], []>} : vector<8x32xbf16>, vector<32x64xbf16>, vector<8x64xf32> -> vector<8x64xf32>
    %c0_99 = arith.constant 0 : index
    %c0_100 = arith.constant 0 : index
    %278 = vector.load %arg10[%c0_99, %c0_100] : memref<1x64xf32, #tpu.memory_space<vmem>>, vector<1x64xf32>
    %279 = vector.broadcast %278 : vector<1x64xf32> to vector<8x64xf32>
    %280 = arith.addf %277, %279 : vector<8x64xf32>
    %cst_101 = arith.constant 0.000000e+00 : f32
    %281 = vector.broadcast %cst_101 : f32 to vector<8x64xf32>
    %282 = arith.maximumf %280, %281 : vector<8x64xf32>
    %283 = arith.truncf %282 : vector<8x64xf32> to vector<8x64xbf16>
    %c0_102 = arith.constant 0 : index
    %c0_103 = arith.constant 0 : index
    %284 = vector.load %arg11[%c0_102, %c0_103] : memref<64x32xbf16, #tpu.memory_space<vmem>>, vector<64x32xbf16>
    %cst_104 = arith.constant dense<0.000000e+00> : vector<8x32xf32>
    %285 = tpu.matmul %283, %284, %cst_104 {dimension_numbers = #tpu.dot_dimension_numbers<[1], [0], [0], [1], [0, 0, 1, 1], [], []>} : vector<8x64xbf16>, vector<64x32xbf16>, vector<8x32xf32> -> vector<8x32xf32>
    %c0_105 = arith.constant 0 : index
    %c0_106 = arith.constant 0 : index
    %286 = vector.load %arg12[%c0_105, %c0_106] : memref<1x32xf32, #tpu.memory_space<vmem>>, vector<1x32xf32>
    %287 = vector.broadcast %286 : vector<1x32xf32> to vector<8x32xf32>
    %288 = arith.addf %285, %287 : vector<8x32xf32>
    %289 = arith.addf %288, %274 : vector<8x32xf32>
    %c0_107 = arith.constant 0 : index
    %c0_108 = arith.constant 0 : index
    %290 = vector.load %arg17[%c0_107, %c0_108] : memref<1x32xf32, #tpu.memory_space<vmem>>, vector<1x32xf32>
    %c0_109 = arith.constant 0 : index
    %c0_110 = arith.constant 0 : index
    %291 = vector.load %arg18[%c0_109, %c0_110] : memref<1x32xf32, #tpu.memory_space<vmem>>, vector<1x32xf32>
    %cst_111 = arith.constant dense<0.000000e+00> : vector<8xf32>
    %292 = vector.multi_reduction <add>, %289, %cst_111 [1] : vector<8x32xf32> to vector<8xf32>
    %293 = vector.shape_cast %292 : vector<8xf32> to vector<8x1xf32>
    %cst_112 = arith.constant 3.200000e+01 : f32
    %294 = vector.broadcast %cst_112 : f32 to vector<8x1xf32>
    %295 = arith.divf %293, %294 : vector<8x1xf32>
    %296 = vector.broadcast %295 : vector<8x1xf32> to vector<8x32xf32>
    %297 = arith.subf %289, %296 : vector<8x32xf32>
    %298 = arith.mulf %297, %297 : vector<8x32xf32>
    %cst_113 = arith.constant dense<0.000000e+00> : vector<8xf32>
    %299 = vector.multi_reduction <add>, %298, %cst_113 [1] : vector<8x32xf32> to vector<8xf32>
    %300 = vector.shape_cast %299 : vector<8xf32> to vector<8x1xf32>
    %cst_114 = arith.constant 3.200000e+01 : f32
    %301 = vector.broadcast %cst_114 : f32 to vector<8x1xf32>
    %302 = arith.divf %300, %301 : vector<8x1xf32>
    %cst_115 = arith.constant 9.99999974E-6 : f32
    %303 = vector.broadcast %cst_115 : f32 to vector<8x1xf32>
    %304 = arith.addf %302, %303 : vector<8x1xf32>
    %305 = math.rsqrt %304 : vector<8x1xf32>
    %306 = vector.broadcast %305 : vector<8x1xf32> to vector<8x32xf32>
    %307 = arith.mulf %297, %306 : vector<8x32xf32>
    %308 = vector.broadcast %290 : vector<1x32xf32> to vector<8x32xf32>
    %309 = arith.mulf %307, %308 : vector<8x32xf32>
    %310 = vector.broadcast %291 : vector<1x32xf32> to vector<8x32xf32>
    %311 = arith.addf %309, %310 : vector<8x32xf32>
    %c0_116 = arith.constant 0 : index
    %c0_117 = arith.constant 0 : index
    %312 = vector.load %arg19[%c0_116, %c0_117] : memref<8x32xf32, #tpu.memory_space<vmem>>, vector<8x32xf32>
    tpu.vector_store %arg19[%c0_116, %c0_117], %311 {strides = array<i32>} : memref<8x32xf32, #tpu.memory_space<vmem>>, vector<8x32xf32>,
    return
  }
  func.func @transform_0(%arg0: i32, %arg1: memref<2xi32, #tpu.memory_space<smem>>) -> (i32, i32) {
    %c0_i32 = arith.constant 0 : i32
    %c0_i32_0 = arith.constant 0 : i32
    return %arg0, %c0_i32 : i32, i32
  }
  func.func @transform_1(%arg0: i32, %arg1: memref<2xi32, #tpu.memory_space<smem>>) -> (i32, i32) {
    %c0_i32 = arith.constant 0 : i32
    %c0_i32_0 = arith.constant 0 : i32
    return %arg0, %c0_i32 : i32, i32
  }
  func.func @transform_2(%arg0: i32, %arg1: memref<2xi32, #tpu.memory_space<smem>>) -> (i32, i32) {
    %c0_i32 = arith.constant 0 : i32
    %c0_i32_0 = arith.constant 0 : i32
    %c0_i32_1 = arith.constant 0 : i32
    return %c0_i32, %c0_i32_0 : i32, i32
  }
  func.func @transform_3(%arg0: i32, %arg1: memref<2xi32, #tpu.memory_space<smem>>) -> (i32, i32) {
    %c0_i32 = arith.constant 0 : i32
    %c0_i32_0 = arith.constant 0 : i32
    %c0_i32_1 = arith.constant 0 : i32
    return %c0_i32, %c0_i32_0 : i32, i32
  }
  func.func @transform_4(%arg0: i32, %arg1: memref<2xi32, #tpu.memory_space<smem>>) -> (i32, i32) {
    %c0_i32 = arith.constant 0 : i32
    %c0_i32_0 = arith.constant 0 : i32
    %c0_i32_1 = arith.constant 0 : i32
    return %c0_i32, %c0_i32_0 : i32, i32
  }
  func.func @transform_5(%arg0: i32, %arg1: memref<2xi32, #tpu.memory_space<smem>>) -> (i32, i32) {
    %c0_i32 = arith.constant 0 : i32
    %c0_i32_0 = arith.constant 0 : i32
    %c0_i32_1 = arith.constant 0 : i32
    return %c0_i32, %c0_i32_0 : i32, i32
  }
  func.func @transform_6(%arg0: i32, %arg1: memref<2xi32, #tpu.memory_space<smem>>) -> (i32, i32) {
    %c0_i32 = arith.constant 0 : i32
    %c0_i32_0 = arith.constant 0 : i32
    %c0_i32_1 = arith.constant 0 : i32
    return %c0_i32, %c0_i32_0 : i32, i32
  }
  func.func @transform_7(%arg0: i32, %arg1: memref<2xi32, #tpu.memory_space<smem>>) -> (i32, i32) {
    %c0_i32 = arith.constant 0 : i32
    %c0_i32_0 = arith.constant 0 : i32
    %c0_i32_1 = arith.constant 0 : i32
    return %c0_i32, %c0_i32_0 : i32, i32
  }
  func.func @transform_8(%arg0: i32, %arg1: memref<2xi32, #tpu.memory_space<smem>>) -> (i32, i32) {
    %c0_i32 = arith.constant 0 : i32
    %c0_i32_0 = arith.constant 0 : i32
    %c0_i32_1 = arith.constant 0 : i32
    return %c0_i32, %c0_i32_0 : i32, i32
  }
  func.func @transform_9(%arg0: i32, %arg1: memref<2xi32, #tpu.memory_space<smem>>) -> (i32, i32) {
    %c0_i32 = arith.constant 0 : i32
    %c0_i32_0 = arith.constant 0 : i32
    %c0_i32_1 = arith.constant 0 : i32
    return %c0_i32, %c0_i32_0 : i32, i32
  }
  func.func @transform_10(%arg0: i32, %arg1: memref<2xi32, #tpu.memory_space<smem>>) -> (i32, i32) {
    %c0_i32 = arith.constant 0 : i32
    %c0_i32_0 = arith.constant 0 : i32
    %c0_i32_1 = arith.constant 0 : i32
    return %c0_i32, %c0_i32_0 : i32, i32
  }
  func.func @transform_11(%arg0: i32, %arg1: memref<2xi32, #tpu.memory_space<smem>>) -> (i32, i32) {
    %c0_i32 = arith.constant 0 : i32
    %c0_i32_0 = arith.constant 0 : i32
    %c0_i32_1 = arith.constant 0 : i32
    return %c0_i32, %c0_i32_0 : i32, i32
  }
  func.func @transform_12(%arg0: i32, %arg1: memref<2xi32, #tpu.memory_space<smem>>) -> (i32, i32) {
    %c0_i32 = arith.constant 0 : i32
    %c0_i32_0 = arith.constant 0 : i32
    %c0_i32_1 = arith.constant 0 : i32
    return %c0_i32, %c0_i32_0 : i32, i32
  }
  func.func @transform_13(%arg0: i32, %arg1: memref<2xi32, #tpu.memory_space<smem>>) -> (i32, i32) {
    %c0_i32 = arith.constant 0 : i32
    %c0_i32_0 = arith.constant 0 : i32
    %c0_i32_1 = arith.constant 0 : i32
    return %c0_i32, %c0_i32_0 : i32, i32
  }
  func.func @transform_14(%arg0: i32, %arg1: memref<2xi32, #tpu.memory_space<smem>>) -> (i32, i32) {
    %c0_i32 = arith.constant 0 : i32
    %c0_i32_0 = arith.constant 0 : i32
    %c0_i32_1 = arith.constant 0 : i32
    return %c0_i32, %c0_i32_0 : i32, i32
  }
  func.func @transform_15(%arg0: i32, %arg1: memref<2xi32, #tpu.memory_space<smem>>) -> (i32, i32) {
    %c0_i32 = arith.constant 0 : i32
    %c0_i32_0 = arith.constant 0 : i32
    %c0_i32_1 = arith.constant 0 : i32
    return %c0_i32, %c0_i32_0 : i32, i32
  }
  func.func @transform_16(%arg0: i32, %arg1: memref<2xi32, #tpu.memory_space<smem>>) -> (i32, i32) {
    %c0_i32 = arith.constant 0 : i32
    %c0_i32_0 = arith.constant 0 : i32
    %c0_i32_1 = arith.constant 0 : i32
    return %c0_i32, %c0_i32_0 : i32, i32
  }
  func.func @transform_17(%arg0: i32, %arg1: memref<2xi32, #tpu.memory_space<smem>>) -> (i32, i32) {
    %c0_i32 = arith.constant 0 : i32
    %c0_i32_0 = arith.constant 0 : i32
    return %arg0, %c0_i32 : i32, i32
  }
}

</mosaic_0001>

<llo_original>
// kernel: tpu_custom_call.1
$region0: #{tpu_custom_call.1}
  #allocation0 [shape = 'u32[]', space=smem, size = 0x4, offset = 0x4, fixed_abs, tag = 'smem constant byte address 0x4 - core index']
  #allocation1 [shape = 'u32[72,128]{1,0:T(1,128)}', space=vmem, size = 0x9000, scoped, tag = 'internal scratch']
  #allocation2 [shape = 'bf16[8,32]{1,0:T(8,128)(2,1)}', space=vmem, size = 0x800, scoped, tag = 'scratch operand']
  #allocation3 [shape = 's32[1]{0}', space=sflag, size = 0x4, scoped, tag = 'scoped memory for tpu_custom_call.1']
  #allocation4 [shape = 'u8[512]{0}', space=smem, size = 0x200, scoped, tag = 'prefetched SMEM operand 0']
  %s0 = inlined_call_operand.hbm [shape: s32[2], index: 0, kind: input, shape index: {}]
  %s1 = inlined_call_operand.vmem [shape: f32[16,32], index: 1, kind: input, shape index: {}]
  %s2 = inlined_call_operand.hbm [shape: bf16[16,32], index: 2, kind: input, shape index: {}]
  %s3 = inlined_call_operand.vmem [shape: bf16[32,96], index: 3, kind: input, shape index: {}]
  %s4 = inlined_call_operand.vmem [shape: bf16[32,32], index: 4, kind: input, shape index: {}]
  %s5 = inlined_call_operand.hbm [shape: bf16[32,32], index: 5, kind: input, shape index: {}]
  %s6 = inlined_call_operand.hbm [shape: bf16[32,64], index: 6, kind: input, shape index: {}]
  %s7 = inlined_call_operand.hbm [shape: bf16[32,32], index: 7, kind: input, shape index: {}]
  %s8 = inlined_call_operand.hbm [shape: bf16[32,64], index: 8, kind: input, shape index: {}]
  %s9 = inlined_call_operand.vmem [shape: f32[1,64], index: 9, kind: input, shape index: {}]
  %s10 = inlined_call_operand.vmem [shape: bf16[64,32], index: 10, kind: input, shape index: {}]
  %s11 = inlined_call_operand.vmem [shape: f32[1,32], index: 11, kind: input, shape index: {}]
  %s12 = inlined_call_operand.vmem [shape: f32[1,32], index: 12, kind: input, shape index: {}]
  %s13 = inlined_call_operand.vmem [shape: f32[1,32], index: 13, kind: input, shape index: {}]
  %s14 = inlined_call_operand.vmem [shape: f32[1,32], index: 14, kind: input, shape index: {}]
  %s15 = inlined_call_operand.vmem [shape: f32[1,32], index: 15, kind: input, shape index: {}]
  %s16 = inlined_call_operand.vmem [shape: f32[1,32], index: 16, kind: input, shape index: {}]
  %s17 = inlined_call_operand.vmem [shape: f32[1,32], index: 17, kind: input, shape index: {}]
  %s18 = inlined_call_operand.hbm [shape: f32[16,32], index: 18, kind: output, shape index: {}]
  %s19 = sld [smem:[#allocation0]]
  $region121: #{tpu_custom_call.1} parent=0
    _
  %s21 = ssub.s32 1, %s19
  %s22 = scalar_select 0, %s21, %s19
  %s24 = sshll.u32 %s0, 4
  %s25 = int_to_ptr.hbm [resolvable:$true] %s24
  %27 = dma.hbm_to_smem %s25, 16, [#allocation4], [#allocation3]
  %29 = dma.done [#allocation3], 16
  %30 = sfence
  $region1: #{tpu_custom_call.1} parent=0
    #allocation5 [shape = 'u8[4096]{0}', space=vmem, size = 0x1000, scoped, tag = 'input window, operand 2']
    #allocation6 [shape = 's32[2]{0}', space=sflag, size = 0x8, scoped, tag = 'scoped memory for tpu_custom_call.1']
    #allocation7 [shape = 's32[2]{0}', space=sflag, size = 0x8, scoped, tag = 'scoped memory for tpu_custom_call.1']
    #allocation8 [shape = 'u8[8192]{0}', space=vmem, size = 0x2000, scoped, tag = 'input window, operand 5, single buffered']
    #allocation9 [shape = 's32[1]{0}', space=sflag, size = 0x4, scoped, tag = 'scoped memory for tpu_custom_call.1']
    #allocation10 [shape = 'u8[8192]{0}', space=vmem, size = 0x2000, scoped, tag = 'input window, operand 6, single buffered']
    #allocation11 [shape = 'u8[8192]{0}', space=vmem, size = 0x2000, scoped, tag = 'input window, operand 7, single buffered']
    #allocation12 [shape = 's32[1]{0}', space=sflag, size = 0x4, scoped, tag = 'scoped memory for tpu_custom_call.1']
    #allocation13 [shape = 'u8[8192]{0}', space=vmem, size = 0x2000, scoped, tag = 'input window, operand 8, single buffered']
    #allocation14 [shape = 'u8[8192]{0}', space=vmem, size = 0x2000, scoped, tag = 'output window, operand 0']
    %31 = vsyncpa [#allocation6], 0
    %s32 = scalar_lea.sflag [#allocation6], 1
    %33 = vsyncpa %s32, 0
    %34 = vsyncpa [#allocation9], 0
    %35 = vsyncpa [#allocation12], 0
    %36 = vsyncpa [#allocation7], 0
    %s37 = scalar_lea.sflag [#allocation7], 1
    %38 = vsyncpa %s37, 0
    loop: start=0, step=1, limit=4
    $region2: #{tpu_custom_call.1} parent=1 // loop_pre_header
      _
    $region3: #{tpu_custom_call.1} parent=1 // loop_header
      %s40 = sphi 0, %s44
      %p41 = scmp.ge.s32.totalorder %s40, 4
      %s50 = sphi 0, %s52
      %s53 = sphi 0, %s50
      %s54 = sphi 0, %s53
      %s70 = sphi 0, %s54
      %s76 = sphi 0, %s78
      %s79 = sphi 0, %s76
      %s80 = sphi 0, %s79
      %s96 = sphi 0, %s80
      %s100 = sphi 0, %s100
      %s102 = sphi 0, %s100
      %s103 = sphi 0, %s102
      %s117 = sphi 0, %s103
      %s121 = sphi 0, %s121
      %s123 = sphi 0, %s121
      %s124 = sphi 0, %s123
      %s138 = sphi 0, %s124
      %s142 = sphi 0, %s142
      %s144 = sphi 0, %s142
      %s145 = sphi 0, %s144
      %s159 = sphi 0, %s145
      %s163 = sphi 0, %s163
      %s165 = sphi 0, %s163
      %s166 = sphi 0, %s165
      %s180 = sphi 0, %s166
      %s184 = sphi 0, %s184
      %s186 = sphi 0, %s184
      %s187 = sphi 0, %s186
      %s201 = sphi 0, %s187
      %s205 = sphi 0, %s205
      %s207 = sphi 0, %s205
      %s208 = sphi 0, %s207
      %s222 = sphi 0, %s208
      %s226 = sphi 0, %s226
      %s228 = sphi 0, %s226
      %s229 = sphi 0, %s228
      %s243 = sphi 0, %s229
      %s247 = sphi 0, %s247
      %s249 = sphi 0, %s247
      %s250 = sphi 0, %s249
      %s264 = sphi 0, %s250
      %s268 = sphi 0, %s268
      %s270 = sphi 0, %s268
      %s271 = sphi 0, %s270
      %s285 = sphi 0, %s271
      %s289 = sphi 0, %s289
      %s291 = sphi 0, %s289
      %s292 = sphi 0, %s291
      %s306 = sphi 0, %s292
      %s310 = sphi 0, %s310
      %s312 = sphi 0, %s310
      %s313 = sphi 0, %s312
      %s327 = sphi 0, %s313
      %s331 = sphi 0, %s331
      %s333 = sphi 0, %s331
      %s334 = sphi 0, %s333
      %s348 = sphi 0, %s334
      %s352 = sphi 0, %s352
      %s354 = sphi 0, %s352
      %s355 = sphi 0, %s354
      %s369 = sphi 0, %s355
      %s373 = sphi 0, %s373
      %s375 = sphi 0, %s373
      %s376 = sphi 0, %s375
      %s390 = sphi 0, %s376
      %s394 = sphi 0, %s394
      %s396 = sphi 0, %s394
      %s397 = sphi 0, %s396
      %s411 = sphi 0, %s397
      %s417 = sphi 0, %s419
      %s420 = sphi 0, %s417
      %s421 = sphi 0, %s420
      %s437 = sphi 0, %s421
    $region4: #{tpu_custom_call.1} parent=1 // loop_header_branch
      %43 = sbr.rel (%p41) target = $region8
    $region5: #{tpu_custom_call.1} parent=1 // loop_body
      %s45 = ssub.s32 %s40, 1
      %s46 = ssub.s32 %s40, 2
      %s47 = sadd.s32 %s40, 1
      %s48 = ssub.s32 %s40, %s47
      %p49 = scmp.eq.s32.totalorder %s48, 0
      %s51 = sadd.s32 %s50, 1
      %s52 = scalar_select %p49, %s50, %s51
      %p55 = pneg %p49
      %p56 = scmp.eq.s32.totalorder %s40, 1
      %p57 = por %p55, %p56
      %p58 = scmp.ne.s32.totalorder %s50, %s53
      %p59 = scmp.eq.s32.totalorder %s40, 0
      %p60 = por %p58, %p59
      %p61 = scmp.ne.s32.totalorder %s50, %s53
      %p62 = scmp.eq.s32.totalorder %s45, 1
      %p63 = por %p61, %p62
      %p64 = scmp.ne.s32.totalorder %s53, %s54
      %p65 = scmp.eq.s32.totalorder %s45, 0
      %p66 = por %p64, %p65
      %p67 = scmp.ne.s32.totalorder %s53, %s54
      %p68 = scmp.eq.s32.totalorder %s46, 1
      %p69 = por %p67, %p68
      %p71 = scmp.ne.s32.totalorder %s54, %s70
      %p72 = scmp.eq.s32.totalorder %s46, 0
      %p73 = por %p71, %p72
      %s74 = ssub.s32 %s40, %s47
      %p75 = scmp.eq.s32.totalorder %s74, 0
      %s77 = sadd.s32 %s76, 1
      %s78 = scalar_select %p75, %s76, %s77
      %p81 = pneg %p75
      %p82 = scmp.eq.s32.totalorder %s40, 1
      %p83 = por %p81, %p82
      %p84 = scmp.ne.s32.totalorder %s76, %s79
      %p85 = scmp.eq.s32.totalorder %s40, 0
      %p86 = por %p84, %p85
      %p87 = scmp.ne.s32.totalorder %s76, %s79
      %p88 = scmp.eq.s32.totalorder %s45, 1
      %p89 = por %p87, %p88
      %p90 = scmp.ne.s32.totalorder %s79, %s80
      %p91 = scmp.eq.s32.totalorder %s45, 0
      %p92 = por %p90, %p91
      %p93 = scmp.ne.s32.totalorder %s79, %s80
      %p94 = scmp.eq.s32.totalorder %s46, 1
      %p95 = por %p93, %p94
      %p97 = scmp.ne.s32.totalorder %s80, %s96
      %p98 = scmp.eq.s32.totalorder %s46, 0
      %p99 = por %p97, %p98
      %s101 = sadd.s32 %s100, 1
      %p104 = scmp.eq.s32.totalorder %s40, 1
      %p105 = scmp.ne.s32.totalorder %s100, %s102
      %p106 = scmp.eq.s32.totalorder %s40, 0
      %p107 = por %p105, %p106
      %p108 = scmp.ne.s32.totalorder %s100, %s102
      %p109 = scmp.eq.s32.totalorder %s45, 1
      %p110 = por %p108, %p109
      %p111 = scmp.ne.s32.totalorder %s102, %s103
      %p112 = scmp.eq.s32.totalorder %s45, 0
      %p113 = por %p111, %p112
      %p114 = scmp.ne.s32.totalorder %s102, %s103
      %p115 = scmp.eq.s32.totalorder %s46, 1
      %p116 = por %p114, %p115
      %p118 = scmp.ne.s32.totalorder %s103, %s117
      %p119 = scmp.eq.s32.totalorder %s46, 0
      %p120 = por %p118, %p119
      %s122 = sadd.s32 %s121, 1
      %p125 = scmp.eq.s32.totalorder %s40, 1
      %p126 = scmp.ne.s32.totalorder %s121, %s123
      %p127 = scmp.eq.s32.totalorder %s40, 0
      %p128 = por %p126, %p127
      %p129 = scmp.ne.s32.totalorder %s121, %s123
      %p130 = scmp.eq.s32.totalorder %s45, 1
      %p131 = por %p129, %p130
      %p132 = scmp.ne.s32.totalorder %s123, %s124
      %p133 = scmp.eq.s32.totalorder %s45, 0
      %p134 = por %p132, %p133
      %p135 = scmp.ne.s32.totalorder %s123, %s124
      %p136 = scmp.eq.s32.totalorder %s46, 1
      %p137 = por %p135, %p136
      %p139 = scmp.ne.s32.totalorder %s124, %s138
      %p140 = scmp.eq.s32.totalorder %s46, 0
      %p141 = por %p139, %p140
      %s143 = sadd.s32 %s142, 1
      %p146 = scmp.eq.s32.totalorder %s40, 1
      %p147 = scmp.ne.s32.totalorder %s142, %s144
      %p148 = scmp.eq.s32.totalorder %s40, 0
      %p149 = por %p147, %p148
      %p150 = scmp.ne.s32.totalorder %s142, %s144
      %p151 = scmp.eq.s32.totalorder %s45, 1
      %p152 = por %p150, %p151
      %p153 = scmp.ne.s32.totalorder %s144, %s145
      %p154 = scmp.eq.s32.totalorder %s45, 0
      %p155 = por %p153, %p154
      %p156 = scmp.ne.s32.totalorder %s144, %s145
      %p157 = scmp.eq.s32.totalorder %s46, 1
      %p158 = por %p156, %p157
      %p160 = scmp.ne.s32.totalorder %s145, %s159
      %p161 = scmp.eq.s32.totalorder %s46, 0
      %p162 = por %p160, %p161
      %s164 = sadd.s32 %s163, 1
      %p167 = scmp.eq.s32.totalorder %s40, 1
      %p168 = scmp.ne.s32.totalorder %s163, %s165
      %p169 = scmp.eq.s32.totalorder %s40, 0
      %p170 = por %p168, %p169
      %p171 = scmp.ne.s32.totalorder %s163, %s165
      %p172 = scmp.eq.s32.totalorder %s45, 1
      %p173 = por %p171, %p172
      %p174 = scmp.ne.s32.totalorder %s165, %s166
      %p175 = scmp.eq.s32.totalorder %s45, 0
      %p176 = por %p174, %p175
      %p177 = scmp.ne.s32.totalorder %s165, %s166
      %p178 = scmp.eq.s32.totalorder %s46, 1
      %p179 = por %p177, %p178
      %p181 = scmp.ne.s32.totalorder %s166, %s180
      %p182 = scmp.eq.s32.totalorder %s46, 0
      %p183 = por %p181, %p182
      %s185 = sadd.s32 %s184, 1
      %p188 = scmp.eq.s32.totalorder %s40, 1
      %p189 = scmp.ne.s32.totalorder %s184, %s186
      %p190 = scmp.eq.s32.totalorder %s40, 0
      %p191 = por %p189, %p190
      %p192 = scmp.ne.s32.totalorder %s184, %s186
      %p193 = scmp.eq.s32.totalorder %s45, 1
      %p194 = por %p192, %p193
      %p195 = scmp.ne.s32.totalorder %s186, %s187
      %p196 = scmp.eq.s32.totalorder %s45, 0
      %p197 = por %p195, %p196
      %p198 = scmp.ne.s32.totalorder %s186, %s187
      %p199 = scmp.eq.s32.totalorder %s46, 1
      %p200 = por %p198, %p199
      %p202 = scmp.ne.s32.totalorder %s187, %s201
      %p203 = scmp.eq.s32.totalorder %s46, 0
      %p204 = por %p202, %p203
      %s206 = sadd.s32 %s205, 1
      %p209 = scmp.eq.s32.totalorder %s40, 1
      %p210 = scmp.ne.s32.totalorder %s205, %s207
      %p211 = scmp.eq.s32.totalorder %s40, 0
      %p212 = por %p210, %p211
      %p213 = scmp.ne.s32.totalorder %s205, %s207
      %p214 = scmp.eq.s32.totalorder %s45, 1
      %p215 = por %p213, %p214
      %p216 = scmp.ne.s32.totalorder %s207, %s208
      %p217 = scmp.eq.s32.totalorder %s45, 0
      %p218 = por %p216, %p217
      %p219 = scmp.ne.s32.totalorder %s207, %s208
      %p220 = scmp.eq.s32.totalorder %s46, 1
      %p221 = por %p219, %p220
      %p223 = scmp.ne.s32.totalorder %s208, %s222
      %p224 = scmp.eq.s32.totalorder %s46, 0
      %p225 = por %p223, %p224
      %s227 = sadd.s32 %s226, 1
      %p230 = scmp.eq.s32.totalorder %s40, 1
      %p231 = scmp.ne.s32.totalorder %s226, %s228
      %p232 = scmp.eq.s32.totalorder %s40, 0
      %p233 = por %p231, %p232
      %p234 = scmp.ne.s32.totalorder %s226, %s228
      %p235 = scmp.eq.s32.totalorder %s45, 1
      %p236 = por %p234, %p235
      %p237 = scmp.ne.s32.totalorder %s228, %s229
      %p238 = scmp.eq.s32.totalorder %s45, 0
      %p239 = por %p237, %p238
      %p240 = scmp.ne.s32.totalorder %s228, %s229
      %p241 = scmp.eq.s32.totalorder %s46, 1
      %p242 = por %p240, %p241
      %p244 = scmp.ne.s32.totalorder %s229, %s243
      %p245 = scmp.eq.s32.totalorder %s46, 0
      %p246 = por %p244, %p245
      %s248 = sadd.s32 %s247, 1
      %p251 = scmp.eq.s32.totalorder %s40, 1
      %p252 = scmp.ne.s32.totalorder %s247, %s249
      %p253 = scmp.eq.s32.totalorder %s40, 0
      %p254 = por %p252, %p253
      %p255 = scmp.ne.s32.totalorder %s247, %s249
      %p256 = scmp.eq.s32.totalorder %s45, 1
      %p257 = por %p255, %p256
      %p258 = scmp.ne.s32.totalorder %s249, %s250
      %p259 = scmp.eq.s32.totalorder %s45, 0
      %p260 = por %p258, %p259
      %p261 = scmp.ne.s32.totalorder %s249, %s250
      %p262 = scmp.eq.s32.totalorder %s46, 1
      %p263 = por %p261, %p262
      %p265 = scmp.ne.s32.totalorder %s250, %s264
      %p266 = scmp.eq.s32.totalorder %s46, 0
      %p267 = por %p265, %p266
      %s269 = sadd.s32 %s268, 1
      %p272 = scmp.eq.s32.totalorder %s40, 1
      %p273 = scmp.ne.s32.totalorder %s268, %s270
      %p274 = scmp.eq.s32.totalorder %s40, 0
      %p275 = por %p273, %p274
      %p276 = scmp.ne.s32.totalorder %s268, %s270
      %p277 = scmp.eq.s32.totalorder %s45, 1
      %p278 = por %p276, %p277
      %p279 = scmp.ne.s32.totalorder %s270, %s271
      %p280 = scmp.eq.s32.totalorder %s45, 0
      %p281 = por %p279, %p280
      %p282 = scmp.ne.s32.totalorder %s270, %s271
      %p283 = scmp.eq.s32.totalorder %s46, 1
      %p284 = por %p282, %p283
      %p286 = scmp.ne.s32.totalorder %s271, %s285
      %p287 = scmp.eq.s32.totalorder %s46, 0
      %p288 = por %p286, %p287
      %s290 = sadd.s32 %s289, 1
      %p293 = scmp.eq.s32.totalorder %s40, 1
      %p294 = scmp.ne.s32.totalorder %s289, %s291
      %p295 = scmp.eq.s32.totalorder %s40, 0
      %p296 = por %p294, %p295
      %p297 = scmp.ne.s32.totalorder %s289, %s291
      %p298 = scmp.eq.s32.totalorder %s45, 1
      %p299 = por %p297, %p298
      %p300 = scmp.ne.s32.totalorder %s291, %s292
      %p301 = scmp.eq.s32.totalorder %s45, 0
      %p302 = por %p300, %p301
      %p303 = scmp.ne.s32.totalorder %s291, %s292
      %p304 = scmp.eq.s32.totalorder %s46, 1
      %p305 = por %p303, %p304
      %p307 = scmp.ne.s32.totalorder %s292, %s306
      %p308 = scmp.eq.s32.totalorder %s46, 0
      %p309 = por %p307, %p308
      %s311 = sadd.s32 %s310, 1
      %p314 = scmp.eq.s32.totalorder %s40, 1
      %p315 = scmp.ne.s32.totalorder %s310, %s312
      %p316 = scmp.eq.s32.totalorder %s40, 0
      %p317 = por %p315, %p316
      %p318 = scmp.ne.s32.totalorder %s310, %s312
      %p319 = scmp.eq.s32.totalorder %s45, 1
      %p320 = por %p318, %p319
      %p321 = scmp.ne.s32.totalorder %s312, %s313
      %p322 = scmp.eq.s32.totalorder %s45, 0
      %p323 = por %p321, %p322
      %p324 = scmp.ne.s32.totalorder %s312, %s313
      %p325 = scmp.eq.s32.totalorder %s46, 1
      %p326 = por %p324, %p325
      %p328 = scmp.ne.s32.totalorder %s313, %s327
      %p329 = scmp.eq.s32.totalorder %s46, 0
      %p330 = por %p328, %p329
      %s332 = sadd.s32 %s331, 1
      %p335 = scmp.eq.s32.totalorder %s40, 1
      %p336 = scmp.ne.s32.totalorder %s331, %s333
      %p337 = scmp.eq.s32.totalorder %s40, 0
      %p338 = por %p336, %p337
      %p339 = scmp.ne.s32.totalorder %s331, %s333
      %p340 = scmp.eq.s32.totalorder %s45, 1
      %p341 = por %p339, %p340
      %p342 = scmp.ne.s32.totalorder %s333, %s334
      %p343 = scmp.eq.s32.totalorder %s45, 0
      %p344 = por %p342, %p343
      %p345 = scmp.ne.s32.totalorder %s333, %s334
      %p346 = scmp.eq.s32.totalorder %s46, 1
      %p347 = por %p345, %p346
      %p349 = scmp.ne.s32.totalorder %s334, %s348
      %p350 = scmp.eq.s32.totalorder %s46, 0
      %p351 = por %p349, %p350
      %s353 = sadd.s32 %s352, 1
      %p356 = scmp.eq.s32.totalorder %s40, 1
      %p357 = scmp.ne.s32.totalorder %s352, %s354
      %p358 = scmp.eq.s32.totalorder %s40, 0
      %p359 = por %p357, %p358
      %p360 = scmp.ne.s32.totalorder %s352, %s354
      %p361 = scmp.eq.s32.totalorder %s45, 1
      %p362 = por %p360, %p361
      %p363 = scmp.ne.s32.totalorder %s354, %s355
      %p364 = scmp.eq.s32.totalorder %s45, 0
      %p365 = por %p363, %p364
      %p366 = scmp.ne.s32.totalorder %s354, %s355
      %p367 = scmp.eq.s32.totalorder %s46, 1
      %p368 = por %p366, %p367
      %p370 = scmp.ne.s32.totalorder %s355, %s369
      %p371 = scmp.eq.s32.totalorder %s46, 0
      %p372 = por %p370, %p371
      %s374 = sadd.s32 %s373, 1
      %p377 = scmp.eq.s32.totalorder %s40, 1
      %p378 = scmp.ne.s32.totalorder %s373, %s375
      %p379 = scmp.eq.s32.totalorder %s40, 0
      %p380 = por %p378, %p379
      %p381 = scmp.ne.s32.totalorder %s373, %s375
      %p382 = scmp.eq.s32.totalorder %s45, 1
      %p383 = por %p381, %p382
      %p384 = scmp.ne.s32.totalorder %s375, %s376
      %p385 = scmp.eq.s32.totalorder %s45, 0
      %p386 = por %p384, %p385
      %p387 = scmp.ne.s32.totalorder %s375, %s376
      %p388 = scmp.eq.s32.totalorder %s46, 1
      %p389 = por %p387, %p388
      %p391 = scmp.ne.s32.totalorder %s376, %s390
      %p392 = scmp.eq.s32.totalorder %s46, 0
      %p393 = por %p391, %p392
      %s395 = sadd.s32 %s394, 1
      %p398 = scmp.eq.s32.totalorder %s40, 1
      %p399 = scmp.ne.s32.totalorder %s394, %s396
      %p400 = scmp.eq.s32.totalorder %s40, 0
      %p401 = por %p399, %p400
      %p402 = scmp.ne.s32.totalorder %s394, %s396
      %p403 = scmp.eq.s32.totalorder %s45, 1
      %p404 = por %p402, %p403
      %p405 = scmp.ne.s32.totalorder %s396, %s397
      %p406 = scmp.eq.s32.totalorder %s45, 0
      %p407 = por %p405, %p406
      %p408 = scmp.ne.s32.totalorder %s396, %s397
      %p409 = scmp.eq.s32.totalorder %s46, 1
      %p410 = por %p408, %p409
      %p412 = scmp.ne.s32.totalorder %s397, %s411
      %p413 = scmp.eq.s32.totalorder %s46, 0
      %p414 = por %p412, %p413
      %s415 = ssub.s32 %s40, %s47
      %p416 = scmp.eq.s32.totalorder %s415, 0
      %s418 = sadd.s32 %s417, 1
      %s419 = scalar_select %p416, %s417, %s418
      %p422 = pneg %p416
      %p423 = scmp.eq.s32.totalorder %s40, 1
      %p424 = por %p422, %p423
      %p425 = scmp.ne.s32.totalorder %s417, %s420
      %p426 = scmp.eq.s32.totalorder %s40, 0
      %p427 = por %p425, %p426
      %p428 = scmp.ne.s32.totalorder %s417, %s420
      %p429 = scmp.eq.s32.totalorder %s45, 1
      %p430 = por %p428, %p429
      %p431 = scmp.ne.s32.totalorder %s420, %s421
      %p432 = scmp.eq.s32.totalorder %s45, 0
      %p433 = por %p431, %p432
      %p434 = scmp.ne.s32.totalorder %s420, %s421
      %p435 = scmp.eq.s32.totalorder %s46, 1
      %p436 = por %p434, %p435
      %p438 = scmp.ne.s32.totalorder %s421, %s437
      %p439 = scmp.eq.s32.totalorder %s46, 0
      %p440 = por %p438, %p439
      %p441 = scmp.le.s32.totalorder 1, %s40
      %p442 = scmp.lt.s32.totalorder %s40, 3
      %p443 = pnand %p441, %p442
      %p444 = pneg %p443
      // Predicated region
      $region9: #{tpu_custom_call.1} parent=5 // pred_check
        _
      $region10: #{tpu_custom_call.1} parent=5 // pred_check_branch
        %446 = sbr.rel (%p443) target = $region12
      $region11: #{tpu_custom_call.1} parent=5 // pred_region
        %s447 = ssub.s32 %s40, 1
        // Predicated region
        $region13: #{tpu_custom_call.1} parent=11 // pred_check
          %p448 = pneg %p113
        $region14: #{tpu_custom_call.1} parent=11 // pred_check_branch
          %450 = sbr.rel (%p448) target = $region16
        $region15: #{tpu_custom_call.1} parent=11 // pred_region
          _
        $region16: #{tpu_custom_call.1} parent=11 // pred_fallthru
          _
        // Predicated region
        $region17: #{tpu_custom_call.1} parent=11 // pred_check
          %p451 = pneg %p134
        $region18: #{tpu_custom_call.1} parent=11 // pred_check_branch
          %453 = sbr.rel (%p451) target = $region20
        $region19: #{tpu_custom_call.1} parent=11 // pred_region
          _
        $region20: #{tpu_custom_call.1} parent=11 // pred_fallthru
          _
        // Predicated region
        $region21: #{tpu_custom_call.1} parent=11 // pred_check
          %p454 = pneg %p155
        $region22: #{tpu_custom_call.1} parent=11 // pred_check_branch
          %456 = sbr.rel (%p454) target = $region24
        $region23: #{tpu_custom_call.1} parent=11 // pred_region
          %458 = vsyncadd [#allocation9], 0
          %s459 = sshll.u32 %s5, 4
          %s460 = int_to_ptr.hbm [resolvable:$true] %s459
          %s461 = sshll.u32 [#allocation8], 4
          %s462 = int_to_ptr.vmem [resolvable:$true] %s461
          %467 = dma.hbm_to_vmem [thread:$0]  %s460, 256, %s462, [#allocation9], 64, 64, 4
        $region24: #{tpu_custom_call.1} parent=11 // pred_fallthru
          _
        // Predicated region
        $region25: #{tpu_custom_call.1} parent=11 // pred_check
          %p468 = pneg %p176
        $region26: #{tpu_custom_call.1} parent=11 // pred_check_branch
          %470 = sbr.rel (%p468) target = $region28
        $region27: #{tpu_custom_call.1} parent=11 // pred_region
          %472 = vsyncadd [#allocation9], 0
          %s473 = sshll.u32 %s6, 4
          %s474 = int_to_ptr.hbm [resolvable:$true] %s473
          %s475 = sshll.u32 [#allocation10], 4
          %s476 = int_to_ptr.vmem [resolvable:$true] %s475
          %481 = dma.hbm_to_vmem [thread:$0]  %s474, 256, %s476, [#allocation9], 64, 64, 4
        $region28: #{tpu_custom_call.1} parent=11 // pred_fallthru
          _
        // Predicated region
        $region29: #{tpu_custom_call.1} parent=11 // pred_check
          %p482 = pneg %p197
        $region30: #{tpu_custom_call.1} parent=11 // pred_check_branch
          %484 = sbr.rel (%p482) target = $region32
        $region31: #{tpu_custom_call.1} parent=11 // pred_region
          %486 = vsyncadd [#allocation12], 0
          %s487 = sshll.u32 %s7, 4
          %s488 = int_to_ptr.hbm [resolvable:$true] %s487
          %s489 = sshll.u32 [#allocation11], 4
          %s490 = int_to_ptr.vmem [resolvable:$true] %s489
          %495 = dma.hbm_to_vmem [thread:$0]  %s488, 256, %s490, [#allocation12], 64, 64, 4
        $region32: #{tpu_custom_call.1} parent=11 // pred_fallthru
          _
        // Predicated region
        $region33: #{tpu_custom_call.1} parent=11 // pred_check
          %p496 = pneg %p218
        $region34: #{tpu_custom_call.1} parent=11 // pred_check_branch
          %498 = sbr.rel (%p496) target = $region36
        $region35: #{tpu_custom_call.1} parent=11 // pred_region
          %500 = vsyncadd [#allocation12], 0
          %s501 = sshll.u32 %s8, 4
          %s502 = int_to_ptr.hbm [resolvable:$true] %s501
          %s503 = sshll.u32 [#allocation13], 4
          %s504 = int_to_ptr.vmem [resolvable:$true] %s503
          %509 = dma.hbm_to_vmem [thread:$0]  %s502, 256, %s504, [#allocation12], 64, 64, 4
        $region36: #{tpu_custom_call.1} parent=11 // pred_fallthru
          _
        // Predicated region
        $region37: #{tpu_custom_call.1} parent=11 // pred_check
          %p510 = pneg %p239
        $region38: #{tpu_custom_call.1} parent=11 // pred_check_branch
          %512 = sbr.rel (%p510) target = $region40
        $region39: #{tpu_custom_call.1} parent=11 // pred_region
          _
        $region40: #{tpu_custom_call.1} parent=11 // pred_fallthru
          _
        // Predicated region
        $region41: #{tpu_custom_call.1} parent=11 // pred_check
          %p513 = pneg %p260
        $region42: #{tpu_custom_call.1} parent=11 // pred_check_branch
          %515 = sbr.rel (%p513) target = $region44
        $region43: #{tpu_custom_call.1} parent=11 // pred_region
          _
        $region44: #{tpu_custom_call.1} parent=11 // pred_fallthru
          _
        // Predicated region
        $region45: #{tpu_custom_call.1} parent=11 // pred_check
          %p516 = pneg %p281
        $region46: #{tpu_custom_call.1} parent=11 // pred_check_branch
          %518 = sbr.rel (%p516) target = $region48
        $region47: #{tpu_custom_call.1} parent=11 // pred_region
          _
        $region48: #{tpu_custom_call.1} parent=11 // pred_fallthru
          _
        // Predicated region
        $region49: #{tpu_custom_call.1} parent=11 // pred_check
          %p519 = pneg %p302
        $region50: #{tpu_custom_call.1} parent=11 // pred_check_branch
          %521 = sbr.rel (%p519) target = $region52
        $region51: #{tpu_custom_call.1} parent=11 // pred_region
          _
        $region52: #{tpu_custom_call.1} parent=11 // pred_fallthru
          _
        // Predicated region
        $region53: #{tpu_custom_call.1} parent=11 // pred_check
          %p522 = pneg %p323
        $region54: #{tpu_custom_call.1} parent=11 // pred_check_branch
          %524 = sbr.rel (%p522) target = $region56
        $region55: #{tpu_custom_call.1} parent=11 // pred_region
          _
        $region56: #{tpu_custom_call.1} parent=11 // pred_fallthru
          _
        // Predicated region
        $region57: #{tpu_custom_call.1} parent=11 // pred_check
          %p525 = pneg %p344
        $region58: #{tpu_custom_call.1} parent=11 // pred_check_branch
          %527 = sbr.rel (%p525) target = $region60
        $region59: #{tpu_custom_call.1} parent=11 // pred_region
          _
        $region60: #{tpu_custom_call.1} parent=11 // pred_fallthru
          _
        // Predicated region
        $region61: #{tpu_custom_call.1} parent=11 // pred_check
          %p528 = pneg %p365
        $region62: #{tpu_custom_call.1} parent=11 // pred_check_branch
          %530 = sbr.rel (%p528) target = $region64
        $region63: #{tpu_custom_call.1} parent=11 // pred_region
          _
        $region64: #{tpu_custom_call.1} parent=11 // pred_fallthru
          _
        // Predicated region
        $region65: #{tpu_custom_call.1} parent=11 // pred_check
          %p531 = pneg %p386
        $region66: #{tpu_custom_call.1} parent=11 // pred_check_branch
          %533 = sbr.rel (%p531) target = $region68
        $region67: #{tpu_custom_call.1} parent=11 // pred_region
          _
        $region68: #{tpu_custom_call.1} parent=11 // pred_fallthru
          _
        // Predicated region
        $region69: #{tpu_custom_call.1} parent=11 // pred_check
          %p534 = pneg %p407
        $region70: #{tpu_custom_call.1} parent=11 // pred_check_branch
          %536 = sbr.rel (%p534) target = $region72
        $region71: #{tpu_custom_call.1} parent=11 // pred_region
          _
        $region72: #{tpu_custom_call.1} parent=11 // pred_fallthru
          _
      $region12: #{tpu_custom_call.1} parent=5 // pred_fallthru
        _
      %p537 = scmp.lt.s32.totalorder %s40, 2
      // Predicated region
      $region73: #{tpu_custom_call.1} parent=5 // pred_check
        %p538 = pneg %p537
      $region74: #{tpu_custom_call.1} parent=5 // pred_check_branch
        %540 = sbr.rel (%p538) target = $region76
      $region75: #{tpu_custom_call.1} parent=5 // pred_region
        // Predicated region
        $region77: #{tpu_custom_call.1} parent=75 // pred_check
          %p541 = pneg %p60
        $region78: #{tpu_custom_call.1} parent=75 // pred_check_branch
          %543 = sbr.rel (%p541) target = $region80
        $region79: #{tpu_custom_call.1} parent=75 // pred_region
          %p544 = scmp.lt.s32.totalorder %s40, 1
          %s545 = scalar_select %p544, %s40, 1
          %s546 = smul.addr %s545, 8
          %s547 = scalar_lea.vmem %s1, %s546
        $region80: #{tpu_custom_call.1} parent=75 // pred_fallthru
          _
        // Predicated region
        $region81: #{tpu_custom_call.1} parent=75 // pred_check
          %p548 = pneg %p86
        $region82: #{tpu_custom_call.1} parent=75 // pred_check_branch
          %550 = sbr.rel (%p548) target = $region84
        $region83: #{tpu_custom_call.1} parent=75 // pred_region
          %s551 = sand.u32 %s76, 1
          %s552 = scalar_lea.sflag [#allocation6], %s551
          %s553 = sand.u32 %s76, 1
          %s554 = smul.addr %s553, 4
          %s555 = scalar_lea.vmem [#allocation5], %s554
          %557 = vsyncadd %s552, 0
          %s558 = smul.addr %s40, 4
          %s559 = scalar_lea.hbm %s2, %s558
          %s561 = sshll.u32 %s559, 4
          %s562 = int_to_ptr.hbm [resolvable:$true] %s561
          %s563 = sshll.u32 %s555, 4
          %s564 = int_to_ptr.vmem [resolvable:$true] %s563
          %566 = dma.hbm_to_vmem [thread:$0]  %s562, 64, %s564, %s552
        $region84: #{tpu_custom_call.1} parent=75 // pred_fallthru
          _
      $region76: #{tpu_custom_call.1} parent=5 // pred_fallthru
        _
      %p567 = scmp.le.s32.totalorder 1, %s40
      %p568 = scmp.lt.s32.totalorder %s40, 3
      %p569 = pnand %p567, %p568
      %p570 = pneg %p569
      // Predicated region
      $region85: #{tpu_custom_call.1} parent=5 // pred_check
        _
      $region86: #{tpu_custom_call.1} parent=5 // pred_check_branch
        %572 = sbr.rel (%p569) target = $region88
      $region87: #{tpu_custom_call.1} parent=5 // pred_region
        %s573 = ssub.s32 %s40, 1
        %s574 = sand.u32 %s79, 1
        %s575 = scalar_lea.sflag [#allocation6], %s574
        %s576 = sand.u32 %s79, 1
        %s577 = smul.addr %s576, 4
        %s578 = scalar_lea.vmem [#allocation5], %s577
        // Predicated region
        $region89: #{tpu_custom_call.1} parent=87 // pred_check
          %p579 = pneg %p92
        $region90: #{tpu_custom_call.1} parent=87 // pred_check_branch
          %581 = sbr.rel (%p579) target = $region92
        $region91: #{tpu_custom_call.1} parent=87 // pred_region
          %583 = dma.done %s575, 64
        $region92: #{tpu_custom_call.1} parent=87 // pred_fallthru
          _
        // Predicated region
        $region93: #{tpu_custom_call.1} parent=87 // pred_check
          %p584 = pneg %p155
        $region94: #{tpu_custom_call.1} parent=87 // pred_check_branch
          %586 = sbr.rel (%p584) target = $region96
        $region95: #{tpu_custom_call.1} parent=87 // pred_region
          %588 = dma.done [#allocation9], 256
        $region96: #{tpu_custom_call.1} parent=87 // pred_fallthru
          _
        // Predicated region
        $region97: #{tpu_custom_call.1} parent=87 // pred_check
          %p589 = pneg %p176
        $region98: #{tpu_custom_call.1} parent=87 // pred_check_branch
          %591 = sbr.rel (%p589) target = $region100
        $region99: #{tpu_custom_call.1} parent=87 // pred_region
          %593 = dma.done [#allocation9], 256
        $region100: #{tpu_custom_call.1} parent=87 // pred_fallthru
          _
        // Predicated region
        $region101: #{tpu_custom_call.1} parent=87 // pred_check
          %p594 = pneg %p197
        $region102: #{tpu_custom_call.1} parent=87 // pred_check_branch
          %596 = sbr.rel (%p594) target = $region104
        $region103: #{tpu_custom_call.1} parent=87 // pred_region
          %598 = dma.done [#allocation12], 256
        $region104: #{tpu_custom_call.1} parent=87 // pred_fallthru
          _
        // Predicated region
        $region105: #{tpu_custom_call.1} parent=87 // pred_check
          %p599 = pneg %p218
        $region106: #{tpu_custom_call.1} parent=87 // pred_check_branch
          %601 = sbr.rel (%p599) target = $region108
        $region107: #{tpu_custom_call.1} parent=87 // pred_region
          %603 = dma.done [#allocation12], 256
        $region108: #{tpu_custom_call.1} parent=87 // pred_fallthru
          _
        %p604 = scmp.lt.s32.totalorder %s45, 1
        %s605 = scalar_select %p604, %s45, 1
        %s606 = smul.addr %s605, 8
        %s607 = scalar_lea.vmem %s1, %s606
        %p608 = pneg %p66
        %p609 = pneg %p63
        %s610 = sand.u32 %s79, 1
        %s611 = scalar_lea.sflag [#allocation6], %s610
        %s612 = sand.u32 %s79, 1
        %s613 = smul.addr %s612, 4
        %s614 = scalar_lea.vmem [#allocation5], %s613
        %p615 = pneg %p92
        %p616 = pneg %p89
        %p617 = pneg %p113
        %p618 = pneg %p110
        %p619 = pneg %p134
        %p620 = pneg %p131
        %p621 = pneg %p155
        %p622 = pneg %p152
        %p623 = pneg %p176
        %p624 = pneg %p173
        %p625 = pneg %p197
        %p626 = pneg %p194
        %p627 = pneg %p218
        %p628 = pneg %p215
        %p629 = pneg %p239
        %p630 = pneg %p236
        %p631 = pneg %p260
        %p632 = pneg %p257
        %p633 = pneg %p281
        %p634 = pneg %p278
        %p635 = pneg %p302
        %p636 = pneg %p299
        %p637 = pneg %p323
        %p638 = pneg %p320
        %p639 = pneg %p344
        %p640 = pneg %p341
        %p641 = pneg %p365
        %p642 = pneg %p362
        %p643 = pneg %p386
        %p644 = pneg %p383
        %p645 = pneg %p407
        %p646 = pneg %p404
        %p647 = pneg %p433
        %p648 = pneg %p430
        %s649 = sand.u32 %s420, 1
        %s650 = scalar_lea.sflag [#allocation7], %s649
        %s651 = sand.u32 %s420, 1
        %s652 = smul.addr %s651, 8
        %s653 = scalar_lea.vmem [#allocation14], %s652
        %p654 = scmp.lt.s32.totalorder %s45, 1
        %s655 = scalar_select %p654, %s45, 1
        %s656 = smul.addr %s655, 8
        %s657 = scalar_lea.vmem %s1, %s656
        %v659 = vld [vmem:[%s657] sm:$0xff]
        %v660 = vpack.c.bf16 %v659, %v659
        %v661 = vld [vmem:[%s3] sm:$0xf]
        %v662 = vld [vmem:[%s3 + $0x4] sm:$0xf]
        %v663 = vld [vmem:[%s3 + $0x8] sm:$0xf]
        %v664 = vld [vmem:[%s3 + $0xc] sm:$0xf]
        %v669 = vunpack.c.l.b16 %v661
        %v670 = vunpack.c.l.b16 %v662
        %v671 = vunpack.c.l.b16 %v663
        %v672 = vunpack.c.l.b16 %v664
        %v673 = vpack.c.b16 %v670, %v669
        %v674 = vpack.c.b16 %v672, %v671
        %vm677 = vcmask 261120
        %v679 = vsel %vm677, %v660, 0
        %681 = vmatpush.bf16.msra.mxu0 0
        %682 = vmatpush.bf16.msra.mxu0 0
        %683 = vmatpush.bf16.msra.mxu0 0
        %684 = vmatpush.bf16.msra.mxu0 0
        %685 = vmatpush.bf16.msra.mxu0 0
        %686 = vmatpush.bf16.msra.mxu0 0
        %687 = vmatpush.bf16.msra.mxu0 %v674
        %688 = vmatpush.bf16.msra.mxu0 %v673
        %689 = vmatmul.bf16.gmra.mxu0 %v679
        %v690 = vpop.f32.mrf.mxu0
        %v691 = vadd.f32 0.0, %v690
        %v692 = vpop.f32.mrf.mxu0
        %693 = vdwg.mxu0
        %v694 = vmul.f32 %v691, 0.35355338
        %v695 = vpack.c.bf16 %v694, %v694
        %v696 = vpack.c.bf16 %v691, %v691
        %v697 = vlaneseq
        %v698 = vshrl.u32 %v697, 7
        %v699 = vlaneseq
        %v700 = vand.u32 %v699, 127
        %vm701 = vcmp.le.s32.totalorder %v700, %v698
        %v703 = vunpack.c.l.b16 %v696
        %v704 = vpack.c.b16 %v703, %v703
        %705 = vrot.lane.b32.xlu0 %v704, 96
        %v706 = vpop.permute.xlu0 %705
        %vm707 = vcmask 64512
        %v709 = vsel %vm707, %v695, 0
        %v712 = vsel %vm707, %v706, 0
        %714 = vmatpush.bf16.xpose.msra.mxu0 0
        %715 = vmatpush.bf16.xpose.msra.mxu0 0
        %716 = vmatpush.bf16.xpose.msra.mxu0 0
        %717 = vmatpush.bf16.xpose.msra.mxu0 0
        %718 = vmatpush.bf16.xpose.msra.mxu0 0
        %719 = vmatpush.bf16.xpose.msra.mxu0 0
        %720 = vmatpush.bf16.xpose.msra.mxu0 0
        %721 = vmatpush.bf16.xpose.msra.mxu0 %v712
        %722 = vmatmul.bf16.gmra.mxu0 %v709
        %v723 = vpop.f32.mrf.mxu0
        %v724 = vadd.f32 0.0, %v723
        %v725 = vpop.f32.mrf.mxu0
        %726 = vdwg.mxu0
        %v727 = vsel %vm701, %v724, -1000000.0
        %v728 = vsel %vm707, %v727, -inf
        %729 = vmax.xlane.f32.xlu0 %v728
        %v730 = vpop.xlane.xlu0 %729
        %v731 = vsub.f32 %v727, %v730
        %v732 = vmul.f32 %v731, 1.442695
        %v733 = vpow.pop %v732
        %v734 = vsel %vm707, %v733, 0.0
        %735 = vadd.xlane.f32.xlu0 %v734
        %v736 = vpop.xlane.xlu0 %735
        %v737 = vrcp.pop %v736
        %v738 = vmul.f32 %v733, %v737
        %v739 = vpack.c.bf16 %v738, %v738
        %740 = vrot.lane.b32.xlu0 %v704, 64
        %v741 = vpop.permute.xlu0 %740
        %v743 = vsel %vm707, %v739, 0
        %vm745 = vcmask 1043456
        %v747 = vsel %vm745, %v741, 0
        %749 = vmatpush.bf16.msra.mxu0 0
        %750 = vmatpush.bf16.msra.mxu0 0
        %751 = vmatpush.bf16.msra.mxu0 0
        %752 = vmatpush.bf16.msra.mxu0 0
        %753 = vmatpush.bf16.msra.mxu0 0
        %754 = vmatpush.bf16.msra.mxu0 0
        %755 = vmatpush.bf16.msra.mxu0 0
        %756 = vmatpush.bf16.msra.mxu0 %v747
        %757 = vmatmul.bf16.gmra.mxu0 %v743
        %v758 = vpop.f32.mrf.mxu0
        %v759 = vadd.f32 0.0, %v758
        %v760 = vpop.f32.mrf.mxu0
        %761 = vdwg.mxu0
        %v762 = vpack.c.bf16 %v759, %v759
        %vm763 = vcmask 60416
        %764 = vst.msk [vmem:[#allocation2] sm:$0xf] %vm763, %v762
        %v766 = vunpack.c.l.b16 %v695
        %v767 = vpack.c.b16 %v766, %v766
        %768 = vrot.lane.b32.xlu0 %v767, 120
        %v769 = vpop.permute.xlu0 %768
        %770 = vrot.lane.b32.xlu0 %v704, 88
        %v771 = vpop.permute.xlu0 %770
        %v773 = vsel %vm707, %v769, 0
        %v776 = vsel %vm707, %v771, 0
        %778 = vmatpush.bf16.xpose.msra.mxu0 0
        %779 = vmatpush.bf16.xpose.msra.mxu0 0
        %780 = vmatpush.bf16.xpose.msra.mxu0 0
        %781 = vmatpush.bf16.xpose.msra.mxu0 0
        %782 = vmatpush.bf16.xpose.msra.mxu0 0
        %783 = vmatpush.bf16.xpose.msra.mxu0 0
        %784 = vmatpush.bf16.xpose.msra.mxu0 0
        %785 = vmatpush.bf16.xpose.msra.mxu0 %v776
        %786 = vmatmul.bf16.gmra.mxu0 %v773
        %v787 = vpop.f32.mrf.mxu0
        %v788 = vadd.f32 0.0, %v787
        %v789 = vpop.f32.mrf.mxu0
        %790 = vdwg.mxu0
        %v791 = vsel %vm701, %v788, -1000000.0
        %v792 = vsel %vm707, %v791, -inf
        %793 = vmax.xlane.f32.xlu0 %v792
        %v794 = vpop.xlane.xlu0 %793
        %v795 = vsub.f32 %v791, %v794
        %v796 = vmul.f32 %v795, 1.442695
        %v797 = vpow.pop %v796
        %v798 = vsel %vm707, %v797, 0.0
        %799 = vadd.xlane.f32.xlu0 %v798
        %v800 = vpop.xlane.xlu0 %799
        %v801 = vrcp.pop %v800
        %v802 = vmul.f32 %v797, %v801
        %v803 = vpack.c.bf16 %v802, %v802
        %804 = vrot.lane.b32.xlu0 %v704, 56
        %v805 = vpop.permute.xlu0 %804
        %v807 = vsel %vm707, %v803, 0
        %v810 = vsel %vm745, %v805, 0
        %812 = vmatpush.bf16.msra.mxu0 0
        %813 = vmatpush.bf16.msra.mxu0 0
        %814 = vmatpush.bf16.msra.mxu0 0
        %815 = vmatpush.bf16.msra.mxu0 0
        %816 = vmatpush.bf16.msra.mxu0 0
        %817 = vmatpush.bf16.msra.mxu0 0
        %818 = vmatpush.bf16.msra.mxu0 0
        %819 = vmatpush.bf16.msra.mxu0 %v810
        %820 = vmatmul.bf16.gmra.mxu0 %v807
        %v821 = vpop.f32.mrf.mxu0
        %v822 = vadd.f32 0.0, %v821
        %v823 = vpop.f32.mrf.mxu0
        %824 = vdwg.mxu0
        %v825 = vpack.c.bf16 %v822, %v822
        %827 = vrot.lane.b32.xlu0 %v825, 8
        %v828 = vpop.permute.xlu0 %827
        %vm830 = vcmask 126016
        %831 = vst.msk [vmem:[#allocation2] sm:$0xf] %vm830, %v828
        %832 = vrot.lane.b32.xlu0 %v767, 112
        %v833 = vpop.permute.xlu0 %832
        %834 = vrot.lane.b32.xlu0 %v704, 80
        %v835 = vpop.permute.xlu0 %834
        %v837 = vsel %vm707, %v833, 0
        %v840 = vsel %vm707, %v835, 0
        %842 = vmatpush.bf16.xpose.msra.mxu0 0
        %843 = vmatpush.bf16.xpose.msra.mxu0 0
        %844 = vmatpush.bf16.xpose.msra.mxu0 0
        %845 = vmatpush.bf16.xpose.msra.mxu0 0
        %846 = vmatpush.bf16.xpose.msra.mxu0 0
        %847 = vmatpush.bf16.xpose.msra.mxu0 0
        %848 = vmatpush.bf16.xpose.msra.mxu0 0
        %849 = vmatpush.bf16.xpose.msra.mxu0 %v840
        %850 = vmatmul.bf16.gmra.mxu0 %v837
        %v851 = vpop.f32.mrf.mxu0
        %v852 = vadd.f32 0.0, %v851
        %v853 = vpop.f32.mrf.mxu0
        %854 = vdwg.mxu0
        %v855 = vsel %vm701, %v852, -1000000.0
        %v856 = vsel %vm707, %v855, -inf
        %857 = vmax.xlane.f32.xlu0 %v856
        %v858 = vpop.xlane.xlu0 %857
        %v859 = vsub.f32 %v855, %v858
        %v860 = vmul.f32 %v859, 1.442695
        %v861 = vpow.pop %v860
        %v862 = vsel %vm707, %v861, 0.0
        %863 = vadd.xlane.f32.xlu0 %v862
        %v864 = vpop.xlane.xlu0 %863
        %v865 = vrcp.pop %v864
        %v866 = vmul.f32 %v861, %v865
        %v867 = vpack.c.bf16 %v866, %v866
        %868 = vrot.lane.b32.xlu0 %v704, 48
        %v869 = vpop.permute.xlu0 %868
        %v871 = vsel %vm707, %v867, 0
        %v874 = vsel %vm745, %v869, 0
        %876 = vmatpush.bf16.msra.mxu0 0
        %877 = vmatpush.bf16.msra.mxu0 0
        %878 = vmatpush.bf16.msra.mxu0 0
        %879 = vmatpush.bf16.msra.mxu0 0
        %880 = vmatpush.bf16.msra.mxu0 0
        %881 = vmatpush.bf16.msra.mxu0 0
        %882 = vmatpush.bf16.msra.mxu0 0
        %883 = vmatpush.bf16.msra.mxu0 %v874
        %884 = vmatmul.bf16.gmra.mxu0 %v871
        %v885 = vpop.f32.mrf.mxu0
        %v886 = vadd.f32 0.0, %v885
        %v887 = vpop.f32.mrf.mxu0
        %888 = vdwg.mxu0
        %v889 = vpack.c.bf16 %v886, %v886
        %891 = vrot.lane.b32.xlu0 %v889, 16
        %v892 = vpop.permute.xlu0 %891
        %vm894 = vcmask 191616
        %895 = vst.msk [vmem:[#allocation2] sm:$0xf] %vm894, %v892
        %896 = vrot.lane.b32.xlu0 %v767, 104
        %v897 = vpop.permute.xlu0 %896
        %898 = vrot.lane.b32.xlu0 %v704, 72
        %v899 = vpop.permute.xlu0 %898
        %v901 = vsel %vm707, %v897, 0
        %v904 = vsel %vm707, %v899, 0
        %906 = vmatpush.bf16.xpose.msra.mxu0 0
        %907 = vmatpush.bf16.xpose.msra.mxu0 0
        %908 = vmatpush.bf16.xpose.msra.mxu0 0
        %909 = vmatpush.bf16.xpose.msra.mxu0 0
        %910 = vmatpush.bf16.xpose.msra.mxu0 0
        %911 = vmatpush.bf16.xpose.msra.mxu0 0
        %912 = vmatpush.bf16.xpose.msra.mxu0 0
        %913 = vmatpush.bf16.xpose.msra.mxu0 %v904
        %914 = vmatmul.bf16.gmra.mxu0 %v901
        %v915 = vpop.f32.mrf.mxu0
        %v916 = vadd.f32 0.0, %v915
        %v917 = vpop.f32.mrf.mxu0
        %918 = vdwg.mxu0
        %v919 = vsel %vm701, %v916, -1000000.0
        %v920 = vsel %vm707, %v919, -inf
        %921 = vmax.xlane.f32.xlu0 %v920
        %v922 = vpop.xlane.xlu0 %921
        %v923 = vsub.f32 %v919, %v922
        %v924 = vmul.f32 %v923, 1.442695
        %v925 = vpow.pop %v924
        %v926 = vsel %vm707, %v925, 0.0
        %927 = vadd.xlane.f32.xlu0 %v926
        %v928 = vpop.xlane.xlu0 %927
        %v929 = vrcp.pop %v928
        %v930 = vmul.f32 %v925, %v929
        %v931 = vpack.c.bf16 %v930, %v930
        %932 = vrot.lane.b32.xlu0 %v704, 40
        %v933 = vpop.permute.xlu0 %932
        %v935 = vsel %vm707, %v931, 0
        %v938 = vsel %vm745, %v933, 0
        %940 = vmatpush.bf16.msra.mxu0 0
        %941 = vmatpush.bf16.msra.mxu0 0
        %942 = vmatpush.bf16.msra.mxu0 0
        %943 = vmatpush.bf16.msra.mxu0 0
        %944 = vmatpush.bf16.msra.mxu0 0
        %945 = vmatpush.bf16.msra.mxu0 0
        %946 = vmatpush.bf16.msra.mxu0 0
        %947 = vmatpush.bf16.msra.mxu0 %v938
        %948 = vmatmul.bf16.gmra.mxu0 %v935
        %v949 = vpop.f32.mrf.mxu0
        %v950 = vadd.f32 0.0, %v949
        %v951 = vpop.f32.mrf.mxu0
        %952 = vdwg.mxu0
        %v953 = vpack.c.bf16 %v950, %v950
        %955 = vrot.lane.b32.xlu0 %v953, 24
        %v956 = vpop.permute.xlu0 %955
        %vm958 = vcmask 257216
        %959 = vst.msk [vmem:[#allocation2] sm:$0xf] %vm958, %v956
        %v960 = vld [vmem:[#allocation2] sm:$0xf]
        %v961 = vld [vmem:[%s4] sm:$0xf]
        %v962 = vld [vmem:[%s4 + $0x4] sm:$0xf]
        %v963 = vld [vmem:[%s4 + $0x8] sm:$0xf]
        %v964 = vld [vmem:[%s4 + $0xc] sm:$0xf]
        %v969 = vunpack.c.l.b16 %v961
        %v970 = vunpack.c.l.b16 %v962
        %v971 = vunpack.c.l.b16 %v963
        %v972 = vunpack.c.l.b16 %v964
        %v973 = vpack.c.b16 %v970, %v969
        %v974 = vpack.c.b16 %v972, %v971
        %v978 = vsel %vm677, %v960, 0
        %980 = vmatpush.bf16.msra.mxu0 0
        %981 = vmatpush.bf16.msra.mxu0 0
        %982 = vmatpush.bf16.msra.mxu0 0
        %983 = vmatpush.bf16.msra.mxu0 0
        %984 = vmatpush.bf16.msra.mxu0 0
        %985 = vmatpush.bf16.msra.mxu0 0
        %986 = vmatpush.bf16.msra.mxu0 %v974
        %987 = vmatpush.bf16.msra.mxu0 %v973
        %988 = vmatmul.bf16.gmra.mxu0 %v978
        %v989 = vpop.f32.mrf.mxu0
        %v990 = vadd.f32 %v659, %v989
        %v991 = vpop.f32.mrf.mxu0
        %992 = vdwg.mxu0
        %v993 = vld [vmem:[%s12] sm:$0x1]
        %v994 = vld [vmem:[%s13] sm:$0x1]
        %v995 = vsel %vm677, %v990, 0.0
        %996 = vadd.xlane.f32.xlu0 %v995
        %v997 = vpop.xlane.xlu0 %996
        %v998 = vrcp.pop 32.0
        %v999 = vmul.f32 32.0, %v998
        %v1000 = vsub.f32 1.0, %v999
        %v1001 = vmul.f32 %v998, %v1000
        %v1002 = vadd.f32 %v998, %v1001
        %vm1003 = vweird.f32 %v998
        %v1004 = vsel %vm1003, %v998, %v1002
        %v1005 = vmul.f32 %v997, %v1004
        %v1006 = vsub.f32 %v990, %v1005
        %v1007 = vmul.f32 %v1006, %v1006
        %v1008 = vsel %vm677, %v1007, 0.0
        %1009 = vadd.xlane.f32.xlu0 %v1008
        %v1010 = vpop.xlane.xlu0 %1009
        %v1011 = vmul.f32 %v1010, %v1004
        %v1012 = vadd.f32 %v1011, 1e-05
        %v1013 = vrsqrt.pop %v1012
        %v1014 = vmul.f32 %v1013, %v1012
        %v1015 = vmul.f32 %v1014, %v1013
        %v1016 = vmul.f32 0.5, %v1015
        %v1017 = vsub.f32 1.5, %v1016
        %v1018 = vmul.f32 %v1013, %v1017
        %vm1019 = vweird.f32 %v1012
        %vm1020 = vweird.f32 %v1013
        %vm1021 = vmor %vm1019, %vm1020
        %v1022 = vsel %vm1021, %v1013, %v1018
        %v1023 = vmul.f32 %v1006, %v1022
        %v1025 = vperm.slane %v993, 0
        %v1027 = vmul.f32 %v1023, %v1025
        %v1029 = vperm.slane %v994, 0
        %v1031 = vadd.f32 %v1027, %v1029
        %v1032 = vpack.c.bf16 %v1031, %v1031
        %v1033 = vld [vmem:[#allocation8] sm:$0xf]
        %v1034 = vld [vmem:[#allocation8 + $0x4] sm:$0xf]
        %v1035 = vld [vmem:[#allocation8 + $0x8] sm:$0xf]
        %v1036 = vld [vmem:[#allocation8 + $0xc] sm:$0xf]
        %v1041 = vunpack.c.l.b16 %v1033
        %v1042 = vunpack.c.l.b16 %v1034
        %v1043 = vunpack.c.l.b16 %v1035
        %v1044 = vunpack.c.l.b16 %v1036
        %v1045 = vpack.c.b16 %v1042, %v1041
        %v1046 = vpack.c.b16 %v1044, %v1043
        %v1050 = vsel %vm677, %v1032, 0
        %1052 = vmatpush.bf16.msra.mxu0 0
        %1053 = vmatpush.bf16.msra.mxu0 0
        %1054 = vmatpush.bf16.msra.mxu0 0
        %1055 = vmatpush.bf16.msra.mxu0 0
        %1056 = vmatpush.bf16.msra.mxu0 0
        %1057 = vmatpush.bf16.msra.mxu0 0
        %1058 = vmatpush.bf16.msra.mxu0 %v1046
        %1059 = vmatpush.bf16.msra.mxu0 %v1045
        %1060 = vmatmul.bf16.gmra.mxu0 %v1050
        %v1061 = vpop.f32.mrf.mxu0
        %v1062 = vadd.f32 0.0, %v1061
        %v1063 = vpop.f32.mrf.mxu0
        %1064 = vdwg.mxu0
        %v1065 = vmul.f32 %v1062, 0.35355338
        %v1066 = vpack.c.bf16 %v1065, %v1065
        %v1067 = vld [vmem:[%s578] sm:$0xf]
        %v1068 = vld [vmem:[#allocation10] sm:$0xf]
        %v1069 = vld [vmem:[#allocation10 + $0x4] sm:$0xf]
        %v1070 = vld [vmem:[#allocation10 + $0x8] sm:$0xf]
        %v1071 = vld [vmem:[#allocation10 + $0xc] sm:$0xf]
        %v1076 = vunpack.c.l.b16 %v1068
        %v1077 = vunpack.c.l.b16 %v1069
        %v1078 = vunpack.c.l.b16 %v1070
        %v1079 = vunpack.c.l.b16 %v1071
        %v1080 = vpack.c.b16 %v1077, %v1076
        %v1081 = vpack.c.b16 %v1079, %v1078
        %v1085 = vsel %vm677, %v1067, 0
        %1087 = vmatpush.bf16.msra.mxu0 0
        %1088 = vmatpush.bf16.msra.mxu0 0
        %1089 = vmatpush.bf16.msra.mxu0 0
        %1090 = vmatpush.bf16.msra.mxu0 0
        %1091 = vmatpush.bf16.msra.mxu0 0
        %1092 = vmatpush.bf16.msra.mxu0 0
        %1093 = vmatpush.bf16.msra.mxu0 %v1081
        %1094 = vmatpush.bf16.msra.mxu0 %v1080
        %1095 = vmatmul.bf16.gmra.mxu0 %v1085
        %v1096 = vpop.f32.mrf.mxu0
        %v1097 = vadd.f32 0.0, %v1096
        %v1098 = vpop.f32.mrf.mxu0
        %1099 = vdwg.mxu0
        %v1100 = vpack.c.bf16 %v1097, %v1097
        %s1101 = sld [smem:[#allocation4 + %s45]]
        %v1102 = vstv %s1101
        %vm1103 = vcmp.lt.s32.totalorder %v700, %v1102
        %v1105 = vsel %vm707, %v1066, 0
        %v1108 = vsel %vm707, %v1100, 0
        %1110 = vmatpush.bf16.xpose.msra.mxu0 0
        %1111 = vmatpush.bf16.xpose.msra.mxu0 0
        %1112 = vmatpush.bf16.xpose.msra.mxu0 0
        %1113 = vmatpush.bf16.xpose.msra.mxu0 0
        %1114 = vmatpush.bf16.xpose.msra.mxu0 0
        %1115 = vmatpush.bf16.xpose.msra.mxu0 0
        %1116 = vmatpush.bf16.xpose.msra.mxu0 0
        %1117 = vmatpush.bf16.xpose.msra.mxu0 %v1108
        %1118 = vmatmul.bf16.gmra.mxu0 %v1105
        %v1119 = vpop.f32.mrf.mxu0
        %v1120 = vadd.f32 0.0, %v1119
        %v1121 = vpop.f32.mrf.mxu0
        %1122 = vdwg.mxu0
        %v1123 = vsel %vm1103, 1, 0
        %vm1124 = vcmp.eq.s32.totalorder %v1123, 1
        %v1125 = vsel %vm1124, %v1120, -1000000.0
        %v1126 = vsel %vm707, %v1125, -inf
        %1127 = vmax.xlane.f32.xlu0 %v1126
        %v1128 = vpop.xlane.xlu0 %1127
        %v1129 = vsub.f32 %v1125, %v1128
        %v1130 = vmul.f32 %v1129, 1.442695
        %v1131 = vpow.pop %v1130
        %v1132 = vsel %vm707, %v1131, 0.0
        %1133 = vadd.xlane.f32.xlu0 %v1132
        %v1134 = vpop.xlane.xlu0 %1133
        %v1135 = vrcp.pop %v1134
        %v1136 = vmul.f32 %v1131, %v1135
        %v1137 = vpack.c.bf16 %v1136, %v1136
        %v1139 = vunpack.c.l.b16 %v1100
        %v1140 = vpack.c.b16 %v1139, %v1139
        %1141 = vrot.lane.b32.xlu0 %v1140, 96
        %v1142 = vpop.permute.xlu0 %1141
        %v1144 = vsel %vm707, %v1137, 0
        %v1147 = vsel %vm745, %v1142, 0
        %1149 = vmatpush.bf16.msra.mxu0 0
        %1150 = vmatpush.bf16.msra.mxu0 0
        %1151 = vmatpush.bf16.msra.mxu0 0
        %1152 = vmatpush.bf16.msra.mxu0 0
        %1153 = vmatpush.bf16.msra.mxu0 0
        %1154 = vmatpush.bf16.msra.mxu0 0
        %1155 = vmatpush.bf16.msra.mxu0 0
        %1156 = vmatpush.bf16.msra.mxu0 %v1147
        %1157 = vmatmul.bf16.gmra.mxu0 %v1144
        %v1158 = vpop.f32.mrf.mxu0
        %v1159 = vadd.f32 0.0, %v1158
        %v1160 = vpop.f32.mrf.mxu0
        %1161 = vdwg.mxu0
        %v1162 = vpack.c.bf16 %v1159, %v1159
        %1163 = vst.msk [vmem:[#allocation2] sm:$0xf] %vm763, %v1162
        %v1165 = vunpack.c.l.b16 %v1066
        %v1166 = vpack.c.b16 %v1165, %v1165
        %1167 = vrot.lane.b32.xlu0 %v1166, 120
        %v1168 = vpop.permute.xlu0 %1167
        %1169 = vrot.lane.b32.xlu0 %v1140, 120
        %v1170 = vpop.permute.xlu0 %1169
        %v1172 = vsel %vm707, %v1168, 0
        %v1175 = vsel %vm707, %v1170, 0
        %1177 = vmatpush.bf16.xpose.msra.mxu0 0
        %1178 = vmatpush.bf16.xpose.msra.mxu0 0
        %1179 = vmatpush.bf16.xpose.msra.mxu0 0
        %1180 = vmatpush.bf16.xpose.msra.mxu0 0
        %1181 = vmatpush.bf16.xpose.msra.mxu0 0
        %1182 = vmatpush.bf16.xpose.msra.mxu0 0
        %1183 = vmatpush.bf16.xpose.msra.mxu0 0
        %1184 = vmatpush.bf16.xpose.msra.mxu0 %v1175
        %1185 = vmatmul.bf16.gmra.mxu0 %v1172
        %v1186 = vpop.f32.mrf.mxu0
        %v1187 = vadd.f32 0.0, %v1186
        %v1188 = vpop.f32.mrf.mxu0
        %1189 = vdwg.mxu0
        %v1190 = vsel %vm1124, %v1187, -1000000.0
        %v1191 = vsel %vm707, %v1190, -inf
        %1192 = vmax.xlane.f32.xlu0 %v1191
        %v1193 = vpop.xlane.xlu0 %1192
        %v1194 = vsub.f32 %v1190, %v1193
        %v1195 = vmul.f32 %v1194, 1.442695
        %v1196 = vpow.pop %v1195
        %v1197 = vsel %vm707, %v1196, 0.0
        %1198 = vadd.xlane.f32.xlu0 %v1197
        %v1199 = vpop.xlane.xlu0 %1198
        %v1200 = vrcp.pop %v1199
        %v1201 = vmul.f32 %v1196, %v1200
        %v1202 = vpack.c.bf16 %v1201, %v1201
        %1203 = vrot.lane.b32.xlu0 %v1140, 88
        %v1204 = vpop.permute.xlu0 %1203
        %v1206 = vsel %vm707, %v1202, 0
        %v1209 = vsel %vm745, %v1204, 0
        %1211 = vmatpush.bf16.msra.mxu0 0
        %1212 = vmatpush.bf16.msra.mxu0 0
        %1213 = vmatpush.bf16.msra.mxu0 0
        %1214 = vmatpush.bf16.msra.mxu0 0
        %1215 = vmatpush.bf16.msra.mxu0 0
        %1216 = vmatpush.bf16.msra.mxu0 0
        %1217 = vmatpush.bf16.msra.mxu0 0
        %1218 = vmatpush.bf16.msra.mxu0 %v1209
        %1219 = vmatmul.bf16.gmra.mxu0 %v1206
        %v1220 = vpop.f32.mrf.mxu0
        %v1221 = vadd.f32 0.0, %v1220
        %v1222 = vpop.f32.mrf.mxu0
        %1223 = vdwg.mxu0
        %v1224 = vpack.c.bf16 %v1221, %v1221
        %1226 = vrot.lane.b32.xlu0 %v1224, 8
        %v1227 = vpop.permute.xlu0 %1226
        %1229 = vst.msk [vmem:[#allocation2] sm:$0xf] %vm830, %v1227
        %1230 = vrot.lane.b32.xlu0 %v1166, 112
        %v1231 = vpop.permute.xlu0 %1230
        %1232 = vrot.lane.b32.xlu0 %v1140, 112
        %v1233 = vpop.permute.xlu0 %1232
        %v1235 = vsel %vm707, %v1231, 0
        %v1238 = vsel %vm707, %v1233, 0
        %1240 = vmatpush.bf16.xpose.msra.mxu0 0
        %1241 = vmatpush.bf16.xpose.msra.mxu0 0
        %1242 = vmatpush.bf16.xpose.msra.mxu0 0
        %1243 = vmatpush.bf16.xpose.msra.mxu0 0
        %1244 = vmatpush.bf16.xpose.msra.mxu0 0
        %1245 = vmatpush.bf16.xpose.msra.mxu0 0
        %1246 = vmatpush.bf16.xpose.msra.mxu0 0
        %1247 = vmatpush.bf16.xpose.msra.mxu0 %v1238
        %1248 = vmatmul.bf16.gmra.mxu0 %v1235
        %v1249 = vpop.f32.mrf.mxu0
        %v1250 = vadd.f32 0.0, %v1249
        %v1251 = vpop.f32.mrf.mxu0
        %1252 = vdwg.mxu0
        %v1253 = vsel %vm1124, %v1250, -1000000.0
        %v1254 = vsel %vm707, %v1253, -inf
        %1255 = vmax.xlane.f32.xlu0 %v1254
        %v1256 = vpop.xlane.xlu0 %1255
        %v1257 = vsub.f32 %v1253, %v1256
        %v1258 = vmul.f32 %v1257, 1.442695
        %v1259 = vpow.pop %v1258
        %v1260 = vsel %vm707, %v1259, 0.0
        %1261 = vadd.xlane.f32.xlu0 %v1260
        %v1262 = vpop.xlane.xlu0 %1261
        %v1263 = vrcp.pop %v1262
        %v1264 = vmul.f32 %v1259, %v1263
        %v1265 = vpack.c.bf16 %v1264, %v1264
        %1266 = vrot.lane.b32.xlu0 %v1140, 80
        %v1267 = vpop.permute.xlu0 %1266
        %v1269 = vsel %vm707, %v1265, 0
        %v1272 = vsel %vm745, %v1267, 0
        %1274 = vmatpush.bf16.msra.mxu0 0
        %1275 = vmatpush.bf16.msra.mxu0 0
        %1276 = vmatpush.bf16.msra.mxu0 0
        %1277 = vmatpush.bf16.msra.mxu0 0
        %1278 = vmatpush.bf16.msra.mxu0 0
        %1279 = vmatpush.bf16.msra.mxu0 0
        %1280 = vmatpush.bf16.msra.mxu0 0
        %1281 = vmatpush.bf16.msra.mxu0 %v1272
        %1282 = vmatmul.bf16.gmra.mxu0 %v1269
        %v1283 = vpop.f32.mrf.mxu0
        %v1284 = vadd.f32 0.0, %v1283
        %v1285 = vpop.f32.mrf.mxu0
        %1286 = vdwg.mxu0
        %v1287 = vpack.c.bf16 %v1284, %v1284
        %1289 = vrot.lane.b32.xlu0 %v1287, 16
        %v1290 = vpop.permute.xlu0 %1289
        %1292 = vst.msk [vmem:[#allocation2] sm:$0xf] %vm894, %v1290
        %1293 = vrot.lane.b32.xlu0 %v1166, 104
        %v1294 = vpop.permute.xlu0 %1293
        %1295 = vrot.lane.b32.xlu0 %v1140, 104
        %v1296 = vpop.permute.xlu0 %1295
        %v1298 = vsel %vm707, %v1294, 0
        %v1301 = vsel %vm707, %v1296, 0
        %1303 = vmatpush.bf16.xpose.msra.mxu0 0
        %1304 = vmatpush.bf16.xpose.msra.mxu0 0
        %1305 = vmatpush.bf16.xpose.msra.mxu0 0
        %1306 = vmatpush.bf16.xpose.msra.mxu0 0
        %1307 = vmatpush.bf16.xpose.msra.mxu0 0
        %1308 = vmatpush.bf16.xpose.msra.mxu0 0
        %1309 = vmatpush.bf16.xpose.msra.mxu0 0
        %1310 = vmatpush.bf16.xpose.msra.mxu0 %v1301
        %1311 = vmatmul.bf16.gmra.mxu0 %v1298
        %v1312 = vpop.f32.mrf.mxu0
        %v1313 = vadd.f32 0.0, %v1312
        %v1314 = vpop.f32.mrf.mxu0
        %1315 = vdwg.mxu0
        %v1316 = vsel %vm1124, %v1313, -1000000.0
        %v1317 = vsel %vm707, %v1316, -inf
        %1318 = vmax.xlane.f32.xlu0 %v1317
        %v1319 = vpop.xlane.xlu0 %1318
        %v1320 = vsub.f32 %v1316, %v1319
        %v1321 = vmul.f32 %v1320, 1.442695
        %v1322 = vpow.pop %v1321
        %v1323 = vsel %vm707, %v1322, 0.0
        %1324 = vadd.xlane.f32.xlu0 %v1323
        %v1325 = vpop.xlane.xlu0 %1324
        %v1326 = vrcp.pop %v1325
        %v1327 = vmul.f32 %v1322, %v1326
        %v1328 = vpack.c.bf16 %v1327, %v1327
        %1329 = vrot.lane.b32.xlu0 %v1140, 72
        %v1330 = vpop.permute.xlu0 %1329
        %v1332 = vsel %vm707, %v1328, 0
        %v1335 = vsel %vm745, %v1330, 0
        %1337 = vmatpush.bf16.msra.mxu0 0
        %1338 = vmatpush.bf16.msra.mxu0 0
        %1339 = vmatpush.bf16.msra.mxu0 0
        %1340 = vmatpush.bf16.msra.mxu0 0
        %1341 = vmatpush.bf16.msra.mxu0 0
        %1342 = vmatpush.bf16.msra.mxu0 0
        %1343 = vmatpush.bf16.msra.mxu0 0
        %1344 = vmatpush.bf16.msra.mxu0 %v1335
        %1345 = vmatmul.bf16.gmra.mxu0 %v1332
        %v1346 = vpop.f32.mrf.mxu0
        %v1347 = vadd.f32 0.0, %v1346
        %v1348 = vpop.f32.mrf.mxu0
        %1349 = vdwg.mxu0
        %v1350 = vpack.c.bf16 %v1347, %v1347
        %1352 = vrot.lane.b32.xlu0 %v1350, 24
        %v1353 = vpop.permute.xlu0 %1352
        %1355 = vst.msk [vmem:[#allocation2] sm:$0xf] %vm958, %v1353
        %v1356 = vld [vmem:[#allocation2] sm:$0xf]
        %v1357 = vld [vmem:[#allocation11] sm:$0xf]
        %v1358 = vld [vmem:[#allocation11 + $0x4] sm:$0xf]
        %v1359 = vld [vmem:[#allocation11 + $0x8] sm:$0xf]
        %v1360 = vld [vmem:[#allocation11 + $0xc] sm:$0xf]
        %v1365 = vunpack.c.l.b16 %v1357
        %v1366 = vunpack.c.l.b16 %v1358
        %v1367 = vunpack.c.l.b16 %v1359
        %v1368 = vunpack.c.l.b16 %v1360
        %v1369 = vpack.c.b16 %v1366, %v1365
        %v1370 = vpack.c.b16 %v1368, %v1367
        %v1374 = vsel %vm677, %v1356, 0
        %1376 = vmatpush.bf16.msra.mxu0 0
        %1377 = vmatpush.bf16.msra.mxu0 0
        %1378 = vmatpush.bf16.msra.mxu0 0
        %1379 = vmatpush.bf16.msra.mxu0 0
        %1380 = vmatpush.bf16.msra.mxu0 0
        %1381 = vmatpush.bf16.msra.mxu0 0
        %1382 = vmatpush.bf16.msra.mxu0 %v1370
        %1383 = vmatpush.bf16.msra.mxu0 %v1369
        %1384 = vmatmul.bf16.gmra.mxu0 %v1374
        %v1385 = vpop.f32.mrf.mxu0
        %v1386 = vadd.f32 %v1031, %v1385
        %v1387 = vpop.f32.mrf.mxu0
        %1388 = vdwg.mxu0
        %v1389 = vld [vmem:[%s14] sm:$0x1]
        %v1390 = vld [vmem:[%s15] sm:$0x1]
        %v1391 = vsel %vm677, %v1386, 0.0
        %1392 = vadd.xlane.f32.xlu0 %v1391
        %v1393 = vpop.xlane.xlu0 %1392
        %v1394 = vmul.f32 %v1393, %v1004
        %v1395 = vsub.f32 %v1386, %v1394
        %v1396 = vmul.f32 %v1395, %v1395
        %v1397 = vsel %vm677, %v1396, 0.0
        %1398 = vadd.xlane.f32.xlu0 %v1397
        %v1399 = vpop.xlane.xlu0 %1398
        %v1400 = vmul.f32 %v1399, %v1004
        %v1401 = vadd.f32 %v1400, 1e-05
        %v1402 = vrsqrt.pop %v1401
        %v1403 = vmul.f32 %v1402, %v1401
        %v1404 = vmul.f32 %v1403, %v1402
        %v1405 = vmul.f32 0.5, %v1404
        %v1406 = vsub.f32 1.5, %v1405
        %v1407 = vmul.f32 %v1402, %v1406
        %vm1408 = vweird.f32 %v1401
        %vm1409 = vweird.f32 %v1402
        %vm1410 = vmor %vm1408, %vm1409
        %v1411 = vsel %vm1410, %v1402, %v1407
        %v1412 = vmul.f32 %v1395, %v1411
        %v1414 = vperm.slane %v1389, 0
        %v1416 = vmul.f32 %v1412, %v1414
        %v1418 = vperm.slane %v1390, 0
        %v1420 = vadd.f32 %v1416, %v1418
        %v1421 = vpack.c.bf16 %v1420, %v1420
        %v1422 = vld [vmem:[#allocation13] sm:$0xf]
        %v1423 = vld [vmem:[#allocation13 + $0x4] sm:$0xf]
        %v1424 = vld [vmem:[#allocation13 + $0x8] sm:$0xf]
        %v1425 = vld [vmem:[#allocation13 + $0xc] sm:$0xf]
        %v1426 = vld [vmem:[%s9] sm:$0x1]
        %v1428 = vperm.slane %v1426, 0
        %v1434 = vunpack.c.l.b16 %v1422
        %v1435 = vunpack.c.l.b16 %v1423
        %v1436 = vunpack.c.l.b16 %v1424
        %v1437 = vunpack.c.l.b16 %v1425
        %v1438 = vpack.c.b16 %v1435, %v1434
        %v1439 = vpack.c.b16 %v1437, %v1436
        %v1443 = vsel %vm677, %v1421, 0
        %1445 = vmatpush.bf16.msra.mxu0 0
        %1446 = vmatpush.bf16.msra.mxu0 0
        %1447 = vmatpush.bf16.msra.mxu0 0
        %1448 = vmatpush.bf16.msra.mxu0 0
        %1449 = vmatpush.bf16.msra.mxu0 0
        %1450 = vmatpush.bf16.msra.mxu0 0
        %1451 = vmatpush.bf16.msra.mxu0 %v1439
        %1452 = vmatpush.bf16.msra.mxu0 %v1438
        %1453 = vmatmul.bf16.gmra.mxu0 %v1443
        %v1454 = vpop.f32.mrf.mxu0
        %v1455 = vadd.f32 %v1428, %v1454
        %v1456 = vpop.f32.mrf.mxu0
        %1457 = vdwg.mxu0
        %v1458 = vmax.f32 %v1455, 0.0
        %v1459 = vpack.c.bf16 %v1458, %v1458
        %v1460 = vld [vmem:[%s10] sm:$0xf]
        %v1461 = vld [vmem:[%s10 + $0x4] sm:$0xf]
        %v1462 = vld [vmem:[%s10 + $0x8] sm:$0xf]
        %v1463 = vld [vmem:[%s10 + $0xc] sm:$0xf]
        %v1464 = vld [vmem:[%s10 + $0x10] sm:$0xf]
        %v1465 = vld [vmem:[%s10 + $0x14] sm:$0xf]
        %v1466 = vld [vmem:[%s10 + $0x18] sm:$0xf]
        %v1467 = vld [vmem:[%s10 + $0x1c] sm:$0xf]
        %v1468 = vld [vmem:[%s11] sm:$0x1]
        %v1470 = vperm.slane %v1468, 0
        %v1480 = vunpack.c.l.b16 %v1460
        %v1481 = vunpack.c.l.b16 %v1461
        %v1482 = vunpack.c.l.b16 %v1462
        %v1483 = vunpack.c.l.b16 %v1463
        %v1484 = vunpack.c.l.b16 %v1464
        %v1485 = vunpack.c.l.b16 %v1465
        %v1486 = vunpack.c.l.b16 %v1466
        %v1487 = vunpack.c.l.b16 %v1467
        %v1488 = vpack.c.b16 %v1481, %v1480
        %v1489 = vpack.c.b16 %v1483, %v1482
        %v1490 = vpack.c.b16 %v1485, %v1484
        %v1491 = vpack.c.b16 %v1487, %v1486
        %vm1496 = vcmask 523264
        %v1498 = vsel %vm1496, %v1459, 0
        %1500 = vmatpush.bf16.msra.mxu0 0
        %1501 = vmatpush.bf16.msra.mxu0 0
        %1502 = vmatpush.bf16.msra.mxu0 0
        %1503 = vmatpush.bf16.msra.mxu0 0
        %1504 = vmatpush.bf16.msra.mxu0 %v1491
        %1505 = vmatpush.bf16.msra.mxu0 %v1490
        %1506 = vmatpush.bf16.msra.mxu0 %v1489
        %1507 = vmatpush.bf16.msra.mxu0 %v1488
        %1508 = vmatmul.bf16.gmra.mxu0 %v1498
        %v1509 = vpop.f32.mrf.mxu0
        %v1510 = vadd.f32 %v1470, %v1509
        %v1511 = vpop.f32.mrf.mxu0
        %1512 = vdwg.mxu0
        %v1513 = vadd.f32 %v1510, %v1420
        %v1514 = vld [vmem:[%s16] sm:$0x1]
        %v1515 = vld [vmem:[%s17] sm:$0x1]
        %v1516 = vsel %vm677, %v1513, 0.0
        %1517 = vadd.xlane.f32.xlu0 %v1516
        %v1518 = vpop.xlane.xlu0 %1517
        %v1519 = vmul.f32 %v1518, %v1004
        %v1520 = vsub.f32 %v1513, %v1519
        %v1521 = vmul.f32 %v1520, %v1520
        %v1522 = vsel %vm677, %v1521, 0.0
        %1523 = vadd.xlane.f32.xlu0 %v1522
        %v1524 = vpop.xlane.xlu0 %1523
        %v1525 = vmul.f32 %v1524, %v1004
        %v1526 = vadd.f32 %v1525, 1e-05
        %v1527 = vrsqrt.pop %v1526
        %v1528 = vmul.f32 %v1527, %v1526
        %v1529 = vmul.f32 %v1528, %v1527
        %v1530 = vmul.f32 0.5, %v1529
        %v1531 = vsub.f32 1.5, %v1530
        %v1532 = vmul.f32 %v1527, %v1531
        %vm1533 = vweird.f32 %v1526
        %vm1534 = vweird.f32 %v1527
        %vm1535 = vmor %vm1533, %vm1534
        %v1536 = vsel %vm1535, %v1527, %v1532
        %v1537 = vmul.f32 %v1520, %v1536
        %v1539 = vperm.slane %v1514, 0
        %v1541 = vmul.f32 %v1537, %v1539
        %v1543 = vperm.slane %v1515, 0
        %v1545 = vadd.f32 %v1541, %v1543
        %1546 = vst.msk [vmem:[%s653] sm:$0xff] %vm677, %v1545
        %s1547 = sand.u32 %s420, 1
        %s1548 = scalar_lea.sflag [#allocation7], %s1547
        %s1549 = sand.u32 %s420, 1
        %s1550 = smul.addr %s1549, 8
        %s1551 = scalar_lea.vmem [#allocation14], %s1550
        // Predicated region
        $region109: #{tpu_custom_call.1} parent=87 // pred_check
          %p1552 = pneg %p430
        $region110: #{tpu_custom_call.1} parent=87 // pred_check_branch
          %1554 = sbr.rel (%p1552) target = $region112
        $region111: #{tpu_custom_call.1} parent=87 // pred_region
          %1556 = vsyncadd %s1548, 0
          %s1557 = smul.addr %s45, 8
          %s1558 = scalar_lea.hbm %s18, %s1557
          %s1560 = sshll.u32 %s1551, 4
          %s1561 = int_to_ptr.vmem [resolvable:$true] %s1560
          %s1562 = sshll.u32 %s1558, 4
          %s1563 = int_to_ptr.hbm [resolvable:$true] %s1562
          %1565 = dma.vmem_to_hbm [thread:$0]  %s1561, 128, %s1563, %s1548
        $region112: #{tpu_custom_call.1} parent=87 // pred_fallthru
          _
      $region88: #{tpu_custom_call.1} parent=5 // pred_fallthru
        _
      %p1566 = scmp.le.s32.totalorder 2, %s40
      // Predicated region
      $region113: #{tpu_custom_call.1} parent=5 // pred_check
        %p1567 = pneg %p1566
      $region114: #{tpu_custom_call.1} parent=5 // pred_check_branch
        %1569 = sbr.rel (%p1567) target = $region116
      $region115: #{tpu_custom_call.1} parent=5 // pred_region
        %s1570 = ssub.s32 %s40, 2
        // Predicated region
        $region117: #{tpu_custom_call.1} parent=115 // pred_check
          %p1571 = pneg %p436
        $region118: #{tpu_custom_call.1} parent=115 // pred_check_branch
          %1573 = sbr.rel (%p1571) target = $region120
        $region119: #{tpu_custom_call.1} parent=115 // pred_region
          %s1574 = sand.u32 %s421, 1
          %s1575 = scalar_lea.sflag [#allocation7], %s1574
          %s1576 = sand.u32 %s421, 1
          %s1577 = smul.addr %s1576, 8
          %s1578 = scalar_lea.vmem [#allocation14], %s1577
          %1580 = dma.done %s1575, 128
        $region120: #{tpu_custom_call.1} parent=115 // pred_fallthru
          _
      $region116: #{tpu_custom_call.1} parent=5 // pred_fallthru
        _
    $region6: #{tpu_custom_call.1} parent=1 // loop_footer
      %s44 = sadd.s32 1, %s40
    $region7: #{tpu_custom_call.1} parent=1 // loop_footer_branch
      %39 = sbr.rel target = $region3
    $region8: #{tpu_custom_call.1} parent=1 // loop_exit
      _
    %1581 = vsyncpa [#allocation6], 1
    %s1582 = scalar_lea.sflag [#allocation6], 1
    %1583 = vsyncpa %s1582, 1
    %1584 = vsyncpa [#allocation9], 1
    %1585 = vsyncpa [#allocation12], 1
    %1586 = vsyncpa [#allocation7], 1
    %s1587 = scalar_lea.sflag [#allocation7], 1
    %1588 = vsyncpa %s1587, 1

// kernel: tpu_custom_call.1
$region0: #{tpu_custom_call.1}
  #allocation0 [shape = 'u32[]', space=smem, size = 0x4, offset = 0x4, fixed_abs, tag = 'smem constant byte address 0x4 - core index']
  #allocation1 [shape = 'u32[72,128]{1,0:T(1,128)}', space=vmem, size = 0x9000, scoped, tag = 'internal scratch']
  #allocation2 [shape = 'bf16[8,32]{1,0:T(8,128)(2,1)}', space=vmem, size = 0x800, scoped, tag = 'scratch operand']
  #allocation3 [shape = 's32[1]{0}', space=sflag, size = 0x4, scoped, tag = 'scoped memory for tpu_custom_call.1']
  #allocation4 [shape = 'u8[512]{0}', space=smem, size = 0x200, scoped, tag = 'prefetched SMEM operand 0']
  %s0 = inlined_call_operand.hbm [shape: s32[2], index: 0, kind: input, shape index: {}]
  %s1 = inlined_call_operand.vmem [shape: f32[16,32], index: 1, kind: input, shape index: {}]
  %s2 = inlined_call_operand.hbm [shape: bf16[16,32], index: 2, kind: input, shape index: {}]
  %s3 = inlined_call_operand.vmem [shape: bf16[32,96], index: 3, kind: input, shape index: {}]
  %s4 = inlined_call_operand.vmem [shape: bf16[32,32], index: 4, kind: input, shape index: {}]
  %s5 = inlined_call_operand.hbm [shape: bf16[32,32], index: 5, kind: input, shape index: {}]
  %s6 = inlined_call_operand.hbm [shape: bf16[32,64], index: 6, kind: input, shape index: {}]
  %s7 = inlined_call_operand.hbm [shape: bf16[32,32], index: 7, kind: input, shape index: {}]
  %s8 = inlined_call_operand.hbm [shape: bf16[32,64], index: 8, kind: input, shape index: {}]
  %s9 = inlined_call_operand.vmem [shape: f32[1,64], index: 9, kind: input, shape index: {}]
  %s10 = inlined_call_operand.vmem [shape: bf16[64,32], index: 10, kind: input, shape index: {}]
  %s11 = inlined_call_operand.vmem [shape: f32[1,32], index: 11, kind: input, shape index: {}]
  %s12 = inlined_call_operand.vmem [shape: f32[1,32], index: 12, kind: input, shape index: {}]
  %s13 = inlined_call_operand.vmem [shape: f32[1,32], index: 13, kind: input, shape index: {}]
  %s14 = inlined_call_operand.vmem [shape: f32[1,32], index: 14, kind: input, shape index: {}]
  %s15 = inlined_call_operand.vmem [shape: f32[1,32], index: 15, kind: input, shape index: {}]
  %s16 = inlined_call_operand.vmem [shape: f32[1,32], index: 16, kind: input, shape index: {}]
  %s17 = inlined_call_operand.vmem [shape: f32[1,32], index: 17, kind: input, shape index: {}]
  %s18 = inlined_call_operand.hbm [shape: f32[16,32], index: 18, kind: output, shape index: {}]
  %s19 = sld [smem:[#allocation0]]
  $region121: #{tpu_custom_call.1} parent=0
    _
  %s21 = ssub.s32 1, %s19
  %s22 = scalar_select 0, %s21, %s19
  %s24 = sshll.u32 %s0, 4
  %s25 = int_to_ptr.hbm [resolvable:$true] %s24
  %27 = dma.hbm_to_smem %s25, 16, [#allocation4], [#allocation3]
  %29 = dma.done [#allocation3], 16
  %30 = sfence
  $region1: #{tpu_custom_call.1} parent=0
    #allocation5 [shape = 'u8[4096]{0}', space=vmem, size = 0x1000, scoped, tag = 'input window, operand 2']
    #allocation6 [shape = 's32[2]{0}', space=sflag, size = 0x8, scoped, tag = 'scoped memory for tpu_custom_call.1']
    #allocation7 [shape = 's32[2]{0}', space=sflag, size = 0x8, scoped, tag = 'scoped memory for tpu_custom_call.1']
    #allocation8 [shape = 'u8[8192]{0}', space=vmem, size = 0x2000, scoped, tag = 'input window, operand 5, single buffered']
    #allocation9 [shape = 's32[1]{0}', space=sflag, size = 0x4, scoped, tag = 'scoped memory for tpu_custom_call.1']
    #allocation10 [shape = 'u8[8192]{0}', space=vmem, size = 0x2000, scoped, tag = 'input window, operand 6, single buffered']
    #allocation11 [shape = 'u8[8192]{0}', space=vmem, size = 0x2000, scoped, tag = 'input window, operand 7, single buffered']
    #allocation12 [shape = 's32[1]{0}', space=sflag, size = 0x4, scoped, tag = 'scoped memory for tpu_custom_call.1']
    #allocation13 [shape = 'u8[8192]{0}', space=vmem, size = 0x2000, scoped, tag = 'input window, operand 8, single buffered']
    #allocation14 [shape = 'u8[8192]{0}', space=vmem, size = 0x2000, scoped, tag = 'output window, operand 0']
    %31 = vsyncpa [#allocation6], 0
    %s32 = scalar_lea.sflag [#allocation6], 1
    %33 = vsyncpa %s32, 0
    %34 = vsyncpa [#allocation9], 0
    %35 = vsyncpa [#allocation12], 0
    %36 = vsyncpa [#allocation7], 0
    %s37 = scalar_lea.sflag [#allocation7], 1
    %38 = vsyncpa %s37, 0
    loop: start=0, step=1, limit=4
    $region2: #{tpu_custom_call.1} parent=1 // loop_pre_header
      _
    $region3: #{tpu_custom_call.1} parent=1 // loop_header
      %s40 = sphi 0, %s44
      %p41 = scmp.ge.s32.totalorder %s40, 4
      %s50 = sphi 0, %s52
      %s53 = sphi 0, %s50
      %s54 = sphi 0, %s53
      %s70 = sphi 0, %s54
      %s76 = sphi 0, %s78
      %s79 = sphi 0, %s76
      %s80 = sphi 0, %s79
      %s96 = sphi 0, %s80
      %s100 = sphi 0, %s100
      %s102 = sphi 0, %s100
      %s103 = sphi 0, %s102
      %s117 = sphi 0, %s103
      %s121 = sphi 0, %s121
      %s123 = sphi 0, %s121
      %s124 = sphi 0, %s123
      %s138 = sphi 0, %s124
      %s142 = sphi 0, %s142
      %s144 = sphi 0, %s142
      %s145 = sphi 0, %s144
      %s159 = sphi 0, %s145
      %s163 = sphi 0, %s163
      %s165 = sphi 0, %s163
      %s166 = sphi 0, %s165
      %s180 = sphi 0, %s166
      %s184 = sphi 0, %s184
      %s186 = sphi 0, %s184
      %s187 = sphi 0, %s186
      %s201 = sphi 0, %s187
      %s205 = sphi 0, %s205
      %s207 = sphi 0, %s205
      %s208 = sphi 0, %s207
      %s222 = sphi 0, %s208
      %s226 = sphi 0, %s226
      %s228 = sphi 0, %s226
      %s229 = sphi 0, %s228
      %s243 = sphi 0, %s229
      %s247 = sphi 0, %s247
      %s249 = sphi 0, %s247
      %s250 = sphi 0, %s249
      %s264 = sphi 0, %s250
      %s268 = sphi 0, %s268
      %s270 = sphi 0, %s268
      %s271 = sphi 0, %s270
      %s285 = sphi 0, %s271
      %s289 = sphi 0, %s289
      %s291 = sphi 0, %s289
      %s292 = sphi 0, %s291
      %s306 = sphi 0, %s292
      %s310 = sphi 0, %s310
      %s312 = sphi 0, %s310
      %s313 = sphi 0, %s312
      %s327 = sphi 0, %s313
      %s331 = sphi 0, %s331
      %s333 = sphi 0, %s331
      %s334 = sphi 0, %s333
      %s348 = sphi 0, %s334
      %s352 = sphi 0, %s352
      %s354 = sphi 0, %s352
      %s355 = sphi 0, %s354
      %s369 = sphi 0, %s355
      %s373 = sphi 0, %s373
      %s375 = sphi 0, %s373
      %s376 = sphi 0, %s375
      %s390 = sphi 0, %s376
      %s394 = sphi 0, %s394
      %s396 = sphi 0, %s394
      %s397 = sphi 0, %s396
      %s411 = sphi 0, %s397
      %s417 = sphi 0, %s419
      %s420 = sphi 0, %s417
      %s421 = sphi 0, %s420
      %s437 = sphi 0, %s421
    $region4: #{tpu_custom_call.1} parent=1 // loop_header_branch
      %43 = sbr.rel (%p41) target = $region8
    $region5: #{tpu_custom_call.1} parent=1 // loop_body
      %s45 = ssub.s32 %s40, 1
      %s46 = ssub.s32 %s40, 2
      %s47 = sadd.s32 %s40, 1
      %s48 = ssub.s32 %s40, %s47
      %p49 = scmp.eq.s32.totalorder %s48, 0
      %s51 = sadd.s32 %s50, 1
      %s52 = scalar_select %p49, %s50, %s51
      %p55 = pneg %p49
      %p56 = scmp.eq.s32.totalorder %s40, 1
      %p57 = por %p55, %p56
      %p58 = scmp.ne.s32.totalorder %s50, %s53
      %p59 = scmp.eq.s32.totalorder %s40, 0
      %p60 = por %p58, %p59
      %p61 = scmp.ne.s32.totalorder %s50, %s53
      %p62 = scmp.eq.s32.totalorder %s45, 1
      %p63 = por %p61, %p62
      %p64 = scmp.ne.s32.totalorder %s53, %s54
      %p65 = scmp.eq.s32.totalorder %s45, 0
      %p66 = por %p64, %p65
      %p67 = scmp.ne.s32.totalorder %s53, %s54
      %p68 = scmp.eq.s32.totalorder %s46, 1
      %p69 = por %p67, %p68
      %p71 = scmp.ne.s32.totalorder %s54, %s70
      %p72 = scmp.eq.s32.totalorder %s46, 0
      %p73 = por %p71, %p72
      %s74 = ssub.s32 %s40, %s47
      %p75 = scmp.eq.s32.totalorder %s74, 0
      %s77 = sadd.s32 %s76, 1
      %s78 = scalar_select %p75, %s76, %s77
      %p81 = pneg %p75
      %p82 = scmp.eq.s32.totalorder %s40, 1
      %p83 = por %p81, %p82
      %p84 = scmp.ne.s32.totalorder %s76, %s79
      %p85 = scmp.eq.s32.totalorder %s40, 0
      %p86 = por %p84, %p85
      %p87 = scmp.ne.s32.totalorder %s76, %s79
      %p88 = scmp.eq.s32.totalorder %s45, 1
      %p89 = por %p87, %p88
      %p90 = scmp.ne.s32.totalorder %s79, %s80
      %p91 = scmp.eq.s32.totalorder %s45, 0
      %p92 = por %p90, %p91
      %p93 = scmp.ne.s32.totalorder %s79, %s80
      %p94 = scmp.eq.s32.totalorder %s46, 1
      %p95 = por %p93, %p94
      %p97 = scmp.ne.s32.totalorder %s80, %s96
      %p98 = scmp.eq.s32.totalorder %s46, 0
      %p99 = por %p97, %p98
      %s101 = sadd.s32 %s100, 1
      %p104 = scmp.eq.s32.totalorder %s40, 1
      %p105 = scmp.ne.s32.totalorder %s100, %s102
      %p106 = scmp.eq.s32.totalorder %s40, 0
      %p107 = por %p105, %p106
      %p108 = scmp.ne.s32.totalorder %s100, %s102
      %p109 = scmp.eq.s32.totalorder %s45, 1
      %p110 = por %p108, %p109
      %p111 = scmp.ne.s32.totalorder %s102, %s103
      %p112 = scmp.eq.s32.totalorder %s45, 0
      %p113 = por %p111, %p112
      %p114 = scmp.ne.s32.totalorder %s102, %s103
      %p115 = scmp.eq.s32.totalorder %s46, 1
      %p116 = por %p114, %p115
      %p118 = scmp.ne.s32.totalorder %s103, %s117
      %p119 = scmp.eq.s32.totalorder %s46, 0
      %p120 = por %p118, %p119
      %s122 = sadd.s32 %s121, 1
      %p125 = scmp.eq.s32.totalorder %s40, 1
      %p126 = scmp.ne.s32.totalorder %s121, %s123
      %p127 = scmp.eq.s32.totalorder %s40, 0
      %p128 = por %p126, %p127
      %p129 = scmp.ne.s32.totalorder %s121, %s123
      %p130 = scmp.eq.s32.totalorder %s45, 1
      %p131 = por %p129, %p130
      %p132 = scmp.ne.s32.totalorder %s123, %s124
      %p133 = scmp.eq.s32.totalorder %s45, 0
      %p134 = por %p132, %p133
      %p135 = scmp.ne.s32.totalorder %s123, %s124
      %p136 = scmp.eq.s32.totalorder %s46, 1
      %p137 = por %p135, %p136
      %p139 = scmp.ne.s32.totalorder %s124, %s138
      %p140 = scmp.eq.s32.totalorder %s46, 0
      %p141 = por %p139, %p140
      %s143 = sadd.s32 %s142, 1
      %p146 = scmp.eq.s32.totalorder %s40, 1
      %p147 = scmp.ne.s32.totalorder %s142, %s144
      %p148 = scmp.eq.s32.totalorder %s40, 0
      %p149 = por %p147, %p148
      %p150 = scmp.ne.s32.totalorder %s142, %s144
      %p151 = scmp.eq.s32.totalorder %s45, 1
      %p152 = por %p150, %p151
      %p153 = scmp.ne.s32.totalorder %s144, %s145
      %p154 = scmp.eq.s32.totalorder %s45, 0
      %p155 = por %p153, %p154
      %p156 = scmp.ne.s32.totalorder %s144, %s145
      %p157 = scmp.eq.s32.totalorder %s46, 1
      %p158 = por %p156, %p157
      %p160 = scmp.ne.s32.totalorder %s145, %s159
      %p161 = scmp.eq.s32.totalorder %s46, 0
      %p162 = por %p160, %p161
      %s164 = sadd.s32 %s163, 1
      %p167 = scmp.eq.s32.totalorder %s40, 1
      %p168 = scmp.ne.s32.totalorder %s163, %s165
      %p169 = scmp.eq.s32.totalorder %s40, 0
      %p170 = por %p168, %p169
      %p171 = scmp.ne.s32.totalorder %s163, %s165
      %p172 = scmp.eq.s32.totalorder %s45, 1
      %p173 = por %p171, %p172
      %p174 = scmp.ne.s32.totalorder %s165, %s166
      %p175 = scmp.eq.s32.totalorder %s45, 0
      %p176 = por %p174, %p175
      %p177 = scmp.ne.s32.totalorder %s165, %s166
      %p178 = scmp.eq.s32.totalorder %s46, 1
      %p179 = por %p177, %p178
      %p181 = scmp.ne.s32.totalorder %s166, %s180
      %p182 = scmp.eq.s32.totalorder %s46, 0
      %p183 = por %p181, %p182
      %s185 = sadd.s32 %s184, 1
      %p188 = scmp.eq.s32.totalorder %s40, 1
      %p189 = scmp.ne.s32.totalorder %s184, %s186
      %p190 = scmp.eq.s32.totalorder %s40, 0
      %p191 = por %p189, %p190
      %p192 = scmp.ne.s32.totalorder %s184, %s186
      %p193 = scmp.eq.s32.totalorder %s45, 1
      %p194 = por %p192, %p193
      %p195 = scmp.ne.s32.totalorder %s186, %s187
      %p196 = scmp.eq.s32.totalorder %s45, 0
      %p197 = por %p195, %p196
      %p198 = scmp.ne.s32.totalorder %s186, %s187
      %p199 = scmp.eq.s32.totalorder %s46, 1
      %p200 = por %p198, %p199
      %p202 = scmp.ne.s32.totalorder %s187, %s201
      %p203 = scmp.eq.s32.totalorder %s46, 0
      %p204 = por %p202, %p203
      %s206 = sadd.s32 %s205, 1
      %p209 = scmp.eq.s32.totalorder %s40, 1
      %p210 = scmp.ne.s32.totalorder %s205, %s207
      %p211 = scmp.eq.s32.totalorder %s40, 0
      %p212 = por %p210, %p211
      %p213 = scmp.ne.s32.totalorder %s205, %s207
      %p214 = scmp.eq.s32.totalorder %s45, 1
      %p215 = por %p213, %p214
      %p216 = scmp.ne.s32.totalorder %s207, %s208
      %p217 = scmp.eq.s32.totalorder %s45, 0
      %p218 = por %p216, %p217
      %p219 = scmp.ne.s32.totalorder %s207, %s208
      %p220 = scmp.eq.s32.totalorder %s46, 1
      %p221 = por %p219, %p220
      %p223 = scmp.ne.s32.totalorder %s208, %s222
      %p224 = scmp.eq.s32.totalorder %s46, 0
      %p225 = por %p223, %p224
      %s227 = sadd.s32 %s226, 1
      %p230 = scmp.eq.s32.totalorder %s40, 1
      %p231 = scmp.ne.s32.totalorder %s226, %s228
      %p232 = scmp.eq.s32.totalorder %s40, 0
      %p233 = por %p231, %p232
      %p234 = scmp.ne.s32.totalorder %s226, %s228
      %p235 = scmp.eq.s32.totalorder %s45, 1
      %p236 = por %p234, %p235
      %p237 = scmp.ne.s32.totalorder %s228, %s229
      %p238 = scmp.eq.s32.totalorder %s45, 0
      %p239 = por %p237, %p238
      %p240 = scmp.ne.s32.totalorder %s228, %s229
      %p241 = scmp.eq.s32.totalorder %s46, 1
      %p242 = por %p240, %p241
      %p244 = scmp.ne.s32.totalorder %s229, %s243
      %p245 = scmp.eq.s32.totalorder %s46, 0
      %p246 = por %p244, %p245
      %s248 = sadd.s32 %s247, 1
      %p251 = scmp.eq.s32.totalorder %s40, 1
      %p252 = scmp.ne.s32.totalorder %s247, %s249
      %p253 = scmp.eq.s32.totalorder %s40, 0
      %p254 = por %p252, %p253
      %p255 = scmp.ne.s32.totalorder %s247, %s249
      %p256 = scmp.eq.s32.totalorder %s45, 1
      %p257 = por %p255, %p256
      %p258 = scmp.ne.s32.totalorder %s249, %s250
      %p259 = scmp.eq.s32.totalorder %s45, 0
      %p260 = por %p258, %p259
      %p261 = scmp.ne.s32.totalorder %s249, %s250
      %p262 = scmp.eq.s32.totalorder %s46, 1
      %p263 = por %p261, %p262
      %p265 = scmp.ne.s32.totalorder %s250, %s264
      %p266 = scmp.eq.s32.totalorder %s46, 0
      %p267 = por %p265, %p266
      %s269 = sadd.s32 %s268, 1
      %p272 = scmp.eq.s32.totalorder %s40, 1
      %p273 = scmp.ne.s32.totalorder %s268, %s270
      %p274 = scmp.eq.s32.totalorder %s40, 0
      %p275 = por %p273, %p274
      %p276 = scmp.ne.s32.totalorder %s268, %s270
      %p277 = scmp.eq.s32.totalorder %s45, 1
      %p278 = por %p276, %p277
      %p279 = scmp.ne.s32.totalorder %s270, %s271
      %p280 = scmp.eq.s32.totalorder %s45, 0
      %p281 = por %p279, %p280
      %p282 = scmp.ne.s32.totalorder %s270, %s271
      %p283 = scmp.eq.s32.totalorder %s46, 1
      %p284 = por %p282, %p283
      %p286 = scmp.ne.s32.totalorder %s271, %s285
      %p287 = scmp.eq.s32.totalorder %s46, 0
      %p288 = por %p286, %p287
      %s290 = sadd.s32 %s289, 1
      %p293 = scmp.eq.s32.totalorder %s40, 1
      %p294 = scmp.ne.s32.totalorder %s289, %s291
      %p295 = scmp.eq.s32.totalorder %s40, 0
      %p296 = por %p294, %p295
      %p297 = scmp.ne.s32.totalorder %s289, %s291
      %p298 = scmp.eq.s32.totalorder %s45, 1
      %p299 = por %p297, %p298
      %p300 = scmp.ne.s32.totalorder %s291, %s292
      %p301 = scmp.eq.s32.totalorder %s45, 0
      %p302 = por %p300, %p301
      %p303 = scmp.ne.s32.totalorder %s291, %s292
      %p304 = scmp.eq.s32.totalorder %s46, 1
      %p305 = por %p303, %p304
      %p307 = scmp.ne.s32.totalorder %s292, %s306
      %p308 = scmp.eq.s32.totalorder %s46, 0
      %p309 = por %p307, %p308
      %s311 = sadd.s32 %s310, 1
      %p314 = scmp.eq.s32.totalorder %s40, 1
      %p315 = scmp.ne.s32.totalorder %s310, %s312
      %p316 = scmp.eq.s32.totalorder %s40, 0
      %p317 = por %p315, %p316
      %p318 = scmp.ne.s32.totalorder %s310, %s312
      %p319 = scmp.eq.s32.totalorder %s45, 1
      %p320 = por %p318, %p319
      %p321 = scmp.ne.s32.totalorder %s312, %s313
      %p322 = scmp.eq.s32.totalorder %s45, 0
      %p323 = por %p321, %p322
      %p324 = scmp.ne.s32.totalorder %s312, %s313
      %p325 = scmp.eq.s32.totalorder %s46, 1
      %p326 = por %p324, %p325
      %p328 = scmp.ne.s32.totalorder %s313, %s327
      %p329 = scmp.eq.s32.totalorder %s46, 0
      %p330 = por %p328, %p329
      %s332 = sadd.s32 %s331, 1
      %p335 = scmp.eq.s32.totalorder %s40, 1
      %p336 = scmp.ne.s32.totalorder %s331, %s333
      %p337 = scmp.eq.s32.totalorder %s40, 0
      %p338 = por %p336, %p337
      %p339 = scmp.ne.s32.totalorder %s331, %s333
      %p340 = scmp.eq.s32.totalorder %s45, 1
      %p341 = por %p339, %p340
      %p342 = scmp.ne.s32.totalorder %s333, %s334
      %p343 = scmp.eq.s32.totalorder %s45, 0
      %p344 = por %p342, %p343
      %p345 = scmp.ne.s32.totalorder %s333, %s334
      %p346 = scmp.eq.s32.totalorder %s46, 1
      %p347 = por %p345, %p346
      %p349 = scmp.ne.s32.totalorder %s334, %s348
      %p350 = scmp.eq.s32.totalorder %s46, 0
      %p351 = por %p349, %p350
      %s353 = sadd.s32 %s352, 1
      %p356 = scmp.eq.s32.totalorder %s40, 1
      %p357 = scmp.ne.s32.totalorder %s352, %s354
      %p358 = scmp.eq.s32.totalorder %s40, 0
      %p359 = por %p357, %p358
      %p360 = scmp.ne.s32.totalorder %s352, %s354
      %p361 = scmp.eq.s32.totalorder %s45, 1
      %p362 = por %p360, %p361
      %p363 = scmp.ne.s32.totalorder %s354, %s355
      %p364 = scmp.eq.s32.totalorder %s45, 0
      %p365 = por %p363, %p364
      %p366 = scmp.ne.s32.totalorder %s354, %s355
      %p367 = scmp.eq.s32.totalorder %s46, 1
      %p368 = por %p366, %p367
      %p370 = scmp.ne.s32.totalorder %s355, %s369
      %p371 = scmp.eq.s32.totalorder %s46, 0
      %p372 = por %p370, %p371
      %s374 = sadd.s32 %s373, 1
      %p377 = scmp.eq.s32.totalorder %s40, 1
      %p378 = scmp.ne.s32.totalorder %s373, %s375
      %p379 = scmp.eq.s32.totalorder %s40, 0
      %p380 = por %p378, %p379
      %p381 = scmp.ne.s32.totalorder %s373, %s375
      %p382 = scmp.eq.s32.totalorder %s45, 1
      %p383 = por %p381, %p382
      %p384 = scmp.ne.s32.totalorder %s375, %s376
      %p385 = scmp.eq.s32.totalorder %s45, 0
      %p386 = por %p384, %p385
      %p387 = scmp.ne.s32.totalorder %s375, %s376
      %p388 = scmp.eq.s32.totalorder %s46, 1
      %p389 = por %p387, %p388
      %p391 = scmp.ne.s32.totalorder %s376, %s390
      %p392 = scmp.eq.s32.totalorder %s46, 0
      %p393 = por %p391, %p392
      %s395 = sadd.s32 %s394, 1
      %p398 = scmp.eq.s32.totalorder %s40, 1
      %p399 = scmp.ne.s32.totalorder %s394, %s396
      %p400 = scmp.eq.s32.totalorder %s40, 0
      %p401 = por %p399, %p400
      %p402 = scmp.ne.s32.totalorder %s394, %s396
      %p403 = scmp.eq.s32.totalorder %s45, 1
      %p404 = por %p402, %p403
      %p405 = scmp.ne.s32.totalorder %s396, %s397
      %p406 = scmp.eq.s32.totalorder %s45, 0
      %p407 = por %p405, %p406
      %p408 = scmp.ne.s32.totalorder %s396, %s397
      %p409 = scmp.eq.s32.totalorder %s46, 1
      %p410 = por %p408, %p409
      %p412 = scmp.ne.s32.totalorder %s397, %s411
      %p413 = scmp.eq.s32.totalorder %s46, 0
      %p414 = por %p412, %p413
      %s415 = ssub.s32 %s40, %s47
      %p416 = scmp.eq.s32.totalorder %s415, 0
      %s418 = sadd.s32 %s417, 1
      %s419 = scalar_select %p416, %s417, %s418
      %p422 = pneg %p416
      %p423 = scmp.eq.s32.totalorder %s40, 1
      %p424 = por %p422, %p423
      %p425 = scmp.ne.s32.totalorder %s417, %s420
      %p426 = scmp.eq.s32.totalorder %s40, 0
      %p427 = por %p425, %p426
      %p428 = scmp.ne.s32.totalorder %s417, %s420
      %p429 = scmp.eq.s32.totalorder %s45, 1
      %p430 = por %p428, %p429
      %p431 = scmp.ne.s32.totalorder %s420, %s421
      %p432 = scmp.eq.s32.totalorder %s45, 0
      %p433 = por %p431, %p432
      %p434 = scmp.ne.s32.totalorder %s420, %s421
      %p435 = scmp.eq.s32.totalorder %s46, 1
      %p436 = por %p434, %p435
      %p438 = scmp.ne.s32.totalorder %s421, %s437
      %p439 = scmp.eq.s32.totalorder %s46, 0
      %p440 = por %p438, %p439
      %p441 = scmp.le.s32.totalorder 1, %s40
      %p442 = scmp.lt.s32.totalorder %s40, 3
      %p443 = pnand %p441, %p442
      %p444 = pneg %p443
      // Predicated region
      $region9: #{tpu_custom_call.1} parent=5 // pred_check
        _
      $region10: #{tpu_custom_call.1} parent=5 // pred_check_branch
        %446 = sbr.rel (%p443) target = $region12
      $region11: #{tpu_custom_call.1} parent=5 // pred_region
        %s447 = ssub.s32 %s40, 1
        // Predicated region
        $region13: #{tpu_custom_call.1} parent=11 // pred_check
          %p448 = pneg %p113
        $region14: #{tpu_custom_call.1} parent=11 // pred_check_branch
          %450 = sbr.rel (%p448) target = $region16
        $region15: #{tpu_custom_call.1} parent=11 // pred_region
          _
        $region16: #{tpu_custom_call.1} parent=11 // pred_fallthru
          _
        // Predicated region
        $region17: #{tpu_custom_call.1} parent=11 // pred_check
          %p451 = pneg %p134
        $region18: #{tpu_custom_call.1} parent=11 // pred_check_branch
          %453 = sbr.rel (%p451) target = $region20
        $region19: #{tpu_custom_call.1} parent=11 // pred_region
          _
        $region20: #{tpu_custom_call.1} parent=11 // pred_fallthru
          _
        // Predicated region
        $region21: #{tpu_custom_call.1} parent=11 // pred_check
          %p454 = pneg %p155
        $region22: #{tpu_custom_call.1} parent=11 // pred_check_branch
          %456 = sbr.rel (%p454) target = $region24
        $region23: #{tpu_custom_call.1} parent=11 // pred_region
          %458 = vsyncadd [#allocation9], 0
          %s459 = sshll.u32 %s5, 4
          %s460 = int_to_ptr.hbm [resolvable:$true] %s459
          %s461 = sshll.u32 [#allocation8], 4
          %s462 = int_to_ptr.vmem [resolvable:$true] %s461
          %467 = dma.hbm_to_vmem [thread:$0]  %s460, 256, %s462, [#allocation9], 64, 64, 4
        $region24: #{tpu_custom_call.1} parent=11 // pred_fallthru
          _
        // Predicated region
        $region25: #{tpu_custom_call.1} parent=11 // pred_check
          %p468 = pneg %p176
        $region26: #{tpu_custom_call.1} parent=11 // pred_check_branch
          %470 = sbr.rel (%p468) target = $region28
        $region27: #{tpu_custom_call.1} parent=11 // pred_region
          %472 = vsyncadd [#allocation9], 0
          %s473 = sshll.u32 %s6, 4
          %s474 = int_to_ptr.hbm [resolvable:$true] %s473
          %s475 = sshll.u32 [#allocation10], 4
          %s476 = int_to_ptr.vmem [resolvable:$true] %s475
          %481 = dma.hbm_to_vmem [thread:$0]  %s474, 256, %s476, [#allocation9], 64, 64, 4
        $region28: #{tpu_custom_call.1} parent=11 // pred_fallthru
          _
        // Predicated region
        $region29: #{tpu_custom_call.1} parent=11 // pred_check
          %p482 = pneg %p197
        $region30: #{tpu_custom_call.1} parent=11 // pred_check_branch
          %484 = sbr.rel (%p482) target = $region32
        $region31: #{tpu_custom_call.1} parent=11 // pred_region
          %486 = vsyncadd [#allocation12], 0
          %s487 = sshll.u32 %s7, 4
          %s488 = int_to_ptr.hbm [resolvable:$true] %s487
          %s489 = sshll.u32 [#allocation11], 4
          %s490 = int_to_ptr.vmem [resolvable:$true] %s489
          %495 = dma.hbm_to_vmem [thread:$0]  %s488, 256, %s490, [#allocation12], 64, 64, 4
        $region32: #{tpu_custom_call.1} parent=11 // pred_fallthru
          _
        // Predicated region
        $region33: #{tpu_custom_call.1} parent=11 // pred_check
          %p496 = pneg %p218
        $region34: #{tpu_custom_call.1} parent=11 // pred_check_branch
          %498 = sbr.rel (%p496) target = $region36
        $region35: #{tpu_custom_call.1} parent=11 // pred_region
          %500 = vsyncadd [#allocation12], 0
          %s501 = sshll.u32 %s8, 4
          %s502 = int_to_ptr.hbm [resolvable:$true] %s501
          %s503 = sshll.u32 [#allocation13], 4
          %s504 = int_to_ptr.vmem [resolvable:$true] %s503
          %509 = dma.hbm_to_vmem [thread:$0]  %s502, 256, %s504, [#allocation12], 64, 64, 4
        $region36: #{tpu_custom_call.1} parent=11 // pred_fallthru
          _
        // Predicated region
        $region37: #{tpu_custom_call.1} parent=11 // pred_check
          %p510 = pneg %p239
        $region38: #{tpu_custom_call.1} parent=11 // pred_check_branch
          %512 = sbr.rel (%p510) target = $region40
        $region39: #{tpu_custom_call.1} parent=11 // pred_region
          _
        $region40: #{tpu_custom_call.1} parent=11 // pred_fallthru
          _
        // Predicated region
        $region41: #{tpu_custom_call.1} parent=11 // pred_check
          %p513 = pneg %p260
        $region42: #{tpu_custom_call.1} parent=11 // pred_check_branch
          %515 = sbr.rel (%p513) target = $region44
        $region43: #{tpu_custom_call.1} parent=11 // pred_region
          _
        $region44: #{tpu_custom_call.1} parent=11 // pred_fallthru
          _
        // Predicated region
        $region45: #{tpu_custom_call.1} parent=11 // pred_check
          %p516 = pneg %p281
        $region46: #{tpu_custom_call.1} parent=11 // pred_check_branch
          %518 = sbr.rel (%p516) target = $region48
        $region47: #{tpu_custom_call.1} parent=11 // pred_region
          _
        $region48: #{tpu_custom_call.1} parent=11 // pred_fallthru
          _
        // Predicated region
        $region49: #{tpu_custom_call.1} parent=11 // pred_check
          %p519 = pneg %p302
        $region50: #{tpu_custom_call.1} parent=11 // pred_check_branch
          %521 = sbr.rel (%p519) target = $region52
        $region51: #{tpu_custom_call.1} parent=11 // pred_region
          _
        $region52: #{tpu_custom_call.1} parent=11 // pred_fallthru
          _
        // Predicated region
        $region53: #{tpu_custom_call.1} parent=11 // pred_check
          %p522 = pneg %p323
        $region54: #{tpu_custom_call.1} parent=11 // pred_check_branch
          %524 = sbr.rel (%p522) target = $region56
        $region55: #{tpu_custom_call.1} parent=11 // pred_region
          _
        $region56: #{tpu_custom_call.1} parent=11 // pred_fallthru
          _
        // Predicated region
        $region57: #{tpu_custom_call.1} parent=11 // pred_check
          %p525 = pneg %p344
        $region58: #{tpu_custom_call.1} parent=11 // pred_check_branch
          %527 = sbr.rel (%p525) target = $region60
        $region59: #{tpu_custom_call.1} parent=11 // pred_region
          _
        $region60: #{tpu_custom_call.1} parent=11 // pred_fallthru
          _
        // Predicated region
        $region61: #{tpu_custom_call.1} parent=11 // pred_check
          %p528 = pneg %p365
        $region62: #{tpu_custom_call.1} parent=11 // pred_check_branch
          %530 = sbr.rel (%p528) target = $region64
        $region63: #{tpu_custom_call.1} parent=11 // pred_region
          _
        $region64: #{tpu_custom_call.1} parent=11 // pred_fallthru
          _
        // Predicated region
        $region65: #{tpu_custom_call.1} parent=11 // pred_check
          %p531 = pneg %p386
        $region66: #{tpu_custom_call.1} parent=11 // pred_check_branch
          %533 = sbr.rel (%p531) target = $region68
        $region67: #{tpu_custom_call.1} parent=11 // pred_region
          _
        $region68: #{tpu_custom_call.1} parent=11 // pred_fallthru
          _
        // Predicated region
        $region69: #{tpu_custom_call.1} parent=11 // pred_check
          %p534 = pneg %p407
        $region70: #{tpu_custom_call.1} parent=11 // pred_check_branch
          %536 = sbr.rel (%p534) target = $region72
        $region71: #{tpu_custom_call.1} parent=11 // pred_region
          _
        $region72: #{tpu_custom_call.1} parent=11 // pred_fallthru
          _
      $region12: #{tpu_custom_call.1} parent=5 // pred_fallthru
        _
      %p537 = scmp.lt.s32.totalorder %s40, 2
      // Predicated region
      $region73: #{tpu_custom_call.1} parent=5 // pred_check
        %p538 = pneg %p537
      $region74: #{tpu_custom_call.1} parent=5 // pred_check_branch
        %540 = sbr.rel (%p538) target = $region76
      $region75: #{tpu_custom_call.1} parent=5 // pred_region
        // Predicated region
        $region77: #{tpu_custom_call.1} parent=75 // pred_check
          %p541 = pneg %p60
        $region78: #{tpu_custom_call.1} parent=75 // pred_check_branch
          %543 = sbr.rel (%p541) target = $region80
        $region79: #{tpu_custom_call.1} parent=75 // pred_region
          %p544 = scmp.lt.s32.totalorder %s40, 1
          %s545 = scalar_select %p544, %s40, 1
          %s546 = smul.addr %s545, 8
          %s547 = scalar_lea.vmem %s1, %s546
        $region80: #{tpu_custom_call.1} parent=75 // pred_fallthru
          _
        // Predicated region
        $region81: #{tpu_custom_call.1} parent=75 // pred_check
          %p548 = pneg %p86
        $region82: #{tpu_custom_call.1} parent=75 // pred_check_branch
          %550 = sbr.rel (%p548) target = $region84
        $region83: #{tpu_custom_call.1} parent=75 // pred_region
          %s551 = sand.u32 %s76, 1
          %s552 = scalar_lea.sflag [#allocation6], %s551
          %s553 = sand.u32 %s76, 1
          %s554 = smul.addr %s553, 4
          %s555 = scalar_lea.vmem [#allocation5], %s554
          %557 = vsyncadd %s552, 0
          %s558 = smul.addr %s40, 4
          %s559 = scalar_lea.hbm %s2, %s558
          %s561 = sshll.u32 %s559, 4
          %s562 = int_to_ptr.hbm [resolvable:$true] %s561
          %s563 = sshll.u32 %s555, 4
          %s564 = int_to_ptr.vmem [resolvable:$true] %s563
          %566 = dma.hbm_to_vmem [thread:$0]  %s562, 64, %s564, %s552
        $region84: #{tpu_custom_call.1} parent=75 // pred_fallthru
          _
      $region76: #{tpu_custom_call.1} parent=5 // pred_fallthru
        _
      %p567 = scmp.le.s32.totalorder 1, %s40
      %p568 = scmp.lt.s32.totalorder %s40, 3
      %p569 = pnand %p567, %p568
      %p570 = pneg %p569
      // Predicated region
      $region85: #{tpu_custom_call.1} parent=5 // pred_check
        _
      $region86: #{tpu_custom_call.1} parent=5 // pred_check_branch
        %572 = sbr.rel (%p569) target = $region88
      $region87: #{tpu_custom_call.1} parent=5 // pred_region
        %s573 = ssub.s32 %s40, 1
        %s574 = sand.u32 %s79, 1
        %s575 = scalar_lea.sflag [#allocation6], %s574
        %s576 = sand.u32 %s79, 1
        %s577 = smul.addr %s576, 4
        %s578 = scalar_lea.vmem [#allocation5], %s577
        // Predicated region
        $region89: #{tpu_custom_call.1} parent=87 // pred_check
          %p579 = pneg %p92
        $region90: #{tpu_custom_call.1} parent=87 // pred_check_branch
          %581 = sbr.rel (%p579) target = $region92
        $region91: #{tpu_custom_call.1} parent=87 // pred_region
          %583 = dma.done %s575, 64
        $region92: #{tpu_custom_call.1} parent=87 // pred_fallthru
          _
        // Predicated region
        $region93: #{tpu_custom_call.1} parent=87 // pred_check
          %p584 = pneg %p155
        $region94: #{tpu_custom_call.1} parent=87 // pred_check_branch
          %586 = sbr.rel (%p584) target = $region96
        $region95: #{tpu_custom_call.1} parent=87 // pred_region
          %588 = dma.done [#allocation9], 256
        $region96: #{tpu_custom_call.1} parent=87 // pred_fallthru
          _
        // Predicated region
        $region97: #{tpu_custom_call.1} parent=87 // pred_check
          %p589 = pneg %p176
        $region98: #{tpu_custom_call.1} parent=87 // pred_check_branch
          %591 = sbr.rel (%p589) target = $region100
        $region99: #{tpu_custom_call.1} parent=87 // pred_region
          %593 = dma.done [#allocation9], 256
        $region100: #{tpu_custom_call.1} parent=87 // pred_fallthru
          _
        // Predicated region
        $region101: #{tpu_custom_call.1} parent=87 // pred_check
          %p594 = pneg %p197
        $region102: #{tpu_custom_call.1} parent=87 // pred_check_branch
          %596 = sbr.rel (%p594) target = $region104
        $region103: #{tpu_custom_call.1} parent=87 // pred_region
          %598 = dma.done [#allocation12], 256
        $region104: #{tpu_custom_call.1} parent=87 // pred_fallthru
          _
        // Predicated region
        $region105: #{tpu_custom_call.1} parent=87 // pred_check
          %p599 = pneg %p218
        $region106: #{tpu_custom_call.1} parent=87 // pred_check_branch
          %601 = sbr.rel (%p599) target = $region108
        $region107: #{tpu_custom_call.1} parent=87 // pred_region
          %603 = dma.done [#allocation12], 256
        $region108: #{tpu_custom_call.1} parent=87 // pred_fallthru
          _
        %p604 = scmp.lt.s32.totalorder %s45, 1
        %s605 = scalar_select %p604, %s45, 1
        %s606 = smul.addr %s605, 8
        %s607 = scalar_lea.vmem %s1, %s606
        %p608 = pneg %p66
        %p609 = pneg %p63
        %s610 = sand.u32 %s79, 1
        %s611 = scalar_lea.sflag [#allocation6], %s610
        %s612 = sand.u32 %s79, 1
        %s613 = smul.addr %s612, 4
        %s614 = scalar_lea.vmem [#allocation5], %s613
        %p615 = pneg %p92
        %p616 = pneg %p89
        %p617 = pneg %p113
        %p618 = pneg %p110
        %p619 = pneg %p134
        %p620 = pneg %p131
        %p621 = pneg %p155
        %p622 = pneg %p152
        %p623 = pneg %p176
        %p624 = pneg %p173
        %p625 = pneg %p197
        %p626 = pneg %p194
        %p627 = pneg %p218
        %p628 = pneg %p215
        %p629 = pneg %p239
        %p630 = pneg %p236
        %p631 = pneg %p260
        %p632 = pneg %p257
        %p633 = pneg %p281
        %p634 = pneg %p278
        %p635 = pneg %p302
        %p636 = pneg %p299
        %p637 = pneg %p323
        %p638 = pneg %p320
        %p639 = pneg %p344
        %p640 = pneg %p341
        %p641 = pneg %p365
        %p642 = pneg %p362
        %p643 = pneg %p386
        %p644 = pneg %p383
        %p645 = pneg %p407
        %p646 = pneg %p404
        %p647 = pneg %p433
        %p648 = pneg %p430
        %s649 = sand.u32 %s420, 1
        %s650 = scalar_lea.sflag [#allocation7], %s649
        %s651 = sand.u32 %s420, 1
        %s652 = smul.addr %s651, 8
        %s653 = scalar_lea.vmem [#allocation14], %s652
        %p654 = scmp.lt.s32.totalorder %s45, 1
        %s655 = scalar_select %p654, %s45, 1
        %s656 = smul.addr %s655, 8
        %s657 = scalar_lea.vmem %s1, %s656
        %v659 = vld [vmem:[%s657] sm:$0xff]
        %v660 = vpack.c.bf16 %v659, %v659
        %v661 = vld [vmem:[%s3] sm:$0xf]
        %v662 = vld [vmem:[%s3 + $0x4] sm:$0xf]
        %v663 = vld [vmem:[%s3 + $0x8] sm:$0xf]
        %v664 = vld [vmem:[%s3 + $0xc] sm:$0xf]
        %v669 = vunpack.c.l.b16 %v661
        %v670 = vunpack.c.l.b16 %v662
        %v671 = vunpack.c.l.b16 %v663
        %v672 = vunpack.c.l.b16 %v664
        %v673 = vpack.c.b16 %v670, %v669
        %v674 = vpack.c.b16 %v672, %v671
        %vm677 = vcmask 261120
        %v679 = vsel %vm677, %v660, 0
        %681 = vmatpush.bf16.msra.mxu0 0
        %682 = vmatpush.bf16.msra.mxu0 0
        %683 = vmatpush.bf16.msra.mxu0 0
        %684 = vmatpush.bf16.msra.mxu0 0
        %685 = vmatpush.bf16.msra.mxu0 0
        %686 = vmatpush.bf16.msra.mxu0 0
        %687 = vmatpush.bf16.msra.mxu0 %v674
        %688 = vmatpush.bf16.msra.mxu0 %v673
        %689 = vmatmul.bf16.gmra.mxu0 %v679
        %v690 = vpop.f32.mrf.mxu0
        %v691 = vadd.f32 0.0, %v690
        %v692 = vpop.f32.mrf.mxu0
        %693 = vdwg.mxu0
        %v694 = vmul.f32 %v691, 0.35355338
        %v695 = vpack.c.bf16 %v694, %v694
        %v696 = vpack.c.bf16 %v691, %v691
        %v697 = vlaneseq
        %v698 = vshrl.u32 %v697, 7
        %v699 = vlaneseq
        %v700 = vand.u32 %v699, 127
        %vm701 = vcmp.le.s32.totalorder %v700, %v698
        %v703 = vunpack.c.l.b16 %v696
        %v704 = vpack.c.b16 %v703, %v703
        %705 = vrot.lane.b32.xlu0 %v704, 96
        %v706 = vpop.permute.xlu0 %705
        %vm707 = vcmask 64512
        %v709 = vsel %vm707, %v695, 0
        %v712 = vsel %vm707, %v706, 0
        %714 = vmatpush.bf16.xpose.msra.mxu0 0
        %715 = vmatpush.bf16.xpose.msra.mxu0 0
        %716 = vmatpush.bf16.xpose.msra.mxu0 0
        %717 = vmatpush.bf16.xpose.msra.mxu0 0
        %718 = vmatpush.bf16.xpose.msra.mxu0 0
        %719 = vmatpush.bf16.xpose.msra.mxu0 0
        %720 = vmatpush.bf16.xpose.msra.mxu0 0
        %721 = vmatpush.bf16.xpose.msra.mxu0 %v712
        %722 = vmatmul.bf16.gmra.mxu0 %v709
        %v723 = vpop.f32.mrf.mxu0
        %v724 = vadd.f32 0.0, %v723
        %v725 = vpop.f32.mrf.mxu0
        %726 = vdwg.mxu0
        %v727 = vsel %vm701, %v724, -1000000.0
        %v728 = vsel %vm707, %v727, -inf
        %729 = vmax.xlane.f32.xlu0 %v728
        %v730 = vpop.xlane.xlu0 %729
        %v731 = vsub.f32 %v727, %v730
        %v732 = vmul.f32 %v731, 1.442695
        %v733 = vpow.pop %v732
        %v734 = vsel %vm707, %v733, 0.0
        %735 = vadd.xlane.f32.xlu0 %v734
        %v736 = vpop.xlane.xlu0 %735
        %v737 = vrcp.pop %v736
        %v738 = vmul.f32 %v733, %v737
        %v739 = vpack.c.bf16 %v738, %v738
        %740 = vrot.lane.b32.xlu0 %v704, 64
        %v741 = vpop.permute.xlu0 %740
        %v743 = vsel %vm707, %v739, 0
        %vm745 = vcmask 1043456
        %v747 = vsel %vm745, %v741, 0
        %749 = vmatpush.bf16.msra.mxu0 0
        %750 = vmatpush.bf16.msra.mxu0 0
        %751 = vmatpush.bf16.msra.mxu0 0
        %752 = vmatpush.bf16.msra.mxu0 0
        %753 = vmatpush.bf16.msra.mxu0 0
        %754 = vmatpush.bf16.msra.mxu0 0
        %755 = vmatpush.bf16.msra.mxu0 0
        %756 = vmatpush.bf16.msra.mxu0 %v747
        %757 = vmatmul.bf16.gmra.mxu0 %v743
        %v758 = vpop.f32.mrf.mxu0
        %v759 = vadd.f32 0.0, %v758
        %v760 = vpop.f32.mrf.mxu0
        %761 = vdwg.mxu0
        %v762 = vpack.c.bf16 %v759, %v759
        %vm763 = vcmask 60416
        %764 = vst.msk [vmem:[#allocation2] sm:$0xf] %vm763, %v762
        %v766 = vunpack.c.l.b16 %v695
        %v767 = vpack.c.b16 %v766, %v766
        %768 = vrot.lane.b32.xlu0 %v767, 120
        %v769 = vpop.permute.xlu0 %768
        %770 = vrot.lane.b32.xlu0 %v704, 88
        %v771 = vpop.permute.xlu0 %770
        %v773 = vsel %vm707, %v769, 0
        %v776 = vsel %vm707, %v771, 0
        %778 = vmatpush.bf16.xpose.msra.mxu0 0
        %779 = vmatpush.bf16.xpose.msra.mxu0 0
        %780 = vmatpush.bf16.xpose.msra.mxu0 0
        %781 = vmatpush.bf16.xpose.msra.mxu0 0
        %782 = vmatpush.bf16.xpose.msra.mxu0 0
        %783 = vmatpush.bf16.xpose.msra.mxu0 0
        %784 = vmatpush.bf16.xpose.msra.mxu0 0
        %785 = vmatpush.bf16.xpose.msra.mxu0 %v776
        %786 = vmatmul.bf16.gmra.mxu0 %v773
        %v787 = vpop.f32.mrf.mxu0
        %v788 = vadd.f32 0.0, %v787
        %v789 = vpop.f32.mrf.mxu0
        %790 = vdwg.mxu0
        %v791 = vsel %vm701, %v788, -1000000.0
        %v792 = vsel %vm707, %v791, -inf
        %793 = vmax.xlane.f32.xlu0 %v792
        %v794 = vpop.xlane.xlu0 %793
        %v795 = vsub.f32 %v791, %v794
        %v796 = vmul.f32 %v795, 1.442695
        %v797 = vpow.pop %v796
        %v798 = vsel %vm707, %v797, 0.0
        %799 = vadd.xlane.f32.xlu0 %v798
        %v800 = vpop.xlane.xlu0 %799
        %v801 = vrcp.pop %v800
        %v802 = vmul.f32 %v797, %v801
        %v803 = vpack.c.bf16 %v802, %v802
        %804 = vrot.lane.b32.xlu0 %v704, 56
        %v805 = vpop.permute.xlu0 %804
        %v807 = vsel %vm707, %v803, 0
        %v810 = vsel %vm745, %v805, 0
        %812 = vmatpush.bf16.msra.mxu0 0
        %813 = vmatpush.bf16.msra.mxu0 0
        %814 = vmatpush.bf16.msra.mxu0 0
        %815 = vmatpush.bf16.msra.mxu0 0
        %816 = vmatpush.bf16.msra.mxu0 0
        %817 = vmatpush.bf16.msra.mxu0 0
        %818 = vmatpush.bf16.msra.mxu0 0
        %819 = vmatpush.bf16.msra.mxu0 %v810
        %820 = vmatmul.bf16.gmra.mxu0 %v807
        %v821 = vpop.f32.mrf.mxu0
        %v822 = vadd.f32 0.0, %v821
        %v823 = vpop.f32.mrf.mxu0
        %824 = vdwg.mxu0
        %v825 = vpack.c.bf16 %v822, %v822
        %827 = vrot.lane.b32.xlu0 %v825, 8
        %v828 = vpop.permute.xlu0 %827
        %vm830 = vcmask 126016
        %831 = vst.msk [vmem:[#allocation2] sm:$0xf] %vm830, %v828
        %832 = vrot.lane.b32.xlu0 %v767, 112
        %v833 = vpop.permute.xlu0 %832
        %834 = vrot.lane.b32.xlu0 %v704, 80
        %v835 = vpop.permute.xlu0 %834
        %v837 = vsel %vm707, %v833, 0
        %v840 = vsel %vm707, %v835, 0
        %842 = vmatpush.bf16.xpose.msra.mxu0 0
        %843 = vmatpush.bf16.xpose.msra.mxu0 0
        %844 = vmatpush.bf16.xpose.msra.mxu0 0
        %845 = vmatpush.bf16.xpose.msra.mxu0 0
        %846 = vmatpush.bf16.xpose.msra.mxu0 0
        %847 = vmatpush.bf16.xpose.msra.mxu0 0
        %848 = vmatpush.bf16.xpose.msra.mxu0 0
        %849 = vmatpush.bf16.xpose.msra.mxu0 %v840
        %850 = vmatmul.bf16.gmra.mxu0 %v837
        %v851 = vpop.f32.mrf.mxu0
        %v852 = vadd.f32 0.0, %v851
        %v853 = vpop.f32.mrf.mxu0
        %854 = vdwg.mxu0
        %v855 = vsel %vm701, %v852, -1000000.0
        %v856 = vsel %vm707, %v855, -inf
        %857 = vmax.xlane.f32.xlu0 %v856
        %v858 = vpop.xlane.xlu0 %857
        %v859 = vsub.f32 %v855, %v858
        %v860 = vmul.f32 %v859, 1.442695
        %v861 = vpow.pop %v860
        %v862 = vsel %vm707, %v861, 0.0
        %863 = vadd.xlane.f32.xlu0 %v862
        %v864 = vpop.xlane.xlu0 %863
        %v865 = vrcp.pop %v864
        %v866 = vmul.f32 %v861, %v865
        %v867 = vpack.c.bf16 %v866, %v866
        %868 = vrot.lane.b32.xlu0 %v704, 48
        %v869 = vpop.permute.xlu0 %868
        %v871 = vsel %vm707, %v867, 0
        %v874 = vsel %vm745, %v869, 0
        %876 = vmatpush.bf16.msra.mxu0 0
        %877 = vmatpush.bf16.msra.mxu0 0
        %878 = vmatpush.bf16.msra.mxu0 0
        %879 = vmatpush.bf16.msra.mxu0 0
        %880 = vmatpush.bf16.msra.mxu0 0
        %881 = vmatpush.bf16.msra.mxu0 0
        %882 = vmatpush.bf16.msra.mxu0 0
        %883 = vmatpush.bf16.msra.mxu0 %v874
        %884 = vmatmul.bf16.gmra.mxu0 %v871
        %v885 = vpop.f32.mrf.mxu0
        %v886 = vadd.f32 0.0, %v885
        %v887 = vpop.f32.mrf.mxu0
        %888 = vdwg.mxu0
        %v889 = vpack.c.bf16 %v886, %v886
        %891 = vrot.lane.b32.xlu0 %v889, 16
        %v892 = vpop.permute.xlu0 %891
        %vm894 = vcmask 191616
        %895 = vst.msk [vmem:[#allocation2] sm:$0xf] %vm894, %v892
        %896 = vrot.lane.b32.xlu0 %v767, 104
        %v897 = vpop.permute.xlu0 %896
        %898 = vrot.lane.b32.xlu0 %v704, 72
        %v899 = vpop.permute.xlu0 %898
        %v901 = vsel %vm707, %v897, 0
        %v904 = vsel %vm707, %v899, 0
        %906 = vmatpush.bf16.xpose.msra.mxu0 0
        %907 = vmatpush.bf16.xpose.msra.mxu0 0
        %908 = vmatpush.bf16.xpose.msra.mxu0 0
        %909 = vmatpush.bf16.xpose.msra.mxu0 0
        %910 = vmatpush.bf16.xpose.msra.mxu0 0
        %911 = vmatpush.bf16.xpose.msra.mxu0 0
        %912 = vmatpush.bf16.xpose.msra.mxu0 0
        %913 = vmatpush.bf16.xpose.msra.mxu0 %v904
        %914 = vmatmul.bf16.gmra.mxu0 %v901
        %v915 = vpop.f32.mrf.mxu0
        %v916 = vadd.f32 0.0, %v915
        %v917 = vpop.f32.mrf.mxu0
        %918 = vdwg.mxu0
        %v919 = vsel %vm701, %v916, -1000000.0
        %v920 = vsel %vm707, %v919, -inf
        %921 = vmax.xlane.f32.xlu0 %v920
        %v922 = vpop.xlane.xlu0 %921
        %v923 = vsub.f32 %v919, %v922
        %v924 = vmul.f32 %v923, 1.442695
        %v925 = vpow.pop %v924
        %v926 = vsel %vm707, %v925, 0.0
        %927 = vadd.xlane.f32.xlu0 %v926
        %v928 = vpop.xlane.xlu0 %927
        %v929 = vrcp.pop %v928
        %v930 = vmul.f32 %v925, %v929
        %v931 = vpack.c.bf16 %v930, %v930
        %932 = vrot.lane.b32.xlu0 %v704, 40
        %v933 = vpop.permute.xlu0 %932
        %v935 = vsel %vm707, %v931, 0
        %v938 = vsel %vm745, %v933, 0
        %940 = vmatpush.bf16.msra.mxu0 0
        %941 = vmatpush.bf16.msra.mxu0 0
        %942 = vmatpush.bf16.msra.mxu0 0
        %943 = vmatpush.bf16.msra.mxu0 0
        %944 = vmatpush.bf16.msra.mxu0 0
        %945 = vmatpush.bf16.msra.mxu0 0
        %946 = vmatpush.bf16.msra.mxu0 0
        %947 = vmatpush.bf16.msra.mxu0 %v938
        %948 = vmatmul.bf16.gmra.mxu0 %v935
        %v949 = vpop.f32.mrf.mxu0
        %v950 = vadd.f32 0.0, %v949
        %v951 = vpop.f32.mrf.mxu0
        %952 = vdwg.mxu0
        %v953 = vpack.c.bf16 %v950, %v950
        %955 = vrot.lane.b32.xlu0 %v953, 24
        %v956 = vpop.permute.xlu0 %955
        %vm958 = vcmask 257216
        %959 = vst.msk [vmem:[#allocation2] sm:$0xf] %vm958, %v956
        %v960 = vld [vmem:[#allocation2] sm:$0xf]
        %v961 = vld [vmem:[%s4] sm:$0xf]
        %v962 = vld [vmem:[%s4 + $0x4] sm:$0xf]
        %v963 = vld [vmem:[%s4 + $0x8] sm:$0xf]
        %v964 = vld [vmem:[%s4 + $0xc] sm:$0xf]
        %v969 = vunpack.c.l.b16 %v961
        %v970 = vunpack.c.l.b16 %v962
        %v971 = vunpack.c.l.b16 %v963
        %v972 = vunpack.c.l.b16 %v964
        %v973 = vpack.c.b16 %v970, %v969
        %v974 = vpack.c.b16 %v972, %v971
        %v978 = vsel %vm677, %v960, 0
        %980 = vmatpush.bf16.msra.mxu0 0
        %981 = vmatpush.bf16.msra.mxu0 0
        %982 = vmatpush.bf16.msra.mxu0 0
        %983 = vmatpush.bf16.msra.mxu0 0
        %984 = vmatpush.bf16.msra.mxu0 0
        %985 = vmatpush.bf16.msra.mxu0 0
        %986 = vmatpush.bf16.msra.mxu0 %v974
        %987 = vmatpush.bf16.msra.mxu0 %v973
        %988 = vmatmul.bf16.gmra.mxu0 %v978
        %v989 = vpop.f32.mrf.mxu0
        %v990 = vadd.f32 %v659, %v989
        %v991 = vpop.f32.mrf.mxu0
        %992 = vdwg.mxu0
        %v993 = vld [vmem:[%s12] sm:$0x1]
        %v994 = vld [vmem:[%s13] sm:$0x1]
        %v995 = vsel %vm677, %v990, 0.0
        %996 = vadd.xlane.f32.xlu0 %v995
        %v997 = vpop.xlane.xlu0 %996
        %v998 = vrcp.pop 32.0
        %v999 = vmul.f32 32.0, %v998
        %v1000 = vsub.f32 1.0, %v999
        %v1001 = vmul.f32 %v998, %v1000
        %v1002 = vadd.f32 %v998, %v1001
        %vm1003 = vweird.f32 %v998
        %v1004 = vsel %vm1003, %v998, %v1002
        %v1005 = vmul.f32 %v997, %v1004
        %v1006 = vsub.f32 %v990, %v1005
        %v1007 = vmul.f32 %v1006, %v1006
        %v1008 = vsel %vm677, %v1007, 0.0
        %1009 = vadd.xlane.f32.xlu0 %v1008
        %v1010 = vpop.xlane.xlu0 %1009
        %v1011 = vmul.f32 %v1010, %v1004
        %v1012 = vadd.f32 %v1011, 1e-05
        %v1013 = vrsqrt.pop %v1012
        %v1014 = vmul.f32 %v1013, %v1012
        %v1015 = vmul.f32 %v1014, %v1013
        %v1016 = vmul.f32 0.5, %v1015
        %v1017 = vsub.f32 1.5, %v1016
        %v1018 = vmul.f32 %v1013, %v1017
        %vm1019 = vweird.f32 %v1012
        %vm1020 = vweird.f32 %v1013
        %vm1021 = vmor %vm1019, %vm1020
        %v1022 = vsel %vm1021, %v1013, %v1018
        %v1023 = vmul.f32 %v1006, %v1022
        %v1025 = vperm.slane %v993, 0
        %v1027 = vmul.f32 %v1023, %v1025
        %v1029 = vperm.slane %v994, 0
        %v1031 = vadd.f32 %v1027, %v1029
        %v1032 = vpack.c.bf16 %v1031, %v1031
        %v1033 = vld [vmem:[#allocation8] sm:$0xf]
        %v1034 = vld [vmem:[#allocation8 + $0x4] sm:$0xf]
        %v1035 = vld [vmem:[#allocation8 + $0x8] sm:$0xf]
        %v1036 = vld [vmem:[#allocation8 + $0xc] sm:$0xf]
        %v1041 = vunpack.c.l.b16 %v1033
        %v1042 = vunpack.c.l.b16 %v1034
        %v1043 = vunpack.c.l.b16 %v1035
        %v1044 = vunpack.c.l.b16 %v1036
        %v1045 = vpack.c.b16 %v1042, %v1041
        %v1046 = vpack.c.b16 %v1044, %v1043
        %v1050 = vsel %vm677, %v1032, 0
        %1052 = vmatpush.bf16.msra.mxu0 0
        %1053 = vmatpush.bf16.msra.mxu0 0
        %1054 = vmatpush.bf16.msra.mxu0 0
        %1055 = vmatpush.bf16.msra.mxu0 0
        %1056 = vmatpush.bf16.msra.mxu0 0
        %1057 = vmatpush.bf16.msra.mxu0 0
        %1058 = vmatpush.bf16.msra.mxu0 %v1046
        %1059 = vmatpush.bf16.msra.mxu0 %v1045
        %1060 = vmatmul.bf16.gmra.mxu0 %v1050
        %v1061 = vpop.f32.mrf.mxu0
        %v1062 = vadd.f32 0.0, %v1061
        %v1063 = vpop.f32.mrf.mxu0
        %1064 = vdwg.mxu0
        %v1065 = vmul.f32 %v1062, 0.35355338
        %v1066 = vpack.c.bf16 %v1065, %v1065
        %v1067 = vld [vmem:[%s578] sm:$0xf]
        %v1068 = vld [vmem:[#allocation10] sm:$0xf]
        %v1069 = vld [vmem:[#allocation10 + $0x4] sm:$0xf]
        %v1070 = vld [vmem:[#allocation10 + $0x8] sm:$0xf]
        %v1071 = vld [vmem:[#allocation10 + $0xc] sm:$0xf]
        %v1076 = vunpack.c.l.b16 %v1068
        %v1077 = vunpack.c.l.b16 %v1069
        %v1078 = vunpack.c.l.b16 %v1070
        %v1079 = vunpack.c.l.b16 %v1071
        %v1080 = vpack.c.b16 %v1077, %v1076
        %v1081 = vpack.c.b16 %v1079, %v1078
        %v1085 = vsel %vm677, %v1067, 0
        %1087 = vmatpush.bf16.msra.mxu0 0
        %1088 = vmatpush.bf16.msra.mxu0 0
        %1089 = vmatpush.bf16.msra.mxu0 0
        %1090 = vmatpush.bf16.msra.mxu0 0
        %1091 = vmatpush.bf16.msra.mxu0 0
        %1092 = vmatpush.bf16.msra.mxu0 0
        %1093 = vmatpush.bf16.msra.mxu0 %v1081
        %1094 = vmatpush.bf16.msra.mxu0 %v1080
        %1095 = vmatmul.bf16.gmra.mxu0 %v1085
        %v1096 = vpop.f32.mrf.mxu0
        %v1097 = vadd.f32 0.0, %v1096
        %v1098 = vpop.f32.mrf.mxu0
        %1099 = vdwg.mxu0
        %v1100 = vpack.c.bf16 %v1097, %v1097
        %s1101 = sld [smem:[#allocation4 + %s45]]
        %v1102 = vstv %s1101
        %vm1103 = vcmp.lt.s32.totalorder %v700, %v1102
        %v1105 = vsel %vm707, %v1066, 0
        %v1108 = vsel %vm707, %v1100, 0
        %1110 = vmatpush.bf16.xpose.msra.mxu0 0
        %1111 = vmatpush.bf16.xpose.msra.mxu0 0
        %1112 = vmatpush.bf16.xpose.msra.mxu0 0
        %1113 = vmatpush.bf16.xpose.msra.mxu0 0
        %1114 = vmatpush.bf16.xpose.msra.mxu0 0
        %1115 = vmatpush.bf16.xpose.msra.mxu0 0
        %1116 = vmatpush.bf16.xpose.msra.mxu0 0
        %1117 = vmatpush.bf16.xpose.msra.mxu0 %v1108
        %1118 = vmatmul.bf16.gmra.mxu0 %v1105
        %v1119 = vpop.f32.mrf.mxu0
        %v1120 = vadd.f32 0.0, %v1119
        %v1121 = vpop.f32.mrf.mxu0
        %1122 = vdwg.mxu0
        %v1123 = vsel %vm1103, 1, 0
        %vm1124 = vcmp.eq.s32.totalorder %v1123, 1
        %v1125 = vsel %vm1124, %v1120, -1000000.0
        %v1126 = vsel %vm707, %v1125, -inf
        %1127 = vmax.xlane.f32.xlu0 %v1126
        %v1128 = vpop.xlane.xlu0 %1127
        %v1129 = vsub.f32 %v1125, %v1128
        %v1130 = vmul.f32 %v1129, 1.442695
        %v1131 = vpow.pop %v1130
        %v1132 = vsel %vm707, %v1131, 0.0
        %1133 = vadd.xlane.f32.xlu0 %v1132
        %v1134 = vpop.xlane.xlu0 %1133
        %v1135 = vrcp.pop %v1134
        %v1136 = vmul.f32 %v1131, %v1135
        %v1137 = vpack.c.bf16 %v1136, %v1136
        %v1139 = vunpack.c.l.b16 %v1100
        %v1140 = vpack.c.b16 %v1139, %v1139
        %1141 = vrot.lane.b32.xlu0 %v1140, 96
        %v1142 = vpop.permute.xlu0 %1141
        %v1144 = vsel %vm707, %v1137, 0
        %v1147 = vsel %vm745, %v1142, 0
        %1149 = vmatpush.bf16.msra.mxu0 0
        %1150 = vmatpush.bf16.msra.mxu0 0
        %1151 = vmatpush.bf16.msra.mxu0 0
        %1152 = vmatpush.bf16.msra.mxu0 0
        %1153 = vmatpush.bf16.msra.mxu0 0
        %1154 = vmatpush.bf16.msra.mxu0 0
        %1155 = vmatpush.bf16.msra.mxu0 0
        %1156 = vmatpush.bf16.msra.mxu0 %v1147
        %1157 = vmatmul.bf16.gmra.mxu0 %v1144
        %v1158 = vpop.f32.mrf.mxu0
        %v1159 = vadd.f32 0.0, %v1158
        %v1160 = vpop.f32.mrf.mxu0
        %1161 = vdwg.mxu0
        %v1162 = vpack.c.bf16 %v1159, %v1159
        %1163 = vst.msk [vmem:[#allocation2] sm:$0xf] %vm763, %v1162
        %v1165 = vunpack.c.l.b16 %v1066
        %v1166 = vpack.c.b16 %v1165, %v1165
        %1167 = vrot.lane.b32.xlu0 %v1166, 120
        %v1168 = vpop.permute.xlu0 %1167
        %1169 = vrot.lane.b32.xlu0 %v1140, 120
        %v1170 = vpop.permute.xlu0 %1169
        %v1172 = vsel %vm707, %v1168, 0
        %v1175 = vsel %vm707, %v1170, 0
        %1177 = vmatpush.bf16.xpose.msra.mxu0 0
        %1178 = vmatpush.bf16.xpose.msra.mxu0 0
        %1179 = vmatpush.bf16.xpose.msra.mxu0 0
        %1180 = vmatpush.bf16.xpose.msra.mxu0 0
        %1181 = vmatpush.bf16.xpose.msra.mxu0 0
        %1182 = vmatpush.bf16.xpose.msra.mxu0 0
        %1183 = vmatpush.bf16.xpose.msra.mxu0 0
        %1184 = vmatpush.bf16.xpose.msra.mxu0 %v1175
        %1185 = vmatmul.bf16.gmra.mxu0 %v1172
        %v1186 = vpop.f32.mrf.mxu0
        %v1187 = vadd.f32 0.0, %v1186
        %v1188 = vpop.f32.mrf.mxu0
        %1189 = vdwg.mxu0
        %v1190 = vsel %vm1124, %v1187, -1000000.0
        %v1191 = vsel %vm707, %v1190, -inf
        %1192 = vmax.xlane.f32.xlu0 %v1191
        %v1193 = vpop.xlane.xlu0 %1192
        %v1194 = vsub.f32 %v1190, %v1193
        %v1195 = vmul.f32 %v1194, 1.442695
        %v1196 = vpow.pop %v1195
        %v1197 = vsel %vm707, %v1196, 0.0
        %1198 = vadd.xlane.f32.xlu0 %v1197
        %v1199 = vpop.xlane.xlu0 %1198
        %v1200 = vrcp.pop %v1199
        %v1201 = vmul.f32 %v1196, %v1200
        %v1202 = vpack.c.bf16 %v1201, %v1201
        %1203 = vrot.lane.b32.xlu0 %v1140, 88
        %v1204 = vpop.permute.xlu0 %1203
        %v1206 = vsel %vm707, %v1202, 0
        %v1209 = vsel %vm745, %v1204, 0
        %1211 = vmatpush.bf16.msra.mxu0 0
        %1212 = vmatpush.bf16.msra.mxu0 0
        %1213 = vmatpush.bf16.msra.mxu0 0
        %1214 = vmatpush.bf16.msra.mxu0 0
        %1215 = vmatpush.bf16.msra.mxu0 0
        %1216 = vmatpush.bf16.msra.mxu0 0
        %1217 = vmatpush.bf16.msra.mxu0 0
        %1218 = vmatpush.bf16.msra.mxu0 %v1209
        %1219 = vmatmul.bf16.gmra.mxu0 %v1206
        %v1220 = vpop.f32.mrf.mxu0
        %v1221 = vadd.f32 0.0, %v1220
        %v1222 = vpop.f32.mrf.mxu0
        %1223 = vdwg.mxu0
        %v1224 = vpack.c.bf16 %v1221, %v1221
        %1226 = vrot.lane.b32.xlu0 %v1224, 8
        %v1227 = vpop.permute.xlu0 %1226
        %1229 = vst.msk [vmem:[#allocation2] sm:$0xf] %vm830, %v1227
        %1230 = vrot.lane.b32.xlu0 %v1166, 112
        %v1231 = vpop.permute.xlu0 %1230
        %1232 = vrot.lane.b32.xlu0 %v1140, 112
        %v1233 = vpop.permute.xlu0 %1232
        %v1235 = vsel %vm707, %v1231, 0
        %v1238 = vsel %vm707, %v1233, 0
        %1240 = vmatpush.bf16.xpose.msra.mxu0 0
        %1241 = vmatpush.bf16.xpose.msra.mxu0 0
        %1242 = vmatpush.bf16.xpose.msra.mxu0 0
        %1243 = vmatpush.bf16.xpose.msra.mxu0 0
        %1244 = vmatpush.bf16.xpose.msra.mxu0 0
        %1245 = vmatpush.bf16.xpose.msra.mxu0 0
        %1246 = vmatpush.bf16.xpose.msra.mxu0 0
        %1247 = vmatpush.bf16.xpose.msra.mxu0 %v1238
        %1248 = vmatmul.bf16.gmra.mxu0 %v1235
        %v1249 = vpop.f32.mrf.mxu0
        %v1250 = vadd.f32 0.0, %v1249
        %v1251 = vpop.f32.mrf.mxu0
        %1252 = vdwg.mxu0
        %v1253 = vsel %vm1124, %v1250, -1000000.0
        %v1254 = vsel %vm707, %v1253, -inf
        %1255 = vmax.xlane.f32.xlu0 %v1254
        %v1256 = vpop.xlane.xlu0 %1255
        %v1257 = vsub.f32 %v1253, %v1256
        %v1258 = vmul.f32 %v1257, 1.442695
        %v1259 = vpow.pop %v1258
        %v1260 = vsel %vm707, %v1259, 0.0
        %1261 = vadd.xlane.f32.xlu0 %v1260
        %v1262 = vpop.xlane.xlu0 %1261
        %v1263 = vrcp.pop %v1262
        %v1264 = vmul.f32 %v1259, %v1263
        %v1265 = vpack.c.bf16 %v1264, %v1264
        %1266 = vrot.lane.b32.xlu0 %v1140, 80
        %v1267 = vpop.permute.xlu0 %1266
        %v1269 = vsel %vm707, %v1265, 0
        %v1272 = vsel %vm745, %v1267, 0
        %1274 = vmatpush.bf16.msra.mxu0 0
        %1275 = vmatpush.bf16.msra.mxu0 0
        %1276 = vmatpush.bf16.msra.mxu0 0
        %1277 = vmatpush.bf16.msra.mxu0 0
        %1278 = vmatpush.bf16.msra.mxu0 0
        %1279 = vmatpush.bf16.msra.mxu0 0
        %1280 = vmatpush.bf16.msra.mxu0 0
        %1281 = vmatpush.bf16.msra.mxu0 %v1272
        %1282 = vmatmul.bf16.gmra.mxu0 %v1269
        %v1283 = vpop.f32.mrf.mxu0
        %v1284 = vadd.f32 0.0, %v1283
        %v1285 = vpop.f32.mrf.mxu0
        %1286 = vdwg.mxu0
        %v1287 = vpack.c.bf16 %v1284, %v1284
        %1289 = vrot.lane.b32.xlu0 %v1287, 16
        %v1290 = vpop.permute.xlu0 %1289
        %1292 = vst.msk [vmem:[#allocation2] sm:$0xf] %vm894, %v1290
        %1293 = vrot.lane.b32.xlu0 %v1166, 104
        %v1294 = vpop.permute.xlu0 %1293
        %1295 = vrot.lane.b32.xlu0 %v1140, 104
        %v1296 = vpop.permute.xlu0 %1295
        %v1298 = vsel %vm707, %v1294, 0
        %v1301 = vsel %vm707, %v1296, 0
        %1303 = vmatpush.bf16.xpose.msra.mxu0 0
        %1304 = vmatpush.bf16.xpose.msra.mxu0 0
        %1305 = vmatpush.bf16.xpose.msra.mxu0 0
        %1306 = vmatpush.bf16.xpose.msra.mxu0 0
        %1307 = vmatpush.bf16.xpose.msra.mxu0 0
        %1308 = vmatpush.bf16.xpose.msra.mxu0 0
        %1309 = vmatpush.bf16.xpose.msra.mxu0 0
        %1310 = vmatpush.bf16.xpose.msra.mxu0 %v1301
        %1311 = vmatmul.bf16.gmra.mxu0 %v1298
        %v1312 = vpop.f32.mrf.mxu0
        %v1313 = vadd.f32 0.0, %v1312
        %v1314 = vpop.f32.mrf.mxu0
        %1315 = vdwg.mxu0
        %v1316 = vsel %vm1124, %v1313, -1000000.0
        %v1317 = vsel %vm707, %v1316, -inf
        %1318 = vmax.xlane.f32.xlu0 %v1317
        %v1319 = vpop.xlane.xlu0 %1318
        %v1320 = vsub.f32 %v1316, %v1319
        %v1321 = vmul.f32 %v1320, 1.442695
        %v1322 = vpow.pop %v1321
        %v1323 = vsel %vm707, %v1322, 0.0
        %1324 = vadd.xlane.f32.xlu0 %v1323
        %v1325 = vpop.xlane.xlu0 %1324
        %v1326 = vrcp.pop %v1325
        %v1327 = vmul.f32 %v1322, %v1326
        %v1328 = vpack.c.bf16 %v1327, %v1327
        %1329 = vrot.lane.b32.xlu0 %v1140, 72
        %v1330 = vpop.permute.xlu0 %1329
        %v1332 = vsel %vm707, %v1328, 0
        %v1335 = vsel %vm745, %v1330, 0
        %1337 = vmatpush.bf16.msra.mxu0 0
        %1338 = vmatpush.bf16.msra.mxu0 0
        %1339 = vmatpush.bf16.msra.mxu0 0
        %1340 = vmatpush.bf16.msra.mxu0 0
        %1341 = vmatpush.bf16.msra.mxu0 0
        %1342 = vmatpush.bf16.msra.mxu0 0
        %1343 = vmatpush.bf16.msra.mxu0 0
        %1344 = vmatpush.bf16.msra.mxu0 %v1335
        %1345 = vmatmul.bf16.gmra.mxu0 %v1332
        %v1346 = vpop.f32.mrf.mxu0
        %v1347 = vadd.f32 0.0, %v1346
        %v1348 = vpop.f32.mrf.mxu0
        %1349 = vdwg.mxu0
        %v1350 = vpack.c.bf16 %v1347, %v1347
        %1352 = vrot.lane.b32.xlu0 %v1350, 24
        %v1353 = vpop.permute.xlu0 %1352
        %1355 = vst.msk [vmem:[#allocation2] sm:$0xf] %vm958, %v1353
        %v1356 = vld [vmem:[#allocation2] sm:$0xf]
        %v1357 = vld [vmem:[#allocation11] sm:$0xf]
        %v1358 = vld [vmem:[#allocation11 + $0x4] sm:$0xf]
        %v1359 = vld [vmem:[#allocation11 + $0x8] sm:$0xf]
        %v1360 = vld [vmem:[#allocation11 + $0xc] sm:$0xf]
        %v1365 = vunpack.c.l.b16 %v1357
        %v1366 = vunpack.c.l.b16 %v1358
        %v1367 = vunpack.c.l.b16 %v1359
        %v1368 = vunpack.c.l.b16 %v1360
        %v1369 = vpack.c.b16 %v1366, %v1365
        %v1370 = vpack.c.b16 %v1368, %v1367
        %v1374 = vsel %vm677, %v1356, 0
        %1376 = vmatpush.bf16.msra.mxu0 0
        %1377 = vmatpush.bf16.msra.mxu0 0
        %1378 = vmatpush.bf16.msra.mxu0 0
        %1379 = vmatpush.bf16.msra.mxu0 0
        %1380 = vmatpush.bf16.msra.mxu0 0
        %1381 = vmatpush.bf16.msra.mxu0 0
        %1382 = vmatpush.bf16.msra.mxu0 %v1370
        %1383 = vmatpush.bf16.msra.mxu0 %v1369
        %1384 = vmatmul.bf16.gmra.mxu0 %v1374
        %v1385 = vpop.f32.mrf.mxu0
        %v1386 = vadd.f32 %v1031, %v1385
        %v1387 = vpop.f32.mrf.mxu0
        %1388 = vdwg.mxu0
        %v1389 = vld [vmem:[%s14] sm:$0x1]
        %v1390 = vld [vmem:[%s15] sm:$0x1]
        %v1391 = vsel %vm677, %v1386, 0.0
        %1392 = vadd.xlane.f32.xlu0 %v1391
        %v1393 = vpop.xlane.xlu0 %1392
        %v1394 = vmul.f32 %v1393, %v1004
        %v1395 = vsub.f32 %v1386, %v1394
        %v1396 = vmul.f32 %v1395, %v1395
        %v1397 = vsel %vm677, %v1396, 0.0
        %1398 = vadd.xlane.f32.xlu0 %v1397
        %v1399 = vpop.xlane.xlu0 %1398
        %v1400 = vmul.f32 %v1399, %v1004
        %v1401 = vadd.f32 %v1400, 1e-05
        %v1402 = vrsqrt.pop %v1401
        %v1403 = vmul.f32 %v1402, %v1401
        %v1404 = vmul.f32 %v1403, %v1402
        %v1405 = vmul.f32 0.5, %v1404
        %v1406 = vsub.f32 1.5, %v1405
        %v1407 = vmul.f32 %v1402, %v1406
        %vm1408 = vweird.f32 %v1401
        %vm1409 = vweird.f32 %v1402
        %vm1410 = vmor %vm1408, %vm1409
        %v1411 = vsel %vm1410, %v1402, %v1407
        %v1412 = vmul.f32 %v1395, %v1411
        %v1414 = vperm.slane %v1389, 0
        %v1416 = vmul.f32 %v1412, %v1414
        %v1418 = vperm.slane %v1390, 0
        %v1420 = vadd.f32 %v1416, %v1418
        %v1421 = vpack.c.bf16 %v1420, %v1420
        %v1422 = vld [vmem:[#allocation13] sm:$0xf]
        %v1423 = vld [vmem:[#allocation13 + $0x4] sm:$0xf]
        %v1424 = vld [vmem:[#allocation13 + $0x8] sm:$0xf]
        %v1425 = vld [vmem:[#allocation13 + $0xc] sm:$0xf]
        %v1426 = vld [vmem:[%s9] sm:$0x1]
        %v1428 = vperm.slane %v1426, 0
        %v1434 = vunpack.c.l.b16 %v1422
        %v1435 = vunpack.c.l.b16 %v1423
        %v1436 = vunpack.c.l.b16 %v1424
        %v1437 = vunpack.c.l.b16 %v1425
        %v1438 = vpack.c.b16 %v1435, %v1434
        %v1439 = vpack.c.b16 %v1437, %v1436
        %v1443 = vsel %vm677, %v1421, 0
        %1445 = vmatpush.bf16.msra.mxu0 0
        %1446 = vmatpush.bf16.msra.mxu0 0
        %1447 = vmatpush.bf16.msra.mxu0 0
        %1448 = vmatpush.bf16.msra.mxu0 0
        %1449 = vmatpush.bf16.msra.mxu0 0
        %1450 = vmatpush.bf16.msra.mxu0 0
        %1451 = vmatpush.bf16.msra.mxu0 %v1439
        %1452 = vmatpush.bf16.msra.mxu0 %v1438
        %1453 = vmatmul.bf16.gmra.mxu0 %v1443
        %v1454 = vpop.f32.mrf.mxu0
        %v1455 = vadd.f32 %v1428, %v1454
        %v1456 = vpop.f32.mrf.mxu0
        %1457 = vdwg.mxu0
        %v1458 = vmax.f32 %v1455, 0.0
        %v1459 = vpack.c.bf16 %v1458, %v1458
        %v1460 = vld [vmem:[%s10] sm:$0xf]
        %v1461 = vld [vmem:[%s10 + $0x4] sm:$0xf]
        %v1462 = vld [vmem:[%s10 + $0x8] sm:$0xf]
        %v1463 = vld [vmem:[%s10 + $0xc] sm:$0xf]
        %v1464 = vld [vmem:[%s10 + $0x10] sm:$0xf]
        %v1465 = vld [vmem:[%s10 + $0x14] sm:$0xf]
        %v1466 = vld [vmem:[%s10 + $0x18] sm:$0xf]
        %v1467 = vld [vmem:[%s10 + $0x1c] sm:$0xf]
        %v1468 = vld [vmem:[%s11] sm:$0x1]
        %v1470 = vperm.slane %v1468, 0
        %v1480 = vunpack.c.l.b16 %v1460
        %v1481 = vunpack.c.l.b16 %v1461
        %v1482 = vunpack.c.l.b16 %v1462
        %v1483 = vunpack.c.l.b16 %v1463
        %v1484 = vunpack.c.l.b16 %v1464
        %v1485 = vunpack.c.l.b16 %v1465
        %v1486 = vunpack.c.l.b16 %v1466
        %v1487 = vunpack.c.l.b16 %v1467
        %v1488 = vpack.c.b16 %v1481, %v1480
        %v1489 = vpack.c.b16 %v1483, %v1482
        %v1490 = vpack.c.b16 %v1485, %v1484
        %v1491 = vpack.c.b16 %v1487, %v1486
        %vm1496 = vcmask 523264
        %v1498 = vsel %vm1496, %v1459, 0
        %1500 = vmatpush.bf16.msra.mxu0 0
        %1501 = vmatpush.bf16.msra.mxu0 0
        %1502 = vmatpush.bf16.msra.mxu0 0
        %1503 = vmatpush.bf16.msra.mxu0 0
        %1504 = vmatpush.bf16.msra.mxu0 %v1491
        %1505 = vmatpush.bf16.msra.mxu0 %v1490
        %1506 = vmatpush.bf16.msra.mxu0 %v1489
        %1507 = vmatpush.bf16.msra.mxu0 %v1488
        %1508 = vmatmul.bf16.gmra.mxu0 %v1498
        %v1509 = vpop.f32.mrf.mxu0
        %v1510 = vadd.f32 %v1470, %v1509
        %v1511 = vpop.f32.mrf.mxu0
        %1512 = vdwg.mxu0
        %v1513 = vadd.f32 %v1510, %v1420
        %v1514 = vld [vmem:[%s16] sm:$0x1]
        %v1515 = vld [vmem:[%s17] sm:$0x1]
        %v1516 = vsel %vm677, %v1513, 0.0
        %1517 = vadd.xlane.f32.xlu0 %v1516
        %v1518 = vpop.xlane.xlu0 %1517
        %v1519 = vmul.f32 %v1518, %v1004
        %v1520 = vsub.f32 %v1513, %v1519
        %v1521 = vmul.f32 %v1520, %v1520
        %v1522 = vsel %vm677, %v1521, 0.0
        %1523 = vadd.xlane.f32.xlu0 %v1522
        %v1524 = vpop.xlane.xlu0 %1523
        %v1525 = vmul.f32 %v1524, %v1004
        %v1526 = vadd.f32 %v1525, 1e-05
        %v1527 = vrsqrt.pop %v1526
        %v1528 = vmul.f32 %v1527, %v1526
        %v1529 = vmul.f32 %v1528, %v1527
        %v1530 = vmul.f32 0.5, %v1529
        %v1531 = vsub.f32 1.5, %v1530
        %v1532 = vmul.f32 %v1527, %v1531
        %vm1533 = vweird.f32 %v1526
        %vm1534 = vweird.f32 %v1527
        %vm1535 = vmor %vm1533, %vm1534
        %v1536 = vsel %vm1535, %v1527, %v1532
        %v1537 = vmul.f32 %v1520, %v1536
        %v1539 = vperm.slane %v1514, 0
        %v1541 = vmul.f32 %v1537, %v1539
        %v1543 = vperm.slane %v1515, 0
        %v1545 = vadd.f32 %v1541, %v1543
        %1546 = vst.msk [vmem:[%s653] sm:$0xff] %vm677, %v1545
        %s1547 = sand.u32 %s420, 1
        %s1548 = scalar_lea.sflag [#allocation7], %s1547
        %s1549 = sand.u32 %s420, 1
        %s1550 = smul.addr %s1549, 8
        %s1551 = scalar_lea.vmem [#allocation14], %s1550
        // Predicated region
        $region109: #{tpu_custom_call.1} parent=87 // pred_check
          %p1552 = pneg %p430
        $region110: #{tpu_custom_call.1} parent=87 // pred_check_branch
          %1554 = sbr.rel (%p1552) target = $region112
        $region111: #{tpu_custom_call.1} parent=87 // pred_region
          %1556 = vsyncadd %s1548, 0
          %s1557 = smul.addr %s45, 8
          %s1558 = scalar_lea.hbm %s18, %s1557
          %s1560 = sshll.u32 %s1551, 4
          %s1561 = int_to_ptr.vmem [resolvable:$true] %s1560
          %s1562 = sshll.u32 %s1558, 4
          %s1563 = int_to_ptr.hbm [resolvable:$true] %s1562
          %1565 = dma.vmem_to_hbm [thread:$0]  %s1561, 128, %s1563, %s1548
        $region112: #{tpu_custom_call.1} parent=87 // pred_fallthru
          _
      $region88: #{tpu_custom_call.1} parent=5 // pred_fallthru
        _
      %p1566 = scmp.le.s32.totalorder 2, %s40
      // Predicated region
      $region113: #{tpu_custom_call.1} parent=5 // pred_check
        %p1567 = pneg %p1566
      $region114: #{tpu_custom_call.1} parent=5 // pred_check_branch
        %1569 = sbr.rel (%p1567) target = $region116
      $region115: #{tpu_custom_call.1} parent=5 // pred_region
        %s1570 = ssub.s32 %s40, 2
        // Predicated region
        $region117: #{tpu_custom_call.1} parent=115 // pred_check
          %p1571 = pneg %p436
        $region118: #{tpu_custom_call.1} parent=115 // pred_check_branch
          %1573 = sbr.rel (%p1571) target = $region120
        $region119: #{tpu_custom_call.1} parent=115 // pred_region
          %s1574 = sand.u32 %s421, 1
          %s1575 = scalar_lea.sflag [#allocation7], %s1574
          %s1576 = sand.u32 %s421, 1
          %s1577 = smul.addr %s1576, 8
          %s1578 = scalar_lea.vmem [#allocation14], %s1577
          %1580 = dma.done %s1575, 128
        $region120: #{tpu_custom_call.1} parent=115 // pred_fallthru
          _
      $region116: #{tpu_custom_call.1} parent=5 // pred_fallthru
        _
    $region6: #{tpu_custom_call.1} parent=1 // loop_footer
      %s44 = sadd.s32 1, %s40
    $region7: #{tpu_custom_call.1} parent=1 // loop_footer_branch
      %39 = sbr.rel target = $region3
    $region8: #{tpu_custom_call.1} parent=1 // loop_exit
      _
    %1581 = vsyncpa [#allocation6], 1
    %s1582 = scalar_lea.sflag [#allocation6], 1
    %1583 = vsyncpa %s1582, 1
    %1584 = vsyncpa [#allocation9], 1
    %1585 = vsyncpa [#allocation12], 1
    %1586 = vsyncpa [#allocation7], 1
    %s1587 = scalar_lea.sflag [#allocation7], 1
    %1588 = vsyncpa %s1587, 1

</llo_original>
